<compile_context>
chip_gen: v6e
topology: v6e:2x2x1
jax: 0.10.0
libtpu: 0.0.40
codegen_flags: <defaults>
</compile_context>

<pallas_src>
import functools

import jax
import jax.numpy as jnp
from jax import lax
from jax.experimental import pallas as pl
from jax.experimental.pallas import tpu as pltpu


# ----------------------------------------------------------------------------
# Fused Pallas kernel: all 5 ASPP branches for one batch element
# ----------------------------------------------------------------------------
def _aspp_fused_kernel(x_ref, wdw1_ref, wdw3_ref, bdw_ref, wbig_ref,
                       bpw_ref, bmap_ref, b5_ref, out_ref, xp_ref,
                       *, H, W, C, Cout, dils, P, TCp):
    """x_ref    : (1, H, W, C)      input tile (NHWC)
       wdw1_ref : (1, C)            branch1 1x1 depthwise scale (BN1 folded)
       wdw3_ref : (27, C)           branches 2..4 3x3 depthwise taps (BN1 folded)
       bdw_ref  : (4, C)            per-branch depthwise bias (BN1 folded)
       wbig_ref : (5C, 9*Cout)      block-structured RHS [pw1..pw4|map1..map4|pw5]
       bpw_ref  : (1, 4*Cout)       pointwise biases (BN2 folded), branches 1..4
       bmap_ref : (1, 4*Cout)       residual mapping biases, branches 1..4
       b5_ref   : (1, Cout)         GAP-branch pointwise bias (BN folded)
       out_ref  : (1, H, W, TCp)    lane-dense concatenated output
       xp_ref   : (H+2P, W+2P, C)   VMEM halo scratch
    """
    # Build the shared zero-padded halo buffer in VMEM (no HBM pad copies).
    # Re-zeroed every step so it is correct regardless of megacore grid split.
    xp_ref[...] = jnp.zeros_like(xp_ref)
    x = x_ref[0]                                           # (H, W, C)
    xp_ref[P:P + H, P:P + W, :] = x

    x_c = x.reshape(H * W, C)

    # branch1: 1x1 depthwise conv == per-channel scale (+ folded BN1 + ReLU)
    acc1 = jnp.maximum(x * wdw1_ref[0, :] + bdw_ref[0, :], 0.0)
    accs = [acc1.reshape(H * W, C)]

    # branches 2..4: 3x3 dilated depthwise conv (+ folded BN1 + ReLU)
    for bi, d in enumerate(dils):
        o = P - d
        acc = jnp.zeros((H, W, C), jnp.float32)
        for ki in range(3):
            for kj in range(3):
                tap = xp_ref[o + ki * d:o + ki * d + H,
                             o + kj * d:o + kj * d + W, :]       # ref slice, not value slice
                acc = acc + tap * wdw3_ref[bi * 9 + ki * 3 + kj, :]
        acc = jnp.maximum(acc + bdw_ref[bi + 1, :], 0.0)
        accs.append(acc.reshape(H * W, C))

    # Single block-structured MXU pass for all 1x1 convolutions.
    lhs = jnp.concatenate(accs + [x_c], axis=-1)                  # (H*W, 5C)
    r = jnp.dot(lhs, wbig_ref[...], preferred_element_type=jnp.float32)  # (H*W, 9*Cout)

    pw = jnp.maximum(r[:, :4 * Cout] + bpw_ref[0, :], 0.0)        # BN2 folded + ReLU
    mp = r[:, 4 * Cout:8 * Cout] + bmap_ref[0, :]                 # residual 1x1 mapping
    out14 = jnp.maximum(pw + mp, 0.0)                             # (H*W, 4*Cout)

    # branch5: GAP -> 1x1 (+BN folded) -> ReLU -> broadcast.
    # mean(x) @ W == mean(x @ W), so reuse the x @ wpw5 columns of the big matmul.
    # (bilinear upsample of a 1x1 map with align_corners=True is a broadcast.)
    g = jnp.sum(r[:, 8 * Cout:9 * Cout], axis=0, keepdims=True) * (1.0 / (H * W))
    y5 = jnp.maximum(g + b5_ref[0, :], 0.0)                       # (1, Cout)
    out5 = jnp.broadcast_to(y5, (H * W, Cout))

    pieces = [out14, out5]
    if TCp > 5 * Cout:
        pieces.append(jnp.zeros((H * W, TCp - 5 * Cout), jnp.float32))
    out_all = jnp.concatenate(pieces, axis=-1)                    # (H*W, TCp) lane-dense
    out_ref[0] = out_all.reshape(H, W, TCp)


# ----------------------------------------------------------------------------
# Wrapper: weight packing + pallas_call plumbing (NCHW in / 5x NCHW out)
# ----------------------------------------------------------------------------
def aspp_forward(x_nchw, params, branch_cfg):
    B, C, H, W = x_nchw.shape
    Cout = params["branch1"]["wpw"].shape[0]
    dils = tuple(d for (k, d) in branch_cfg if k == 3)
    P = max(dils)
    TC = 5 * Cout
    TCp = ((TC + 127) // 128) * 128        # pad channel dim -> unmasked stores

    # --- pack weights --------------------------------------------------------
    wdw1 = params["branch1"]["wdw"].reshape(1, C)                               # (1, C)
    wdw3 = jnp.concatenate(
        [params[f"branch{i}"]["wdw"].reshape(C, 9).T for i in (2, 3, 4)], axis=0)  # (27, C)
    bdw = jnp.stack([params[f"branch{i}"]["bdw"] for i in (1, 2, 3, 4)])         # (4, C)

    wbig = jnp.zeros((5 * C, 9 * Cout), jnp.float32)
    for i in range(4):
        p = params[f"branch{i + 1}"]
        wbig = wbig.at[i * C:(i + 1) * C, i * Cout:(i + 1) * Cout].set(p["wpw"].T)
        wbig = wbig.at[4 * C:5 * C, (4 + i) * Cout:(5 + i) * Cout].set(p["wmap"].T)
    wbig = wbig.at[4 * C:5 * C, 8 * Cout:9 * Cout].set(params["branch5"]["wpw"].T)

    bpw = jnp.concatenate([params[f"branch{i + 1}"]["bpw"] for i in range(4)]).reshape(1, 4 * Cout)
    bmap = jnp.concatenate([params[f"branch{i + 1}"]["bmap"] for i in range(4)]).reshape(1, 4 * Cout)
    b5 = params["branch5"]["bpw"].reshape(1, Cout)

    x = jnp.transpose(x_nchw, (0, 2, 3, 1)).astype(jnp.float32)  # NHWC, single transpose in

    kernel = functools.partial(_aspp_fused_kernel, H=H, W=W, C=C, Cout=Cout,
                               dils=dils, P=P, TCp=TCp)
    out = pl.pallas_call(
        kernel,
        out_shape=jax.ShapeDtypeStruct((B, H, W, TCp), jnp.float32),
        grid=(B,),
        in_specs=[
            pl.BlockSpec((1, H, W, C), lambda b: (b, 0, 0, 0)),
            pl.BlockSpec((1, C), lambda b: (0, 0)),
            pl.BlockSpec((27, C), lambda b: (0, 0)),
            pl.BlockSpec((4, C), lambda b: (0, 0)),
            pl.BlockSpec((5 * C, 9 * Cout), lambda b: (0, 0)),
            pl.BlockSpec((1, 4 * Cout), lambda b: (0, 0)),
            pl.BlockSpec((1, 4 * Cout), lambda b: (0, 0)),
            pl.BlockSpec((1, Cout), lambda b: (0, 0)),
        ],
        out_specs=pl.BlockSpec((1, H, W, TCp), lambda b: (b, 0, 0, 0)),
        scratch_shapes=[pltpu.VMEM((H + 2 * P, W + 2 * P, C), jnp.float32)],
        compiler_params=pltpu.CompilerParams(dimension_semantics=("parallel",)),
    )(x, wdw1, wdw3, bdw, wbig, bpw, bmap, b5)

    # One slice + reshape + transpose back to five NCHW branch outputs.
    out = out[..., :TC].reshape(B, H, W, 5, Cout)
    out = jnp.transpose(out, (0, 3, 4, 1, 2))                    # (B, 5, Cout, H, W)
    return [out[:, i] for i in range(5)]


# ----------------------------------------------------------------------------
# Deterministic parameter init (BN folded as eval-mode affine)
# ----------------------------------------------------------------------------
def init_aspp_params(key, emb, cb, dilation_rates, eps=1e-5):
    def fold_bn(gamma, beta, mean, var):
        a = gamma / jnp.sqrt(var + eps)
        return a, beta - a * mean

    def ds_branch(bkey, k):
        ks = jax.random.split(bkey, 14)
        wdw = 0.1 * jax.random.normal(ks[0], (emb, 1, k, k), jnp.float32)
        bdw = 0.1 * jax.random.normal(ks[1], (emb,), jnp.float32)
        g1 = 1.0 + 0.1 * jax.random.normal(ks[2], (emb,), jnp.float32)
        be1 = 0.1 * jax.random.normal(ks[3], (emb,), jnp.float32)
        mu1 = 0.1 * jax.random.normal(ks[4], (emb,), jnp.float32)
        v1 = 0.5 + jnp.abs(jax.random.normal(ks[5], (emb,), jnp.float32))
        wpw = 0.1 * jax.random.normal(ks[6], (cb, emb), jnp.float32)
        bpw = 0.1 * jax.random.normal(ks[7], (cb,), jnp.float32)
        g2 = 1.0 + 0.1 * jax.random.normal(ks[8], (cb,), jnp.float32)
        be2 = 0.1 * jax.random.normal(ks[9], (cb,), jnp.float32)
        mu2 = 0.1 * jax.random.normal(ks[10], (cb,), jnp.float32)
        v2 = 0.5 + jnp.abs(jax.random.normal(ks[11], (cb,), jnp.float32))
        wmap = 0.1 * jax.random.normal(ks[12], (cb, emb), jnp.float32)
        bmap = 0.1 * jax.random.normal(ks[13], (cb,), jnp.float32)
        a1, b1 = fold_bn(g1, be1, mu1, v1)
        a2, b2 = fold_bn(g2, be2, mu2, v2)
        return dict(
            wdw=wdw * a1[:, None, None, None],   # (C,1,k,k), BN1 folded
            bdw=a1 * bdw + b1,                   # (C,)
            wpw=wpw * a2[:, None],               # (Cout,C), BN2 folded
            bpw=a2 * bpw + b2,                   # (Cout,)
            wmap=wmap,                           # (Cout,C)
            bmap=bmap,                           # (Cout,)
        )

    branch_cfg = [(1, 1), (3, dilation_rates[0]),
                  (3, dilation_rates[1]), (3, dilation_rates[2])]
    keys = jax.random.split(key, 5)
    params = {f"branch{i + 1}": ds_branch(keys[i], k)
              for i, (k, _) in enumerate(branch_cfg)}

    ks = jax.random.split(keys[4], 6)
    wpw5 = 0.1 * jax.random.normal(ks[0], (cb, emb), jnp.float32)
    bpw5 = 0.1 * jax.random.normal(ks[1], (cb,), jnp.float32)
    g5 = 1.0 + 0.1 * jax.random.normal(ks[2], (cb,), jnp.float32)
    be5 = 0.1 * jax.random.normal(ks[3], (cb,), jnp.float32)
    mu5 = 0.1 * jax.random.normal(ks[4], (cb,), jnp.float32)
    v5 = 0.5 + jnp.abs(jax.random.normal(ks[5], (cb,), jnp.float32))
    a5, b5 = fold_bn(g5, be5, mu5, v5)
    params["branch5"] = dict(wpw=wpw5 * a5[:, None], bpw=a5 * bpw5 + b5)
    return params, branch_cfg


# ----------------------------------------------------------------------------
# Pure-JAX reference (for correctness check only)
# ----------------------------------------------------------------------------
def ref_aspp(x, params, branch_cfg):
    B, C, H, W = x.shape
    outs = []
    for i, (k, d) in enumerate(branch_cfg):
        p = params[f"branch{i + 1}"]
        pad = d if k == 3 else 0
        y = lax.conv_general_dilated(
            x, p["wdw"], (1, 1), [(pad, pad), (pad, pad)],
            rhs_dilation=(d, d),
            dimension_numbers=("NCHW", "OIHW", "NCHW"),
            feature_group_count=C)
        y = jnp.maximum(y + p["bdw"][None, :, None, None], 0.0)
        y = jnp.einsum("bchw,oc->bohw", y, p["wpw"]) + p["bpw"][None, :, None, None]
        y = jnp.maximum(y, 0.0)
        m = jnp.einsum("bchw,oc->bohw", x, p["wmap"]) + p["bmap"][None, :, None, None]
        outs.append(jnp.maximum(y + m, 0.0))
    p5 = params["branch5"]
    gm = jnp.mean(x, axis=(2, 3))                       # (B, C)
    y5 = jnp.maximum(gm @ p5["wpw"].T + p5["bpw"][None, :], 0.0)
    outs.append(jnp.broadcast_to(y5[:, :, None, None], (B, y5.shape[1], H, W)))
    return outs


# ----------------------------------------------------------------------------
if __name__ == "__main__":
    key = jax.random.PRNGKey(0)
    kx, kp = jax.random.split(key)

    # Small shapes consistent with ASPP(emb_size, branch_emb_size, dilation_rates)
    B, emb, cb, H, W = 2, 32, 8, 16, 16
    dilation_rates = [2, 3, 4]

    x = jax.random.normal(kx, (B, emb, H, W), jnp.float32)
    params, branch_cfg = init_aspp_params(kp, emb, cb, dilation_rates)

    outs = aspp_forward(x, params, branch_cfg)
    outs = [jax.block_until_ready(o) for o in outs]

    refs = ref_aspp(x, params, branch_cfg)
    for o, r in zip(outs, refs):
        assert o.shape == r.shape, (o.shape, r.shape)
        err = float(jnp.max(jnp.abs(o - r)))
        assert jnp.allclose(o, r, rtol=1e-3, atol=1e-3), err

    print("KERNEL_OK")
</pallas_src>

<mosaic_0001>
module attributes {stable_mosaic.version = 11 : i64} {
  func.func @_aspp_fused_kernel(%arg0: i32, %arg1: memref<1x16x16x32xf32, #tpu.memory_space<vmem>>, %arg2: memref<1x32xf32, #tpu.memory_space<vmem>>, %arg3: memref<27x32xf32, #tpu.memory_space<vmem>>, %arg4: memref<4x32xf32, #tpu.memory_space<vmem>>, %arg5: memref<160x72xf32, #tpu.memory_space<vmem>>, %arg6: memref<1x32xf32, #tpu.memory_space<vmem>>, %arg7: memref<1x32xf32, #tpu.memory_space<vmem>>, %arg8: memref<1x8xf32, #tpu.memory_space<vmem>>, %arg9: memref<1x16x16x128xf32, #tpu.memory_space<vmem>>, %arg10: memref<24x24x32xf32, #tpu.memory_space<vmem>>) attributes {dimension_semantics = [#tpu.dimension_semantics<parallel>], iteration_bounds = array<i64: 2>, scalar_prefetch = 0 : i64, scratch_operands = 1 : i64, tpu.core_type = #tpu.core_type<tc>, window_params = [{transform_indices = @transform_0, window_bounds = array<i64: 1, 16, 16, 32>}, {pipeline_mode = #tpu.pipeline_mode<synchronous>, transform_indices = @transform_1, window_bounds = array<i64: 1, 32>}, {pipeline_mode = #tpu.pipeline_mode<synchronous>, transform_indices = @transform_2, window_bounds = array<i64: 27, 32>}, {pipeline_mode = #tpu.pipeline_mode<synchronous>, transform_indices = @transform_3, window_bounds = array<i64: 4, 32>}, {pipeline_mode = #tpu.pipeline_mode<synchronous>, transform_indices = @transform_4, window_bounds = array<i64: 160, 72>}, {pipeline_mode = #tpu.pipeline_mode<synchronous>, transform_indices = @transform_5, window_bounds = array<i64: 1, 32>}, {pipeline_mode = #tpu.pipeline_mode<synchronous>, transform_indices = @transform_6, window_bounds = array<i64: 1, 32>}, {pipeline_mode = #tpu.pipeline_mode<synchronous>, transform_indices = @transform_7, window_bounds = array<i64: 1, 8>}, {transform_indices = @transform_8, window_bounds = array<i64: 1, 16, 16, 128>}]} {
    %cst = arith.constant 0.000000e+00 : f32
    %0 = vector.broadcast %cst : f32 to vector<24x24x32xf32>
    %c0 = arith.constant 0 : index
    %c0_0 = arith.constant 0 : index
    %c0_1 = arith.constant 0 : index
    %1 = vector.load %arg10[%c0, %c0_0, %c0_1] : memref<24x24x32xf32, #tpu.memory_space<vmem>>, vector<24x24x32xf32>
    tpu.vector_store %arg10[%c0, %c0_0, %c0_1], %0 {strides = array<i32>} : memref<24x24x32xf32, #tpu.memory_space<vmem>>, vector<24x24x32xf32>,
    %c0_2 = arith.constant 0 : index
    %c0_3 = arith.constant 0 : index
    %c0_4 = arith.constant 0 : index
    %c0_5 = arith.constant 0 : index
    %2 = vector.load %arg1[%c0_2, %c0_3, %c0_4, %c0_5] : memref<1x16x16x32xf32, #tpu.memory_space<vmem>>, vector<1x16x16x32xf32>
    %3 = vector.shape_cast %2 : vector<1x16x16x32xf32> to vector<16x16x32xf32>
    %c4 = arith.constant 4 : index
    %c4_6 = arith.constant 4 : index
    %c0_7 = arith.constant 0 : index
    %4 = vector.load %arg10[%c4, %c4_6, %c0_7] : memref<24x24x32xf32, #tpu.memory_space<vmem>>, vector<16x16x32xf32>
    tpu.vector_store %arg10[%c4, %c4_6, %c0_7], %3 {strides = array<i32>} : memref<24x24x32xf32, #tpu.memory_space<vmem>>, vector<16x16x32xf32>,
    %5 = vector.shape_cast %3 : vector<16x16x32xf32> to vector<256x32xf32>
    %c0_8 = arith.constant 0 : index
    %c0_9 = arith.constant 0 : index
    %6 = vector.load %arg2[%c0_8, %c0_9] : memref<1x32xf32, #tpu.memory_space<vmem>>, vector<1x32xf32>
    %7 = vector.shape_cast %6 : vector<1x32xf32> to vector<32xf32>
    %8 = vector.shape_cast %7 : vector<32xf32> to vector<1x1x32xf32>
    %9 = vector.broadcast %8 : vector<1x1x32xf32> to vector<16x16x32xf32>
    %10 = arith.mulf %3, %9 : vector<16x16x32xf32>
    %c0_10 = arith.constant 0 : index
    %c0_11 = arith.constant 0 : index
    %11 = vector.load %arg4[%c0_10, %c0_11] : memref<4x32xf32, #tpu.memory_space<vmem>>, vector<1x32xf32>
    %12 = vector.shape_cast %11 : vector<1x32xf32> to vector<32xf32>
    %13 = vector.shape_cast %12 : vector<32xf32> to vector<1x1x32xf32>
    %14 = vector.broadcast %13 : vector<1x1x32xf32> to vector<16x16x32xf32>
    %15 = arith.addf %10, %14 : vector<16x16x32xf32>
    %cst_12 = arith.constant 0.000000e+00 : f32
    %16 = vector.broadcast %cst_12 : f32 to vector<16x16x32xf32>
    %17 = arith.maximumf %15, %16 : vector<16x16x32xf32>
    %18 = vector.shape_cast %17 : vector<16x16x32xf32> to vector<256x32xf32>
    %cst_13 = arith.constant 0.000000e+00 : f32
    %19 = vector.broadcast %cst_13 : f32 to vector<16x16x32xf32>
    %c2 = arith.constant 2 : index
    %c2_14 = arith.constant 2 : index
    %c0_15 = arith.constant 0 : index
    %20 = vector.load %arg10[%c2, %c2_14, %c0_15] : memref<24x24x32xf32, #tpu.memory_space<vmem>>, vector<16x16x32xf32>
    %c0_16 = arith.constant 0 : index
    %c0_17 = arith.constant 0 : index
    %21 = vector.load %arg3[%c0_16, %c0_17] : memref<27x32xf32, #tpu.memory_space<vmem>>, vector<1x32xf32>
    %22 = vector.shape_cast %21 : vector<1x32xf32> to vector<32xf32>
    %23 = vector.shape_cast %22 : vector<32xf32> to vector<1x1x32xf32>
    %24 = vector.broadcast %23 : vector<1x1x32xf32> to vector<16x16x32xf32>
    %25 = arith.mulf %20, %24 : vector<16x16x32xf32>
    %26 = arith.addf %19, %25 : vector<16x16x32xf32>
    %c2_18 = arith.constant 2 : index
    %c4_19 = arith.constant 4 : index
    %c0_20 = arith.constant 0 : index
    %27 = vector.load %arg10[%c2_18, %c4_19, %c0_20] : memref<24x24x32xf32, #tpu.memory_space<vmem>>, vector<16x16x32xf32>
    %c1 = arith.constant 1 : index
    %c0_21 = arith.constant 0 : index
    %28 = vector.load %arg3[%c1, %c0_21] : memref<27x32xf32, #tpu.memory_space<vmem>>, vector<1x32xf32>
    %29 = vector.shape_cast %28 : vector<1x32xf32> to vector<32xf32>
    %30 = vector.shape_cast %29 : vector<32xf32> to vector<1x1x32xf32>
    %31 = vector.broadcast %30 : vector<1x1x32xf32> to vector<16x16x32xf32>
    %32 = arith.mulf %27, %31 : vector<16x16x32xf32>
    %33 = arith.addf %26, %32 : vector<16x16x32xf32>
    %c2_22 = arith.constant 2 : index
    %c6 = arith.constant 6 : index
    %c0_23 = arith.constant 0 : index
    %34 = vector.load %arg10[%c2_22, %c6, %c0_23] : memref<24x24x32xf32, #tpu.memory_space<vmem>>, vector<16x16x32xf32>
    %c2_24 = arith.constant 2 : index
    %c0_25 = arith.constant 0 : index
    %35 = vector.load %arg3[%c2_24, %c0_25] : memref<27x32xf32, #tpu.memory_space<vmem>>, vector<1x32xf32>
    %36 = vector.shape_cast %35 : vector<1x32xf32> to vector<32xf32>
    %37 = vector.shape_cast %36 : vector<32xf32> to vector<1x1x32xf32>
    %38 = vector.broadcast %37 : vector<1x1x32xf32> to vector<16x16x32xf32>
    %39 = arith.mulf %34, %38 : vector<16x16x32xf32>
    %40 = arith.addf %33, %39 : vector<16x16x32xf32>
    %c4_26 = arith.constant 4 : index
    %c2_27 = arith.constant 2 : index
    %c0_28 = arith.constant 0 : index
    %41 = vector.load %arg10[%c4_26, %c2_27, %c0_28] : memref<24x24x32xf32, #tpu.memory_space<vmem>>, vector<16x16x32xf32>
    %c3 = arith.constant 3 : index
    %c0_29 = arith.constant 0 : index
    %42 = vector.load %arg3[%c3, %c0_29] : memref<27x32xf32, #tpu.memory_space<vmem>>, vector<1x32xf32>
    %43 = vector.shape_cast %42 : vector<1x32xf32> to vector<32xf32>
    %44 = vector.shape_cast %43 : vector<32xf32> to vector<1x1x32xf32>
    %45 = vector.broadcast %44 : vector<1x1x32xf32> to vector<16x16x32xf32>
    %46 = arith.mulf %41, %45 : vector<16x16x32xf32>
    %47 = arith.addf %40, %46 : vector<16x16x32xf32>
    %c4_30 = arith.constant 4 : index
    %c4_31 = arith.constant 4 : index
    %c0_32 = arith.constant 0 : index
    %48 = vector.load %arg10[%c4_30, %c4_31, %c0_32] : memref<24x24x32xf32, #tpu.memory_space<vmem>>, vector<16x16x32xf32>
    %c4_33 = arith.constant 4 : index
    %c0_34 = arith.constant 0 : index
    %49 = vector.load %arg3[%c4_33, %c0_34] : memref<27x32xf32, #tpu.memory_space<vmem>>, vector<1x32xf32>
    %50 = vector.shape_cast %49 : vector<1x32xf32> to vector<32xf32>
    %51 = vector.shape_cast %50 : vector<32xf32> to vector<1x1x32xf32>
    %52 = vector.broadcast %51 : vector<1x1x32xf32> to vector<16x16x32xf32>
    %53 = arith.mulf %48, %52 : vector<16x16x32xf32>
    %54 = arith.addf %47, %53 : vector<16x16x32xf32>
    %c4_35 = arith.constant 4 : index
    %c6_36 = arith.constant 6 : index
    %c0_37 = arith.constant 0 : index
    %55 = vector.load %arg10[%c4_35, %c6_36, %c0_37] : memref<24x24x32xf32, #tpu.memory_space<vmem>>, vector<16x16x32xf32>
    %c5 = arith.constant 5 : index
    %c0_38 = arith.constant 0 : index
    %56 = vector.load %arg3[%c5, %c0_38] : memref<27x32xf32, #tpu.memory_space<vmem>>, vector<1x32xf32>
    %57 = vector.shape_cast %56 : vector<1x32xf32> to vector<32xf32>
    %58 = vector.shape_cast %57 : vector<32xf32> to vector<1x1x32xf32>
    %59 = vector.broadcast %58 : vector<1x1x32xf32> to vector<16x16x32xf32>
    %60 = arith.mulf %55, %59 : vector<16x16x32xf32>
    %61 = arith.addf %54, %60 : vector<16x16x32xf32>
    %c6_39 = arith.constant 6 : index
    %c2_40 = arith.constant 2 : index
    %c0_41 = arith.constant 0 : index
    %62 = vector.load %arg10[%c6_39, %c2_40, %c0_41] : memref<24x24x32xf32, #tpu.memory_space<vmem>>, vector<16x16x32xf32>
    %c6_42 = arith.constant 6 : index
    %c0_43 = arith.constant 0 : index
    %63 = vector.load %arg3[%c6_42, %c0_43] : memref<27x32xf32, #tpu.memory_space<vmem>>, vector<1x32xf32>
    %64 = vector.shape_cast %63 : vector<1x32xf32> to vector<32xf32>
    %65 = vector.shape_cast %64 : vector<32xf32> to vector<1x1x32xf32>
    %66 = vector.broadcast %65 : vector<1x1x32xf32> to vector<16x16x32xf32>
    %67 = arith.mulf %62, %66 : vector<16x16x32xf32>
    %68 = arith.addf %61, %67 : vector<16x16x32xf32>
    %c6_44 = arith.constant 6 : index
    %c4_45 = arith.constant 4 : index
    %c0_46 = arith.constant 0 : index
    %69 = vector.load %arg10[%c6_44, %c4_45, %c0_46] : memref<24x24x32xf32, #tpu.memory_space<vmem>>, vector<16x16x32xf32>
    %c7 = arith.constant 7 : index
    %c0_47 = arith.constant 0 : index
    %70 = vector.load %arg3[%c7, %c0_47] : memref<27x32xf32, #tpu.memory_space<vmem>>, vector<1x32xf32>
    %71 = vector.shape_cast %70 : vector<1x32xf32> to vector<32xf32>
    %72 = vector.shape_cast %71 : vector<32xf32> to vector<1x1x32xf32>
    %73 = vector.broadcast %72 : vector<1x1x32xf32> to vector<16x16x32xf32>
    %74 = arith.mulf %69, %73 : vector<16x16x32xf32>
    %75 = arith.addf %68, %74 : vector<16x16x32xf32>
    %c6_48 = arith.constant 6 : index
    %c6_49 = arith.constant 6 : index
    %c0_50 = arith.constant 0 : index
    %76 = vector.load %arg10[%c6_48, %c6_49, %c0_50] : memref<24x24x32xf32, #tpu.memory_space<vmem>>, vector<16x16x32xf32>
    %c8 = arith.constant 8 : index
    %c0_51 = arith.constant 0 : index
    %77 = vector.load %arg3[%c8, %c0_51] : memref<27x32xf32, #tpu.memory_space<vmem>>, vector<1x32xf32>
    %78 = vector.shape_cast %77 : vector<1x32xf32> to vector<32xf32>
    %79 = vector.shape_cast %78 : vector<32xf32> to vector<1x1x32xf32>
    %80 = vector.broadcast %79 : vector<1x1x32xf32> to vector<16x16x32xf32>
    %81 = arith.mulf %76, %80 : vector<16x16x32xf32>
    %82 = arith.addf %75, %81 : vector<16x16x32xf32>
    %c1_52 = arith.constant 1 : index
    %c0_53 = arith.constant 0 : index
    %83 = vector.load %arg4[%c1_52, %c0_53] : memref<4x32xf32, #tpu.memory_space<vmem>>, vector<1x32xf32>
    %84 = vector.shape_cast %83 : vector<1x32xf32> to vector<32xf32>
    %85 = vector.shape_cast %84 : vector<32xf32> to vector<1x1x32xf32>
    %86 = vector.broadcast %85 : vector<1x1x32xf32> to vector<16x16x32xf32>
    %87 = arith.addf %82, %86 : vector<16x16x32xf32>
    %cst_54 = arith.constant 0.000000e+00 : f32
    %88 = vector.broadcast %cst_54 : f32 to vector<16x16x32xf32>
    %89 = arith.maximumf %87, %88 : vector<16x16x32xf32>
    %90 = vector.shape_cast %89 : vector<16x16x32xf32> to vector<256x32xf32>
    %cst_55 = arith.constant 0.000000e+00 : f32
    %91 = vector.broadcast %cst_55 : f32 to vector<16x16x32xf32>
    %c1_56 = arith.constant 1 : index
    %c1_57 = arith.constant 1 : index
    %c0_58 = arith.constant 0 : index
    %92 = vector.load %arg10[%c1_56, %c1_57, %c0_58] : memref<24x24x32xf32, #tpu.memory_space<vmem>>, vector<16x16x32xf32>
    %c9 = arith.constant 9 : index
    %c0_59 = arith.constant 0 : index
    %93 = vector.load %arg3[%c9, %c0_59] : memref<27x32xf32, #tpu.memory_space<vmem>>, vector<1x32xf32>
    %94 = vector.shape_cast %93 : vector<1x32xf32> to vector<32xf32>
    %95 = vector.shape_cast %94 : vector<32xf32> to vector<1x1x32xf32>
    %96 = vector.broadcast %95 : vector<1x1x32xf32> to vector<16x16x32xf32>
    %97 = arith.mulf %92, %96 : vector<16x16x32xf32>
    %98 = arith.addf %91, %97 : vector<16x16x32xf32>
    %c1_60 = arith.constant 1 : index
    %c4_61 = arith.constant 4 : index
    %c0_62 = arith.constant 0 : index
    %99 = vector.load %arg10[%c1_60, %c4_61, %c0_62] : memref<24x24x32xf32, #tpu.memory_space<vmem>>, vector<16x16x32xf32>
    %c10 = arith.constant 10 : index
    %c0_63 = arith.constant 0 : index
    %100 = vector.load %arg3[%c10, %c0_63] : memref<27x32xf32, #tpu.memory_space<vmem>>, vector<1x32xf32>
    %101 = vector.shape_cast %100 : vector<1x32xf32> to vector<32xf32>
    %102 = vector.shape_cast %101 : vector<32xf32> to vector<1x1x32xf32>
    %103 = vector.broadcast %102 : vector<1x1x32xf32> to vector<16x16x32xf32>
    %104 = arith.mulf %99, %103 : vector<16x16x32xf32>
    %105 = arith.addf %98, %104 : vector<16x16x32xf32>
    %c1_64 = arith.constant 1 : index
    %c7_65 = arith.constant 7 : index
    %c0_66 = arith.constant 0 : index
    %106 = vector.load %arg10[%c1_64, %c7_65, %c0_66] : memref<24x24x32xf32, #tpu.memory_space<vmem>>, vector<16x16x32xf32>
    %c11 = arith.constant 11 : index
    %c0_67 = arith.constant 0 : index
    %107 = vector.load %arg3[%c11, %c0_67] : memref<27x32xf32, #tpu.memory_space<vmem>>, vector<1x32xf32>
    %108 = vector.shape_cast %107 : vector<1x32xf32> to vector<32xf32>
    %109 = vector.shape_cast %108 : vector<32xf32> to vector<1x1x32xf32>
    %110 = vector.broadcast %109 : vector<1x1x32xf32> to vector<16x16x32xf32>
    %111 = arith.mulf %106, %110 : vector<16x16x32xf32>
    %112 = arith.addf %105, %111 : vector<16x16x32xf32>
    %c4_68 = arith.constant 4 : index
    %c1_69 = arith.constant 1 : index
    %c0_70 = arith.constant 0 : index
    %113 = vector.load %arg10[%c4_68, %c1_69, %c0_70] : memref<24x24x32xf32, #tpu.memory_space<vmem>>, vector<16x16x32xf32>
    %c12 = arith.constant 12 : index
    %c0_71 = arith.constant 0 : index
    %114 = vector.load %arg3[%c12, %c0_71] : memref<27x32xf32, #tpu.memory_space<vmem>>, vector<1x32xf32>
    %115 = vector.shape_cast %114 : vector<1x32xf32> to vector<32xf32>
    %116 = vector.shape_cast %115 : vector<32xf32> to vector<1x1x32xf32>
    %117 = vector.broadcast %116 : vector<1x1x32xf32> to vector<16x16x32xf32>
    %118 = arith.mulf %113, %117 : vector<16x16x32xf32>
    %119 = arith.addf %112, %118 : vector<16x16x32xf32>
    %c4_72 = arith.constant 4 : index
    %c4_73 = arith.constant 4 : index
    %c0_74 = arith.constant 0 : index
    %120 = vector.load %arg10[%c4_72, %c4_73, %c0_74] : memref<24x24x32xf32, #tpu.memory_space<vmem>>, vector<16x16x32xf32>
    %c13 = arith.constant 13 : index
    %c0_75 = arith.constant 0 : index
    %121 = vector.load %arg3[%c13, %c0_75] : memref<27x32xf32, #tpu.memory_space<vmem>>, vector<1x32xf32>
    %122 = vector.shape_cast %121 : vector<1x32xf32> to vector<32xf32>
    %123 = vector.shape_cast %122 : vector<32xf32> to vector<1x1x32xf32>
    %124 = vector.broadcast %123 : vector<1x1x32xf32> to vector<16x16x32xf32>
    %125 = arith.mulf %120, %124 : vector<16x16x32xf32>
    %126 = arith.addf %119, %125 : vector<16x16x32xf32>
    %c4_76 = arith.constant 4 : index
    %c7_77 = arith.constant 7 : index
    %c0_78 = arith.constant 0 : index
    %127 = vector.load %arg10[%c4_76, %c7_77, %c0_78] : memref<24x24x32xf32, #tpu.memory_space<vmem>>, vector<16x16x32xf32>
    %c14 = arith.constant 14 : index
    %c0_79 = arith.constant 0 : index
    %128 = vector.load %arg3[%c14, %c0_79] : memref<27x32xf32, #tpu.memory_space<vmem>>, vector<1x32xf32>
    %129 = vector.shape_cast %128 : vector<1x32xf32> to vector<32xf32>
    %130 = vector.shape_cast %129 : vector<32xf32> to vector<1x1x32xf32>
    %131 = vector.broadcast %130 : vector<1x1x32xf32> to vector<16x16x32xf32>
    %132 = arith.mulf %127, %131 : vector<16x16x32xf32>
    %133 = arith.addf %126, %132 : vector<16x16x32xf32>
    %c7_80 = arith.constant 7 : index
    %c1_81 = arith.constant 1 : index
    %c0_82 = arith.constant 0 : index
    %134 = vector.load %arg10[%c7_80, %c1_81, %c0_82] : memref<24x24x32xf32, #tpu.memory_space<vmem>>, vector<16x16x32xf32>
    %c15 = arith.constant 15 : index
    %c0_83 = arith.constant 0 : index
    %135 = vector.load %arg3[%c15, %c0_83] : memref<27x32xf32, #tpu.memory_space<vmem>>, vector<1x32xf32>
    %136 = vector.shape_cast %135 : vector<1x32xf32> to vector<32xf32>
    %137 = vector.shape_cast %136 : vector<32xf32> to vector<1x1x32xf32>
    %138 = vector.broadcast %137 : vector<1x1x32xf32> to vector<16x16x32xf32>
    %139 = arith.mulf %134, %138 : vector<16x16x32xf32>
    %140 = arith.addf %133, %139 : vector<16x16x32xf32>
    %c7_84 = arith.constant 7 : index
    %c4_85 = arith.constant 4 : index
    %c0_86 = arith.constant 0 : index
    %141 = vector.load %arg10[%c7_84, %c4_85, %c0_86] : memref<24x24x32xf32, #tpu.memory_space<vmem>>, vector<16x16x32xf32>
    %c16 = arith.constant 16 : index
    %c0_87 = arith.constant 0 : index
    %142 = vector.load %arg3[%c16, %c0_87] : memref<27x32xf32, #tpu.memory_space<vmem>>, vector<1x32xf32>
    %143 = vector.shape_cast %142 : vector<1x32xf32> to vector<32xf32>
    %144 = vector.shape_cast %143 : vector<32xf32> to vector<1x1x32xf32>
    %145 = vector.broadcast %144 : vector<1x1x32xf32> to vector<16x16x32xf32>
    %146 = arith.mulf %141, %145 : vector<16x16x32xf32>
    %147 = arith.addf %140, %146 : vector<16x16x32xf32>
    %c7_88 = arith.constant 7 : index
    %c7_89 = arith.constant 7 : index
    %c0_90 = arith.constant 0 : index
    %148 = vector.load %arg10[%c7_88, %c7_89, %c0_90] : memref<24x24x32xf32, #tpu.memory_space<vmem>>, vector<16x16x32xf32>
    %c17 = arith.constant 17 : index
    %c0_91 = arith.constant 0 : index
    %149 = vector.load %arg3[%c17, %c0_91] : memref<27x32xf32, #tpu.memory_space<vmem>>, vector<1x32xf32>
    %150 = vector.shape_cast %149 : vector<1x32xf32> to vector<32xf32>
    %151 = vector.shape_cast %150 : vector<32xf32> to vector<1x1x32xf32>
    %152 = vector.broadcast %151 : vector<1x1x32xf32> to vector<16x16x32xf32>
    %153 = arith.mulf %148, %152 : vector<16x16x32xf32>
    %154 = arith.addf %147, %153 : vector<16x16x32xf32>
    %c2_92 = arith.constant 2 : index
    %c0_93 = arith.constant 0 : index
    %155 = vector.load %arg4[%c2_92, %c0_93] : memref<4x32xf32, #tpu.memory_space<vmem>>, vector<1x32xf32>
    %156 = vector.shape_cast %155 : vector<1x32xf32> to vector<32xf32>
    %157 = vector.shape_cast %156 : vector<32xf32> to vector<1x1x32xf32>
    %158 = vector.broadcast %157 : vector<1x1x32xf32> to vector<16x16x32xf32>
    %159 = arith.addf %154, %158 : vector<16x16x32xf32>
    %cst_94 = arith.constant 0.000000e+00 : f32
    %160 = vector.broadcast %cst_94 : f32 to vector<16x16x32xf32>
    %161 = arith.maximumf %159, %160 : vector<16x16x32xf32>
    %162 = vector.shape_cast %161 : vector<16x16x32xf32> to vector<256x32xf32>
    %cst_95 = arith.constant 0.000000e+00 : f32
    %163 = vector.broadcast %cst_95 : f32 to vector<16x16x32xf32>
    %c0_96 = arith.constant 0 : index
    %c0_97 = arith.constant 0 : index
    %c0_98 = arith.constant 0 : index
    %164 = vector.load %arg10[%c0_96, %c0_97, %c0_98] : memref<24x24x32xf32, #tpu.memory_space<vmem>>, vector<16x16x32xf32>
    %c18 = arith.constant 18 : index
    %c0_99 = arith.constant 0 : index
    %165 = vector.load %arg3[%c18, %c0_99] : memref<27x32xf32, #tpu.memory_space<vmem>>, vector<1x32xf32>
    %166 = vector.shape_cast %165 : vector<1x32xf32> to vector<32xf32>
    %167 = vector.shape_cast %166 : vector<32xf32> to vector<1x1x32xf32>
    %168 = vector.broadcast %167 : vector<1x1x32xf32> to vector<16x16x32xf32>
    %169 = arith.mulf %164, %168 : vector<16x16x32xf32>
    %170 = arith.addf %163, %169 : vector<16x16x32xf32>
    %c0_100 = arith.constant 0 : index
    %c4_101 = arith.constant 4 : index
    %c0_102 = arith.constant 0 : index
    %171 = vector.load %arg10[%c0_100, %c4_101, %c0_102] : memref<24x24x32xf32, #tpu.memory_space<vmem>>, vector<16x16x32xf32>
    %c19 = arith.constant 19 : index
    %c0_103 = arith.constant 0 : index
    %172 = vector.load %arg3[%c19, %c0_103] : memref<27x32xf32, #tpu.memory_space<vmem>>, vector<1x32xf32>
    %173 = vector.shape_cast %172 : vector<1x32xf32> to vector<32xf32>
    %174 = vector.shape_cast %173 : vector<32xf32> to vector<1x1x32xf32>
    %175 = vector.broadcast %174 : vector<1x1x32xf32> to vector<16x16x32xf32>
    %176 = arith.mulf %171, %175 : vector<16x16x32xf32>
    %177 = arith.addf %170, %176 : vector<16x16x32xf32>
    %c0_104 = arith.constant 0 : index
    %c8_105 = arith.constant 8 : index
    %c0_106 = arith.constant 0 : index
    %178 = vector.load %arg10[%c0_104, %c8_105, %c0_106] : memref<24x24x32xf32, #tpu.memory_space<vmem>>, vector<16x16x32xf32>
    %c20 = arith.constant 20 : index
    %c0_107 = arith.constant 0 : index
    %179 = vector.load %arg3[%c20, %c0_107] : memref<27x32xf32, #tpu.memory_space<vmem>>, vector<1x32xf32>
    %180 = vector.shape_cast %179 : vector<1x32xf32> to vector<32xf32>
    %181 = vector.shape_cast %180 : vector<32xf32> to vector<1x1x32xf32>
    %182 = vector.broadcast %181 : vector<1x1x32xf32> to vector<16x16x32xf32>
    %183 = arith.mulf %178, %182 : vector<16x16x32xf32>
    %184 = arith.addf %177, %183 : vector<16x16x32xf32>
    %c4_108 = arith.constant 4 : index
    %c0_109 = arith.constant 0 : index
    %c0_110 = arith.constant 0 : index
    %185 = vector.load %arg10[%c4_108, %c0_109, %c0_110] : memref<24x24x32xf32, #tpu.memory_space<vmem>>, vector<16x16x32xf32>
    %c21 = arith.constant 21 : index
    %c0_111 = arith.constant 0 : index
    %186 = vector.load %arg3[%c21, %c0_111] : memref<27x32xf32, #tpu.memory_space<vmem>>, vector<1x32xf32>
    %187 = vector.shape_cast %186 : vector<1x32xf32> to vector<32xf32>
    %188 = vector.shape_cast %187 : vector<32xf32> to vector<1x1x32xf32>
    %189 = vector.broadcast %188 : vector<1x1x32xf32> to vector<16x16x32xf32>
    %190 = arith.mulf %185, %189 : vector<16x16x32xf32>
    %191 = arith.addf %184, %190 : vector<16x16x32xf32>
    %c4_112 = arith.constant 4 : index
    %c4_113 = arith.constant 4 : index
    %c0_114 = arith.constant 0 : index
    %192 = vector.load %arg10[%c4_112, %c4_113, %c0_114] : memref<24x24x32xf32, #tpu.memory_space<vmem>>, vector<16x16x32xf32>
    %c22 = arith.constant 22 : index
    %c0_115 = arith.constant 0 : index
    %193 = vector.load %arg3[%c22, %c0_115] : memref<27x32xf32, #tpu.memory_space<vmem>>, vector<1x32xf32>
    %194 = vector.shape_cast %193 : vector<1x32xf32> to vector<32xf32>
    %195 = vector.shape_cast %194 : vector<32xf32> to vector<1x1x32xf32>
    %196 = vector.broadcast %195 : vector<1x1x32xf32> to vector<16x16x32xf32>
    %197 = arith.mulf %192, %196 : vector<16x16x32xf32>
    %198 = arith.addf %191, %197 : vector<16x16x32xf32>
    %c4_116 = arith.constant 4 : index
    %c8_117 = arith.constant 8 : index
    %c0_118 = arith.constant 0 : index
    %199 = vector.load %arg10[%c4_116, %c8_117, %c0_118] : memref<24x24x32xf32, #tpu.memory_space<vmem>>, vector<16x16x32xf32>
    %c23 = arith.constant 23 : index
    %c0_119 = arith.constant 0 : index
    %200 = vector.load %arg3[%c23, %c0_119] : memref<27x32xf32, #tpu.memory_space<vmem>>, vector<1x32xf32>
    %201 = vector.shape_cast %200 : vector<1x32xf32> to vector<32xf32>
    %202 = vector.shape_cast %201 : vector<32xf32> to vector<1x1x32xf32>
    %203 = vector.broadcast %202 : vector<1x1x32xf32> to vector<16x16x32xf32>
    %204 = arith.mulf %199, %203 : vector<16x16x32xf32>
    %205 = arith.addf %198, %204 : vector<16x16x32xf32>
    %c8_120 = arith.constant 8 : index
    %c0_121 = arith.constant 0 : index
    %c0_122 = arith.constant 0 : index
    %206 = vector.load %arg10[%c8_120, %c0_121, %c0_122] : memref<24x24x32xf32, #tpu.memory_space<vmem>>, vector<16x16x32xf32>
    %c24 = arith.constant 24 : index
    %c0_123 = arith.constant 0 : index
    %207 = vector.load %arg3[%c24, %c0_123] : memref<27x32xf32, #tpu.memory_space<vmem>>, vector<1x32xf32>
    %208 = vector.shape_cast %207 : vector<1x32xf32> to vector<32xf32>
    %209 = vector.shape_cast %208 : vector<32xf32> to vector<1x1x32xf32>
    %210 = vector.broadcast %209 : vector<1x1x32xf32> to vector<16x16x32xf32>
    %211 = arith.mulf %206, %210 : vector<16x16x32xf32>
    %212 = arith.addf %205, %211 : vector<16x16x32xf32>
    %c8_124 = arith.constant 8 : index
    %c4_125 = arith.constant 4 : index
    %c0_126 = arith.constant 0 : index
    %213 = vector.load %arg10[%c8_124, %c4_125, %c0_126] : memref<24x24x32xf32, #tpu.memory_space<vmem>>, vector<16x16x32xf32>
    %c25 = arith.constant 25 : index
    %c0_127 = arith.constant 0 : index
    %214 = vector.load %arg3[%c25, %c0_127] : memref<27x32xf32, #tpu.memory_space<vmem>>, vector<1x32xf32>
    %215 = vector.shape_cast %214 : vector<1x32xf32> to vector<32xf32>
    %216 = vector.shape_cast %215 : vector<32xf32> to vector<1x1x32xf32>
    %217 = vector.broadcast %216 : vector<1x1x32xf32> to vector<16x16x32xf32>
    %218 = arith.mulf %213, %217 : vector<16x16x32xf32>
    %219 = arith.addf %212, %218 : vector<16x16x32xf32>
    %c8_128 = arith.constant 8 : index
    %c8_129 = arith.constant 8 : index
    %c0_130 = arith.constant 0 : index
    %220 = vector.load %arg10[%c8_128, %c8_129, %c0_130] : memref<24x24x32xf32, #tpu.memory_space<vmem>>, vector<16x16x32xf32>
    %c26 = arith.constant 26 : index
    %c0_131 = arith.constant 0 : index
    %221 = vector.load %arg3[%c26, %c0_131] : memref<27x32xf32, #tpu.memory_space<vmem>>, vector<1x32xf32>
    %222 = vector.shape_cast %221 : vector<1x32xf32> to vector<32xf32>
    %223 = vector.shape_cast %222 : vector<32xf32> to vector<1x1x32xf32>
    %224 = vector.broadcast %223 : vector<1x1x32xf32> to vector<16x16x32xf32>
    %225 = arith.mulf %220, %224 : vector<16x16x32xf32>
    %226 = arith.addf %219, %225 : vector<16x16x32xf32>
    %c3_132 = arith.constant 3 : index
    %c0_133 = arith.constant 0 : index
    %227 = vector.load %arg4[%c3_132, %c0_133] : memref<4x32xf32, #tpu.memory_space<vmem>>, vector<1x32xf32>
    %228 = vector.shape_cast %227 : vector<1x32xf32> to vector<32xf32>
    %229 = vector.shape_cast %228 : vector<32xf32> to vector<1x1x32xf32>
    %230 = vector.broadcast %229 : vector<1x1x32xf32> to vector<16x16x32xf32>
    %231 = arith.addf %226, %230 : vector<16x16x32xf32>
    %cst_134 = arith.constant 0.000000e+00 : f32
    %232 = vector.broadcast %cst_134 : f32 to vector<16x16x32xf32>
    %233 = arith.maximumf %231, %232 : vector<16x16x32xf32>
    %234 = vector.shape_cast %233 : vector<16x16x32xf32> to vector<256x32xf32>
    %235 = tpu.concatenate %18, %90, %162, %234, %5 in 1 : vector<256x32xf32>, vector<256x32xf32>, vector<256x32xf32>, vector<256x32xf32>, vector<256x32xf32> -> vector<256x160xf32>
    %c0_135 = arith.constant 0 : index
    %c0_136 = arith.constant 0 : index
    %236 = vector.load %arg5[%c0_135, %c0_136] : memref<160x72xf32, #tpu.memory_space<vmem>>, vector<160x72xf32>
    %cst_137 = arith.constant dense<0.000000e+00> : vector<256x72xf32>
    %237 = tpu.matmul %235, %236, %cst_137 {dimension_numbers = #tpu.dot_dimension_numbers<[1], [0], [0], [1], [0, 0, 1, 1], [], []>} : vector<256x160xf32>, vector<160x72xf32>, vector<256x72xf32> -> vector<256x72xf32>
    %238 = vector.extract_strided_slice %237 {offsets = [0, 0], sizes = [256, 32], strides = [1, 1]} : vector<256x72xf32> to vector<256x32xf32>
    %c0_138 = arith.constant 0 : index
    %c0_139 = arith.constant 0 : index
    %239 = vector.load %arg6[%c0_138, %c0_139] : memref<1x32xf32, #tpu.memory_space<vmem>>, vector<1x32xf32>
    %240 = vector.shape_cast %239 : vector<1x32xf32> to vector<32xf32>
    %241 = vector.shape_cast %240 : vector<32xf32> to vector<1x32xf32>
    %242 = vector.broadcast %241 : vector<1x32xf32> to vector<256x32xf32>
    %243 = arith.addf %238, %242 : vector<256x32xf32>
    %cst_140 = arith.constant 0.000000e+00 : f32
    %244 = vector.broadcast %cst_140 : f32 to vector<256x32xf32>
    %245 = arith.maximumf %243, %244 : vector<256x32xf32>
    %246 = vector.extract_strided_slice %237 {offsets = [0, 32], sizes = [256, 32], strides = [1, 1]} : vector<256x72xf32> to vector<256x32xf32>
    %c0_141 = arith.constant 0 : index
    %c0_142 = arith.constant 0 : index
    %247 = vector.load %arg7[%c0_141, %c0_142] : memref<1x32xf32, #tpu.memory_space<vmem>>, vector<1x32xf32>
    %248 = vector.shape_cast %247 : vector<1x32xf32> to vector<32xf32>
    %249 = vector.shape_cast %248 : vector<32xf32> to vector<1x32xf32>
    %250 = vector.broadcast %249 : vector<1x32xf32> to vector<256x32xf32>
    %251 = arith.addf %246, %250 : vector<256x32xf32>
    %252 = arith.addf %245, %251 : vector<256x32xf32>
    %cst_143 = arith.constant 0.000000e+00 : f32
    %253 = vector.broadcast %cst_143 : f32 to vector<256x32xf32>
    %254 = arith.maximumf %252, %253 : vector<256x32xf32>
    %255 = vector.extract_strided_slice %237 {offsets = [0, 64], sizes = [256, 8], strides = [1, 1]} : vector<256x72xf32> to vector<256x8xf32>
    %cst_144 = arith.constant dense<0.000000e+00> : vector<8xf32>
    %256 = vector.multi_reduction <add>, %255, %cst_144 [0] : vector<256x8xf32> to vector<8xf32>
    %257 = vector.shape_cast %256 : vector<8xf32> to vector<1x8xf32>
    %cst_145 = arith.constant 3.906250e-03 : f32
    %258 = vector.broadcast %cst_145 : f32 to vector<1x8xf32>
    %259 = arith.mulf %257, %258 : vector<1x8xf32>
    %c0_146 = arith.constant 0 : index
    %c0_147 = arith.constant 0 : index
    %260 = vector.load %arg8[%c0_146, %c0_147] : memref<1x8xf32, #tpu.memory_space<vmem>>, vector<1x8xf32>
    %261 = vector.shape_cast %260 : vector<1x8xf32> to vector<8xf32>
    %262 = vector.shape_cast %261 : vector<8xf32> to vector<1x8xf32>
    %263 = arith.addf %259, %262 : vector<1x8xf32>
    %cst_148 = arith.constant 0.000000e+00 : f32
    %264 = vector.broadcast %cst_148 : f32 to vector<1x8xf32>
    %265 = arith.maximumf %263, %264 : vector<1x8xf32>
    %266 = vector.shape_cast %265 : vector<1x8xf32> to vector<1x8xf32>
    %267 = vector.broadcast %266 : vector<1x8xf32> to vector<256x8xf32>
    %cst_149 = arith.constant 0.000000e+00 : f32
    %268 = vector.broadcast %cst_149 : f32 to vector<256x88xf32>
    %269 = tpu.concatenate %254, %267, %268 in 1 : vector<256x32xf32>, vector<256x8xf32>, vector<256x88xf32> -> vector<256x128xf32>
    %270 = vector.shape_cast %269 : vector<256x128xf32> to vector<16x16x128xf32>
    %c0_150 = arith.constant 0 : index
    %c0_151 = arith.constant 0 : index
    %c0_152 = arith.constant 0 : index
    %c0_153 = arith.constant 0 : index
    %271 = vector.load %arg9[%c0_150, %c0_151, %c0_152, %c0_153] : memref<1x16x16x128xf32, #tpu.memory_space<vmem>>, vector<1x16x16x128xf32>
    %272 = vector.shape_cast %271 : vector<1x16x16x128xf32> to vector<16x16x128xf32>
    %273 = vector.shape_cast %270 : vector<16x16x128xf32> to vector<1x16x16x128xf32>
    tpu.vector_store %arg9[%c0_150, %c0_151, %c0_152, %c0_153], %273 {strides = array<i32>} : memref<1x16x16x128xf32, #tpu.memory_space<vmem>>, vector<1x16x16x128xf32>,
    return
  }
  func.func @transform_0(%arg0: i32) -> (i32, i32, i32, i32) {
    %c0_i32 = arith.constant 0 : i32
    %c0_i32_0 = arith.constant 0 : i32
    %c0_i32_1 = arith.constant 0 : i32
    %c0_i32_2 = arith.constant 0 : i32
    return %arg0, %c0_i32, %c0_i32_0, %c0_i32_1 : i32, i32, i32, i32
  }
  func.func @transform_1(%arg0: i32) -> (i32, i32) {
    %c0_i32 = arith.constant 0 : i32
    %c0_i32_0 = arith.constant 0 : i32
    %c0_i32_1 = arith.constant 0 : i32
    return %c0_i32, %c0_i32_0 : i32, i32
  }
  func.func @transform_2(%arg0: i32) -> (i32, i32) {
    %c0_i32 = arith.constant 0 : i32
    %c0_i32_0 = arith.constant 0 : i32
    %c0_i32_1 = arith.constant 0 : i32
    return %c0_i32, %c0_i32_0 : i32, i32
  }
  func.func @transform_3(%arg0: i32) -> (i32, i32) {
    %c0_i32 = arith.constant 0 : i32
    %c0_i32_0 = arith.constant 0 : i32
    %c0_i32_1 = arith.constant 0 : i32
    return %c0_i32, %c0_i32_0 : i32, i32
  }
  func.func @transform_4(%arg0: i32) -> (i32, i32) {
    %c0_i32 = arith.constant 0 : i32
    %c0_i32_0 = arith.constant 0 : i32
    %c0_i32_1 = arith.constant 0 : i32
    return %c0_i32, %c0_i32_0 : i32, i32
  }
  func.func @transform_5(%arg0: i32) -> (i32, i32) {
    %c0_i32 = arith.constant 0 : i32
    %c0_i32_0 = arith.constant 0 : i32
    %c0_i32_1 = arith.constant 0 : i32
    return %c0_i32, %c0_i32_0 : i32, i32
  }
  func.func @transform_6(%arg0: i32) -> (i32, i32) {
    %c0_i32 = arith.constant 0 : i32
    %c0_i32_0 = arith.constant 0 : i32
    %c0_i32_1 = arith.constant 0 : i32
    return %c0_i32, %c0_i32_0 : i32, i32
  }
  func.func @transform_7(%arg0: i32) -> (i32, i32) {
    %c0_i32 = arith.constant 0 : i32
    %c0_i32_0 = arith.constant 0 : i32
    %c0_i32_1 = arith.constant 0 : i32
    return %c0_i32, %c0_i32_0 : i32, i32
  }
  func.func @transform_8(%arg0: i32) -> (i32, i32, i32, i32) {
    %c0_i32 = arith.constant 0 : i32
    %c0_i32_0 = arith.constant 0 : i32
    %c0_i32_1 = arith.constant 0 : i32
    %c0_i32_2 = arith.constant 0 : i32
    return %arg0, %c0_i32, %c0_i32_0, %c0_i32_1 : i32, i32, i32, i32
  }
}

</mosaic_0001>

<llo_original>
// kernel: tpu_custom_call.1
$region0: #{tpu_custom_call.1}
  #allocation0 [shape = 'u32[]', space=smem, size = 0x4, offset = 0x4, fixed_abs, tag = 'smem constant byte address 0x4 - core index']
  #allocation1 [shape = 'u32[144,128]{1,0:T(1,128)}', space=vmem, size = 0x12000, scoped, tag = 'internal scratch']
  #allocation2 [shape = 'f32[24,24,32]{2,1,0:T(8,128)}', space=vmem, size = 0x48000, scoped, tag = 'scratch operand']
  %s0 = inlined_call_operand.hbm [shape: f32[2,16,16,32], index: 0, kind: input, shape index: {}]
  %s1 = inlined_call_operand.vmem [shape: f32[1,32], index: 1, kind: input, shape index: {}]
  %s2 = inlined_call_operand.vmem [shape: f32[27,32], index: 2, kind: input, shape index: {}]
  %s3 = inlined_call_operand.vmem [shape: f32[4,32], index: 3, kind: input, shape index: {}]
  %s4 = inlined_call_operand.vmem [shape: f32[160,72], index: 4, kind: input, shape index: {}]
  %s5 = inlined_call_operand.vmem [shape: f32[1,32], index: 5, kind: input, shape index: {}]
  %s6 = inlined_call_operand.vmem [shape: f32[1,32], index: 6, kind: input, shape index: {}]
  %s7 = inlined_call_operand.vmem [shape: f32[1,8], index: 7, kind: input, shape index: {}]
  %s8 = inlined_call_operand.hbm [shape: f32[2,16,16,128], index: 8, kind: output, shape index: {}]
  %s9 = sld [smem:[#allocation0]]
  $region69: #{tpu_custom_call.1} parent=0
    _
  %s11 = ssub.s32 1, %s9
  %s12 = scalar_select 0, %s11, %s9
  $region1: #{tpu_custom_call.1} parent=0
    #allocation3 [shape = 'u8[262144]{0}', space=vmem, size = 0x40000, scoped, tag = 'input window, operand 0']
    #allocation4 [shape = 's32[2]{0}', space=sflag, size = 0x8, scoped, tag = 'scoped memory for tpu_custom_call.1']
    #allocation5 [shape = 's32[2]{0}', space=sflag, size = 0x8, scoped, tag = 'scoped memory for tpu_custom_call.1']
    #allocation6 [shape = 'u8[262144]{0}', space=vmem, size = 0x40000, scoped, tag = 'output window, operand 0']
    %13 = vsyncpa [#allocation4], 0
    %s14 = scalar_lea.sflag [#allocation4], 1
    %15 = vsyncpa %s14, 0
    %16 = vsyncpa [#allocation5], 0
    %s17 = scalar_lea.sflag [#allocation5], 1
    %18 = vsyncpa %s17, 0
    loop: start=0, step=1, limit=4
    $region2: #{tpu_custom_call.1} parent=1 // loop_pre_header
      _
    $region3: #{tpu_custom_call.1} parent=1 // loop_header
      %s20 = sphi 0, %s24
      %p21 = scmp.ge.s32.totalorder %s20, 4
      %s30 = sphi 0, %s32
      %s33 = sphi 0, %s30
      %s34 = sphi 0, %s33
      %s50 = sphi 0, %s34
      %s54 = sphi 0, %s54
      %s56 = sphi 0, %s54
      %s57 = sphi 0, %s56
      %s71 = sphi 0, %s57
      %s75 = sphi 0, %s75
      %s77 = sphi 0, %s75
      %s78 = sphi 0, %s77
      %s92 = sphi 0, %s78
      %s96 = sphi 0, %s96
      %s98 = sphi 0, %s96
      %s99 = sphi 0, %s98
      %s113 = sphi 0, %s99
      %s117 = sphi 0, %s117
      %s119 = sphi 0, %s117
      %s120 = sphi 0, %s119
      %s134 = sphi 0, %s120
      %s138 = sphi 0, %s138
      %s140 = sphi 0, %s138
      %s141 = sphi 0, %s140
      %s155 = sphi 0, %s141
      %s159 = sphi 0, %s159
      %s161 = sphi 0, %s159
      %s162 = sphi 0, %s161
      %s176 = sphi 0, %s162
      %s180 = sphi 0, %s180
      %s182 = sphi 0, %s180
      %s183 = sphi 0, %s182
      %s197 = sphi 0, %s183
      %s203 = sphi 0, %s205
      %s206 = sphi 0, %s203
      %s207 = sphi 0, %s206
      %s223 = sphi 0, %s207
    $region4: #{tpu_custom_call.1} parent=1 // loop_header_branch
      %23 = sbr.rel (%p21) target = $region8
    $region5: #{tpu_custom_call.1} parent=1 // loop_body
      %s25 = ssub.s32 %s20, 1
      %s26 = ssub.s32 %s20, 2
      %s27 = sadd.s32 %s20, 1
      %s28 = ssub.s32 %s20, %s27
      %p29 = scmp.eq.s32.totalorder %s28, 0
      %s31 = sadd.s32 %s30, 1
      %s32 = scalar_select %p29, %s30, %s31
      %p35 = pneg %p29
      %p36 = scmp.eq.s32.totalorder %s20, 1
      %p37 = por %p35, %p36
      %p38 = scmp.ne.s32.totalorder %s30, %s33
      %p39 = scmp.eq.s32.totalorder %s20, 0
      %p40 = por %p38, %p39
      %p41 = scmp.ne.s32.totalorder %s30, %s33
      %p42 = scmp.eq.s32.totalorder %s25, 1
      %p43 = por %p41, %p42
      %p44 = scmp.ne.s32.totalorder %s33, %s34
      %p45 = scmp.eq.s32.totalorder %s25, 0
      %p46 = por %p44, %p45
      %p47 = scmp.ne.s32.totalorder %s33, %s34
      %p48 = scmp.eq.s32.totalorder %s26, 1
      %p49 = por %p47, %p48
      %p51 = scmp.ne.s32.totalorder %s34, %s50
      %p52 = scmp.eq.s32.totalorder %s26, 0
      %p53 = por %p51, %p52
      %s55 = sadd.s32 %s54, 1
      %p58 = scmp.eq.s32.totalorder %s20, 1
      %p59 = scmp.ne.s32.totalorder %s54, %s56
      %p60 = scmp.eq.s32.totalorder %s20, 0
      %p61 = por %p59, %p60
      %p62 = scmp.ne.s32.totalorder %s54, %s56
      %p63 = scmp.eq.s32.totalorder %s25, 1
      %p64 = por %p62, %p63
      %p65 = scmp.ne.s32.totalorder %s56, %s57
      %p66 = scmp.eq.s32.totalorder %s25, 0
      %p67 = por %p65, %p66
      %p68 = scmp.ne.s32.totalorder %s56, %s57
      %p69 = scmp.eq.s32.totalorder %s26, 1
      %p70 = por %p68, %p69
      %p72 = scmp.ne.s32.totalorder %s57, %s71
      %p73 = scmp.eq.s32.totalorder %s26, 0
      %p74 = por %p72, %p73
      %s76 = sadd.s32 %s75, 1
      %p79 = scmp.eq.s32.totalorder %s20, 1
      %p80 = scmp.ne.s32.totalorder %s75, %s77
      %p81 = scmp.eq.s32.totalorder %s20, 0
      %p82 = por %p80, %p81
      %p83 = scmp.ne.s32.totalorder %s75, %s77
      %p84 = scmp.eq.s32.totalorder %s25, 1
      %p85 = por %p83, %p84
      %p86 = scmp.ne.s32.totalorder %s77, %s78
      %p87 = scmp.eq.s32.totalorder %s25, 0
      %p88 = por %p86, %p87
      %p89 = scmp.ne.s32.totalorder %s77, %s78
      %p90 = scmp.eq.s32.totalorder %s26, 1
      %p91 = por %p89, %p90
      %p93 = scmp.ne.s32.totalorder %s78, %s92
      %p94 = scmp.eq.s32.totalorder %s26, 0
      %p95 = por %p93, %p94
      %s97 = sadd.s32 %s96, 1
      %p100 = scmp.eq.s32.totalorder %s20, 1
      %p101 = scmp.ne.s32.totalorder %s96, %s98
      %p102 = scmp.eq.s32.totalorder %s20, 0
      %p103 = por %p101, %p102
      %p104 = scmp.ne.s32.totalorder %s96, %s98
      %p105 = scmp.eq.s32.totalorder %s25, 1
      %p106 = por %p104, %p105
      %p107 = scmp.ne.s32.totalorder %s98, %s99
      %p108 = scmp.eq.s32.totalorder %s25, 0
      %p109 = por %p107, %p108
      %p110 = scmp.ne.s32.totalorder %s98, %s99
      %p111 = scmp.eq.s32.totalorder %s26, 1
      %p112 = por %p110, %p111
      %p114 = scmp.ne.s32.totalorder %s99, %s113
      %p115 = scmp.eq.s32.totalorder %s26, 0
      %p116 = por %p114, %p115
      %s118 = sadd.s32 %s117, 1
      %p121 = scmp.eq.s32.totalorder %s20, 1
      %p122 = scmp.ne.s32.totalorder %s117, %s119
      %p123 = scmp.eq.s32.totalorder %s20, 0
      %p124 = por %p122, %p123
      %p125 = scmp.ne.s32.totalorder %s117, %s119
      %p126 = scmp.eq.s32.totalorder %s25, 1
      %p127 = por %p125, %p126
      %p128 = scmp.ne.s32.totalorder %s119, %s120
      %p129 = scmp.eq.s32.totalorder %s25, 0
      %p130 = por %p128, %p129
      %p131 = scmp.ne.s32.totalorder %s119, %s120
      %p132 = scmp.eq.s32.totalorder %s26, 1
      %p133 = por %p131, %p132
      %p135 = scmp.ne.s32.totalorder %s120, %s134
      %p136 = scmp.eq.s32.totalorder %s26, 0
      %p137 = por %p135, %p136
      %s139 = sadd.s32 %s138, 1
      %p142 = scmp.eq.s32.totalorder %s20, 1
      %p143 = scmp.ne.s32.totalorder %s138, %s140
      %p144 = scmp.eq.s32.totalorder %s20, 0
      %p145 = por %p143, %p144
      %p146 = scmp.ne.s32.totalorder %s138, %s140
      %p147 = scmp.eq.s32.totalorder %s25, 1
      %p148 = por %p146, %p147
      %p149 = scmp.ne.s32.totalorder %s140, %s141
      %p150 = scmp.eq.s32.totalorder %s25, 0
      %p151 = por %p149, %p150
      %p152 = scmp.ne.s32.totalorder %s140, %s141
      %p153 = scmp.eq.s32.totalorder %s26, 1
      %p154 = por %p152, %p153
      %p156 = scmp.ne.s32.totalorder %s141, %s155
      %p157 = scmp.eq.s32.totalorder %s26, 0
      %p158 = por %p156, %p157
      %s160 = sadd.s32 %s159, 1
      %p163 = scmp.eq.s32.totalorder %s20, 1
      %p164 = scmp.ne.s32.totalorder %s159, %s161
      %p165 = scmp.eq.s32.totalorder %s20, 0
      %p166 = por %p164, %p165
      %p167 = scmp.ne.s32.totalorder %s159, %s161
      %p168 = scmp.eq.s32.totalorder %s25, 1
      %p169 = por %p167, %p168
      %p170 = scmp.ne.s32.totalorder %s161, %s162
      %p171 = scmp.eq.s32.totalorder %s25, 0
      %p172 = por %p170, %p171
      %p173 = scmp.ne.s32.totalorder %s161, %s162
      %p174 = scmp.eq.s32.totalorder %s26, 1
      %p175 = por %p173, %p174
      %p177 = scmp.ne.s32.totalorder %s162, %s176
      %p178 = scmp.eq.s32.totalorder %s26, 0
      %p179 = por %p177, %p178
      %s181 = sadd.s32 %s180, 1
      %p184 = scmp.eq.s32.totalorder %s20, 1
      %p185 = scmp.ne.s32.totalorder %s180, %s182
      %p186 = scmp.eq.s32.totalorder %s20, 0
      %p187 = por %p185, %p186
      %p188 = scmp.ne.s32.totalorder %s180, %s182
      %p189 = scmp.eq.s32.totalorder %s25, 1
      %p190 = por %p188, %p189
      %p191 = scmp.ne.s32.totalorder %s182, %s183
      %p192 = scmp.eq.s32.totalorder %s25, 0
      %p193 = por %p191, %p192
      %p194 = scmp.ne.s32.totalorder %s182, %s183
      %p195 = scmp.eq.s32.totalorder %s26, 1
      %p196 = por %p194, %p195
      %p198 = scmp.ne.s32.totalorder %s183, %s197
      %p199 = scmp.eq.s32.totalorder %s26, 0
      %p200 = por %p198, %p199
      %s201 = ssub.s32 %s20, %s27
      %p202 = scmp.eq.s32.totalorder %s201, 0
      %s204 = sadd.s32 %s203, 1
      %s205 = scalar_select %p202, %s203, %s204
      %p208 = pneg %p202
      %p209 = scmp.eq.s32.totalorder %s20, 1
      %p210 = por %p208, %p209
      %p211 = scmp.ne.s32.totalorder %s203, %s206
      %p212 = scmp.eq.s32.totalorder %s20, 0
      %p213 = por %p211, %p212
      %p214 = scmp.ne.s32.totalorder %s203, %s206
      %p215 = scmp.eq.s32.totalorder %s25, 1
      %p216 = por %p214, %p215
      %p217 = scmp.ne.s32.totalorder %s206, %s207
      %p218 = scmp.eq.s32.totalorder %s25, 0
      %p219 = por %p217, %p218
      %p220 = scmp.ne.s32.totalorder %s206, %s207
      %p221 = scmp.eq.s32.totalorder %s26, 1
      %p222 = por %p220, %p221
      %p224 = scmp.ne.s32.totalorder %s207, %s223
      %p225 = scmp.eq.s32.totalorder %s26, 0
      %p226 = por %p224, %p225
      %p227 = scmp.le.s32.totalorder 1, %s20
      %p228 = scmp.lt.s32.totalorder %s20, 3
      %p229 = pnand %p227, %p228
      %p230 = pneg %p229
      // Predicated region
      $region9: #{tpu_custom_call.1} parent=5 // pred_check
        _
      $region10: #{tpu_custom_call.1} parent=5 // pred_check_branch
        %232 = sbr.rel (%p229) target = $region12
      $region11: #{tpu_custom_call.1} parent=5 // pred_region
        %s233 = ssub.s32 %s20, 1
        // Predicated region
        $region13: #{tpu_custom_call.1} parent=11 // pred_check
          %p234 = pneg %p67
        $region14: #{tpu_custom_call.1} parent=11 // pred_check_branch
          %236 = sbr.rel (%p234) target = $region16
        $region15: #{tpu_custom_call.1} parent=11 // pred_region
          _
        $region16: #{tpu_custom_call.1} parent=11 // pred_fallthru
          _
        // Predicated region
        $region17: #{tpu_custom_call.1} parent=11 // pred_check
          %p237 = pneg %p88
        $region18: #{tpu_custom_call.1} parent=11 // pred_check_branch
          %239 = sbr.rel (%p237) target = $region20
        $region19: #{tpu_custom_call.1} parent=11 // pred_region
          _
        $region20: #{tpu_custom_call.1} parent=11 // pred_fallthru
          _
        // Predicated region
        $region21: #{tpu_custom_call.1} parent=11 // pred_check
          %p240 = pneg %p109
        $region22: #{tpu_custom_call.1} parent=11 // pred_check_branch
          %242 = sbr.rel (%p240) target = $region24
        $region23: #{tpu_custom_call.1} parent=11 // pred_region
          _
        $region24: #{tpu_custom_call.1} parent=11 // pred_fallthru
          _
        // Predicated region
        $region25: #{tpu_custom_call.1} parent=11 // pred_check
          %p243 = pneg %p130
        $region26: #{tpu_custom_call.1} parent=11 // pred_check_branch
          %245 = sbr.rel (%p243) target = $region28
        $region27: #{tpu_custom_call.1} parent=11 // pred_region
          _
        $region28: #{tpu_custom_call.1} parent=11 // pred_fallthru
          _
        // Predicated region
        $region29: #{tpu_custom_call.1} parent=11 // pred_check
          %p246 = pneg %p151
        $region30: #{tpu_custom_call.1} parent=11 // pred_check_branch
          %248 = sbr.rel (%p246) target = $region32
        $region31: #{tpu_custom_call.1} parent=11 // pred_region
          _
        $region32: #{tpu_custom_call.1} parent=11 // pred_fallthru
          _
        // Predicated region
        $region33: #{tpu_custom_call.1} parent=11 // pred_check
          %p249 = pneg %p172
        $region34: #{tpu_custom_call.1} parent=11 // pred_check_branch
          %251 = sbr.rel (%p249) target = $region36
        $region35: #{tpu_custom_call.1} parent=11 // pred_region
          _
        $region36: #{tpu_custom_call.1} parent=11 // pred_fallthru
          _
        // Predicated region
        $region37: #{tpu_custom_call.1} parent=11 // pred_check
          %p252 = pneg %p193
        $region38: #{tpu_custom_call.1} parent=11 // pred_check_branch
          %254 = sbr.rel (%p252) target = $region40
        $region39: #{tpu_custom_call.1} parent=11 // pred_region
          _
        $region40: #{tpu_custom_call.1} parent=11 // pred_fallthru
          _
      $region12: #{tpu_custom_call.1} parent=5 // pred_fallthru
        _
      %p255 = scmp.lt.s32.totalorder %s20, 2
      // Predicated region
      $region41: #{tpu_custom_call.1} parent=5 // pred_check
        %p256 = pneg %p255
      $region42: #{tpu_custom_call.1} parent=5 // pred_check_branch
        %258 = sbr.rel (%p256) target = $region44
      $region43: #{tpu_custom_call.1} parent=5 // pred_region
        // Predicated region
        $region45: #{tpu_custom_call.1} parent=43 // pred_check
          %p259 = pneg %p40
        $region46: #{tpu_custom_call.1} parent=43 // pred_check_branch
          %261 = sbr.rel (%p259) target = $region48
        $region47: #{tpu_custom_call.1} parent=43 // pred_region
          %s262 = sand.u32 %s30, 1
          %s263 = scalar_lea.sflag [#allocation4], %s262
          %s264 = sand.u32 %s30, 1
          %s265 = smul.addr %s264, 256
          %s266 = scalar_lea.vmem [#allocation3], %s265
          %s268 = ssub.s32 4096, 4096
          %269 = vsyncadd %s263, %s268
          %s270 = smul.addr %s20, 32
          %s271 = smul.addr %s270, 128
          %s272 = scalar_lea.hbm %s0, %s271
          %s273 = sshll.u32 %s266, 4
          %s274 = int_to_ptr.vmem [resolvable:$true] %s273
          %279 = dma.hbm_to_vmem [thread:$0]  %s272, 4096, %s274, %s263, 128, 128, 8
        $region48: #{tpu_custom_call.1} parent=43 // pred_fallthru
          _
      $region44: #{tpu_custom_call.1} parent=5 // pred_fallthru
        _
      %p280 = scmp.le.s32.totalorder 1, %s20
      %p281 = scmp.lt.s32.totalorder %s20, 3
      %p282 = pnand %p280, %p281
      %p283 = pneg %p282
      // Predicated region
      $region49: #{tpu_custom_call.1} parent=5 // pred_check
        _
      $region50: #{tpu_custom_call.1} parent=5 // pred_check_branch
        %285 = sbr.rel (%p282) target = $region52
      $region51: #{tpu_custom_call.1} parent=5 // pred_region
        %s286 = ssub.s32 %s20, 1
        %s287 = sand.u32 %s33, 1
        %s288 = scalar_lea.sflag [#allocation4], %s287
        %s289 = sand.u32 %s33, 1
        %s290 = smul.addr %s289, 256
        %s291 = scalar_lea.vmem [#allocation3], %s290
        // Predicated region
        $region53: #{tpu_custom_call.1} parent=51 // pred_check
          %p292 = pneg %p46
        $region54: #{tpu_custom_call.1} parent=51 // pred_check_branch
          %294 = sbr.rel (%p292) target = $region56
        $region55: #{tpu_custom_call.1} parent=51 // pred_region
          %295 = dma.done %s288, 4096
        $region56: #{tpu_custom_call.1} parent=51 // pred_fallthru
          _
        %s296 = sand.u32 %s33, 1
        %s297 = scalar_lea.sflag [#allocation4], %s296
        %s298 = sand.u32 %s33, 1
        %s299 = smul.addr %s298, 256
        %s300 = scalar_lea.vmem [#allocation3], %s299
        %p301 = pneg %p46
        %p302 = pneg %p43
        %p303 = pneg %p67
        %p304 = pneg %p64
        %p305 = pneg %p88
        %p306 = pneg %p85
        %p307 = pneg %p109
        %p308 = pneg %p106
        %p309 = pneg %p130
        %p310 = pneg %p127
        %p311 = pneg %p151
        %p312 = pneg %p148
        %p313 = pneg %p172
        %p314 = pneg %p169
        %p315 = pneg %p193
        %p316 = pneg %p190
        %p317 = pneg %p219
        %p318 = pneg %p216
        %s319 = sand.u32 %s206, 1
        %s320 = scalar_lea.sflag [#allocation5], %s319
        %s321 = sand.u32 %s206, 1
        %s322 = smul.addr %s321, 256
        %s323 = scalar_lea.vmem [#allocation6], %s322
        %vm324 = vcmask 261120
        %325 = vst.msk [vmem:[#allocation2] sm:$0xff] %vm324, 0.0
        %326 = vst.msk [vmem:[#allocation2 + $0x8] sm:$0xff] %vm324, 0.0
        %327 = vst.msk [vmem:[#allocation2 + $0x10] sm:$0xff] %vm324, 0.0
        %328 = vst.msk [vmem:[#allocation2 + $0x18] sm:$0xff] %vm324, 0.0
        %329 = vst.msk [vmem:[#allocation2 + $0x20] sm:$0xff] %vm324, 0.0
        %330 = vst.msk [vmem:[#allocation2 + $0x28] sm:$0xff] %vm324, 0.0
        %331 = vst.msk [vmem:[#allocation2 + $0x30] sm:$0xff] %vm324, 0.0
        %332 = vst.msk [vmem:[#allocation2 + $0x38] sm:$0xff] %vm324, 0.0
        %333 = vst.msk [vmem:[#allocation2 + $0x40] sm:$0xff] %vm324, 0.0
        %334 = vst.msk [vmem:[#allocation2 + $0x48] sm:$0xff] %vm324, 0.0
        %335 = vst.msk [vmem:[#allocation2 + $0x50] sm:$0xff] %vm324, 0.0
        %336 = vst.msk [vmem:[#allocation2 + $0x58] sm:$0xff] %vm324, 0.0
        %337 = vst.msk [vmem:[#allocation2 + $0x60] sm:$0xff] %vm324, 0.0
        %338 = vst.msk [vmem:[#allocation2 + $0x68] sm:$0xff] %vm324, 0.0
        %339 = vst.msk [vmem:[#allocation2 + $0x70] sm:$0xff] %vm324, 0.0
        %340 = vst.msk [vmem:[#allocation2 + $0x78] sm:$0xff] %vm324, 0.0
        %341 = vst.msk [vmem:[#allocation2 + $0x80] sm:$0xff] %vm324, 0.0
        %342 = vst.msk [vmem:[#allocation2 + $0x88] sm:$0xff] %vm324, 0.0
        %343 = vst.msk [vmem:[#allocation2 + $0x90] sm:$0xff] %vm324, 0.0
        %344 = vst.msk [vmem:[#allocation2 + $0x98] sm:$0xff] %vm324, 0.0
        %345 = vst.msk [vmem:[#allocation2 + $0xa0] sm:$0xff] %vm324, 0.0
        %346 = vst.msk [vmem:[#allocation2 + $0xa8] sm:$0xff] %vm324, 0.0
        %347 = vst.msk [vmem:[#allocation2 + $0xb0] sm:$0xff] %vm324, 0.0
        %348 = vst.msk [vmem:[#allocation2 + $0xb8] sm:$0xff] %vm324, 0.0
        %349 = vst.msk [vmem:[#allocation2 + $0xc0] sm:$0xff] %vm324, 0.0
        %350 = vst.msk [vmem:[#allocation2 + $0xc8] sm:$0xff] %vm324, 0.0
        %351 = vst.msk [vmem:[#allocation2 + $0xd0] sm:$0xff] %vm324, 0.0
        %352 = vst.msk [vmem:[#allocation2 + $0xd8] sm:$0xff] %vm324, 0.0
        %353 = vst.msk [vmem:[#allocation2 + $0xe0] sm:$0xff] %vm324, 0.0
        %354 = vst.msk [vmem:[#allocation2 + $0xe8] sm:$0xff] %vm324, 0.0
        %355 = vst.msk [vmem:[#allocation2 + $0xf0] sm:$0xff] %vm324, 0.0
        %356 = vst.msk [vmem:[#allocation2 + $0xf8] sm:$0xff] %vm324, 0.0
        %357 = vst.msk [vmem:[#allocation2 + $0x100] sm:$0xff] %vm324, 0.0
        %358 = vst.msk [vmem:[#allocation2 + $0x108] sm:$0xff] %vm324, 0.0
        %359 = vst.msk [vmem:[#allocation2 + $0x110] sm:$0xff] %vm324, 0.0
        %360 = vst.msk [vmem:[#allocation2 + $0x118] sm:$0xff] %vm324, 0.0
        %361 = vst.msk [vmem:[#allocation2 + $0x120] sm:$0xff] %vm324, 0.0
        %362 = vst.msk [vmem:[#allocation2 + $0x128] sm:$0xff] %vm324, 0.0
        %363 = vst.msk [vmem:[#allocation2 + $0x130] sm:$0xff] %vm324, 0.0
        %364 = vst.msk [vmem:[#allocation2 + $0x138] sm:$0xff] %vm324, 0.0
        %365 = vst.msk [vmem:[#allocation2 + $0x140] sm:$0xff] %vm324, 0.0
        %366 = vst.msk [vmem:[#allocation2 + $0x148] sm:$0xff] %vm324, 0.0
        %367 = vst.msk [vmem:[#allocation2 + $0x150] sm:$0xff] %vm324, 0.0
        %368 = vst.msk [vmem:[#allocation2 + $0x158] sm:$0xff] %vm324, 0.0
        %369 = vst.msk [vmem:[#allocation2 + $0x160] sm:$0xff] %vm324, 0.0
        %370 = vst.msk [vmem:[#allocation2 + $0x168] sm:$0xff] %vm324, 0.0
        %371 = vst.msk [vmem:[#allocation2 + $0x170] sm:$0xff] %vm324, 0.0
        %372 = vst.msk [vmem:[#allocation2 + $0x178] sm:$0xff] %vm324, 0.0
        %373 = vst.msk [vmem:[#allocation2 + $0x180] sm:$0xff] %vm324, 0.0
        %374 = vst.msk [vmem:[#allocation2 + $0x188] sm:$0xff] %vm324, 0.0
        %375 = vst.msk [vmem:[#allocation2 + $0x190] sm:$0xff] %vm324, 0.0
        %376 = vst.msk [vmem:[#allocation2 + $0x198] sm:$0xff] %vm324, 0.0
        %377 = vst.msk [vmem:[#allocation2 + $0x1a0] sm:$0xff] %vm324, 0.0
        %378 = vst.msk [vmem:[#allocation2 + $0x1a8] sm:$0xff] %vm324, 0.0
        %379 = vst.msk [vmem:[#allocation2 + $0x1b0] sm:$0xff] %vm324, 0.0
        %380 = vst.msk [vmem:[#allocation2 + $0x1b8] sm:$0xff] %vm324, 0.0
        %381 = vst.msk [vmem:[#allocation2 + $0x1c0] sm:$0xff] %vm324, 0.0
        %382 = vst.msk [vmem:[#allocation2 + $0x1c8] sm:$0xff] %vm324, 0.0
        %383 = vst.msk [vmem:[#allocation2 + $0x1d0] sm:$0xff] %vm324, 0.0
        %384 = vst.msk [vmem:[#allocation2 + $0x1d8] sm:$0xff] %vm324, 0.0
        %385 = vst.msk [vmem:[#allocation2 + $0x1e0] sm:$0xff] %vm324, 0.0
        %386 = vst.msk [vmem:[#allocation2 + $0x1e8] sm:$0xff] %vm324, 0.0
        %387 = vst.msk [vmem:[#allocation2 + $0x1f0] sm:$0xff] %vm324, 0.0
        %388 = vst.msk [vmem:[#allocation2 + $0x1f8] sm:$0xff] %vm324, 0.0
        %389 = vst.msk [vmem:[#allocation2 + $0x200] sm:$0xff] %vm324, 0.0
        %390 = vst.msk [vmem:[#allocation2 + $0x208] sm:$0xff] %vm324, 0.0
        %391 = vst.msk [vmem:[#allocation2 + $0x210] sm:$0xff] %vm324, 0.0
        %392 = vst.msk [vmem:[#allocation2 + $0x218] sm:$0xff] %vm324, 0.0
        %393 = vst.msk [vmem:[#allocation2 + $0x220] sm:$0xff] %vm324, 0.0
        %394 = vst.msk [vmem:[#allocation2 + $0x228] sm:$0xff] %vm324, 0.0
        %395 = vst.msk [vmem:[#allocation2 + $0x230] sm:$0xff] %vm324, 0.0
        %396 = vst.msk [vmem:[#allocation2 + $0x238] sm:$0xff] %vm324, 0.0
        %v397 = vld [vmem:[%s291] sm:$0xff]
        %v398 = vld [vmem:[%s291 + $0x8] sm:$0xff]
        %v399 = vld [vmem:[%s291 + $0x10] sm:$0xff]
        %v400 = vld [vmem:[%s291 + $0x18] sm:$0xff]
        %v401 = vld [vmem:[%s291 + $0x20] sm:$0xff]
        %v402 = vld [vmem:[%s291 + $0x28] sm:$0xff]
        %v403 = vld [vmem:[%s291 + $0x30] sm:$0xff]
        %v404 = vld [vmem:[%s291 + $0x38] sm:$0xff]
        %v405 = vld [vmem:[%s291 + $0x40] sm:$0xff]
        %v406 = vld [vmem:[%s291 + $0x48] sm:$0xff]
        %v407 = vld [vmem:[%s291 + $0x50] sm:$0xff]
        %v408 = vld [vmem:[%s291 + $0x58] sm:$0xff]
        %v409 = vld [vmem:[%s291 + $0x60] sm:$0xff]
        %v410 = vld [vmem:[%s291 + $0x68] sm:$0xff]
        %v411 = vld [vmem:[%s291 + $0x70] sm:$0xff]
        %v412 = vld [vmem:[%s291 + $0x78] sm:$0xff]
        %v413 = vld [vmem:[%s291 + $0x80] sm:$0xff]
        %v414 = vld [vmem:[%s291 + $0x88] sm:$0xff]
        %v415 = vld [vmem:[%s291 + $0x90] sm:$0xff]
        %v416 = vld [vmem:[%s291 + $0x98] sm:$0xff]
        %v417 = vld [vmem:[%s291 + $0xa0] sm:$0xff]
        %v418 = vld [vmem:[%s291 + $0xa8] sm:$0xff]
        %v419 = vld [vmem:[%s291 + $0xb0] sm:$0xff]
        %v420 = vld [vmem:[%s291 + $0xb8] sm:$0xff]
        %v421 = vld [vmem:[%s291 + $0xc0] sm:$0xff]
        %v422 = vld [vmem:[%s291 + $0xc8] sm:$0xff]
        %v423 = vld [vmem:[%s291 + $0xd0] sm:$0xff]
        %v424 = vld [vmem:[%s291 + $0xd8] sm:$0xff]
        %v425 = vld [vmem:[%s291 + $0xe0] sm:$0xff]
        %v426 = vld [vmem:[%s291 + $0xe8] sm:$0xff]
        %v427 = vld [vmem:[%s291 + $0xf0] sm:$0xff]
        %v428 = vld [vmem:[%s291 + $0xf8] sm:$0xff]
        %s429 = scalar_lea.vmem [#allocation2], 96
        %430 = vst.msk [vmem:[%s429 + $0x4] sm:$0xff] %vm324, %v397
        %431 = vst.msk [vmem:[%s429 + $0xc] sm:$0xff] %vm324, %v398
        %432 = vst.msk [vmem:[%s429 + $0x1c] sm:$0xff] %vm324, %v399
        %433 = vst.msk [vmem:[%s429 + $0x24] sm:$0xff] %vm324, %v400
        %434 = vst.msk [vmem:[%s429 + $0x34] sm:$0xff] %vm324, %v401
        %435 = vst.msk [vmem:[%s429 + $0x3c] sm:$0xff] %vm324, %v402
        %436 = vst.msk [vmem:[%s429 + $0x4c] sm:$0xff] %vm324, %v403
        %437 = vst.msk [vmem:[%s429 + $0x54] sm:$0xff] %vm324, %v404
        %438 = vst.msk [vmem:[%s429 + $0x64] sm:$0xff] %vm324, %v405
        %439 = vst.msk [vmem:[%s429 + $0x6c] sm:$0xff] %vm324, %v406
        %440 = vst.msk [vmem:[%s429 + $0x7c] sm:$0xff] %vm324, %v407
        %441 = vst.msk [vmem:[%s429 + $0x84] sm:$0xff] %vm324, %v408
        %442 = vst.msk [vmem:[%s429 + $0x94] sm:$0xff] %vm324, %v409
        %443 = vst.msk [vmem:[%s429 + $0x9c] sm:$0xff] %vm324, %v410
        %444 = vst.msk [vmem:[%s429 + $0xac] sm:$0xff] %vm324, %v411
        %445 = vst.msk [vmem:[%s429 + $0xb4] sm:$0xff] %vm324, %v412
        %446 = vst.msk [vmem:[%s429 + $0xc4] sm:$0xff] %vm324, %v413
        %447 = vst.msk [vmem:[%s429 + $0xcc] sm:$0xff] %vm324, %v414
        %448 = vst.msk [vmem:[%s429 + $0xdc] sm:$0xff] %vm324, %v415
        %449 = vst.msk [vmem:[%s429 + $0xe4] sm:$0xff] %vm324, %v416
        %450 = vst.msk [vmem:[%s429 + $0xf4] sm:$0xff] %vm324, %v417
        %451 = vst.msk [vmem:[%s429 + $0xfc] sm:$0xff] %vm324, %v418
        %452 = vst.msk [vmem:[%s429 + $0x10c] sm:$0xff] %vm324, %v419
        %453 = vst.msk [vmem:[%s429 + $0x114] sm:$0xff] %vm324, %v420
        %454 = vst.msk [vmem:[%s429 + $0x124] sm:$0xff] %vm324, %v421
        %455 = vst.msk [vmem:[%s429 + $0x12c] sm:$0xff] %vm324, %v422
        %456 = vst.msk [vmem:[%s429 + $0x13c] sm:$0xff] %vm324, %v423
        %457 = vst.msk [vmem:[%s429 + $0x144] sm:$0xff] %vm324, %v424
        %458 = vst.msk [vmem:[%s429 + $0x154] sm:$0xff] %vm324, %v425
        %459 = vst.msk [vmem:[%s429 + $0x15c] sm:$0xff] %vm324, %v426
        %460 = vst.msk [vmem:[%s429 + $0x16c] sm:$0xff] %vm324, %v427
        %461 = vst.msk [vmem:[%s429 + $0x174] sm:$0xff] %vm324, %v428
        %v462 = vld [vmem:[%s1] sm:$0x1]
        %v464 = vlaneseq
        %v465 = vshrl.u32 %v464, 7
        %v466 = vsub.s32 0, %v465
        %v467 = vrot.slane %v462, %v466
        %v469 = vmul.f32 %v397, %v467
        %v470 = vmul.f32 %v398, %v467
        %v471 = vmul.f32 %v399, %v467
        %v472 = vmul.f32 %v400, %v467
        %v473 = vmul.f32 %v401, %v467
        %v474 = vmul.f32 %v402, %v467
        %v475 = vmul.f32 %v403, %v467
        %v476 = vmul.f32 %v404, %v467
        %v477 = vmul.f32 %v405, %v467
        %v478 = vmul.f32 %v406, %v467
        %v479 = vmul.f32 %v407, %v467
        %v480 = vmul.f32 %v408, %v467
        %v481 = vmul.f32 %v409, %v467
        %v482 = vmul.f32 %v410, %v467
        %v483 = vmul.f32 %v411, %v467
        %v484 = vmul.f32 %v412, %v467
        %v485 = vmul.f32 %v413, %v467
        %v486 = vmul.f32 %v414, %v467
        %v487 = vmul.f32 %v415, %v467
        %v488 = vmul.f32 %v416, %v467
        %v489 = vmul.f32 %v417, %v467
        %v490 = vmul.f32 %v418, %v467
        %v491 = vmul.f32 %v419, %v467
        %v492 = vmul.f32 %v420, %v467
        %v493 = vmul.f32 %v421, %v467
        %v494 = vmul.f32 %v422, %v467
        %v495 = vmul.f32 %v423, %v467
        %v496 = vmul.f32 %v424, %v467
        %v497 = vmul.f32 %v425, %v467
        %v498 = vmul.f32 %v426, %v467
        %v499 = vmul.f32 %v427, %v467
        %v500 = vmul.f32 %v428, %v467
        %v501 = vld [vmem:[%s3] sm:$0x1]
        %v502 = vlaneseq
        %v503 = vshrl.u32 %v502, 7
        %v504 = vsub.s32 0, %v503
        %v505 = vrot.slane %v501, %v504
        %v506 = vadd.f32 %v469, %v505
        %v507 = vadd.f32 %v470, %v505
        %v508 = vadd.f32 %v471, %v505
        %v509 = vadd.f32 %v472, %v505
        %v510 = vadd.f32 %v473, %v505
        %v511 = vadd.f32 %v474, %v505
        %v512 = vadd.f32 %v475, %v505
        %v513 = vadd.f32 %v476, %v505
        %v514 = vadd.f32 %v477, %v505
        %v515 = vadd.f32 %v478, %v505
        %v516 = vadd.f32 %v479, %v505
        %v517 = vadd.f32 %v480, %v505
        %v518 = vadd.f32 %v481, %v505
        %v519 = vadd.f32 %v482, %v505
        %v520 = vadd.f32 %v483, %v505
        %v521 = vadd.f32 %v484, %v505
        %v522 = vadd.f32 %v485, %v505
        %v523 = vadd.f32 %v486, %v505
        %v524 = vadd.f32 %v487, %v505
        %v525 = vadd.f32 %v488, %v505
        %v526 = vadd.f32 %v489, %v505
        %v527 = vadd.f32 %v490, %v505
        %v528 = vadd.f32 %v491, %v505
        %v529 = vadd.f32 %v492, %v505
        %v530 = vadd.f32 %v493, %v505
        %v531 = vadd.f32 %v494, %v505
        %v532 = vadd.f32 %v495, %v505
        %v533 = vadd.f32 %v496, %v505
        %v534 = vadd.f32 %v497, %v505
        %v535 = vadd.f32 %v498, %v505
        %v536 = vadd.f32 %v499, %v505
        %v537 = vadd.f32 %v500, %v505
        %v538 = vmax.f32 %v506, 0.0
        %v539 = vmax.f32 %v507, 0.0
        %v540 = vmax.f32 %v508, 0.0
        %v541 = vmax.f32 %v509, 0.0
        %v542 = vmax.f32 %v510, 0.0
        %v543 = vmax.f32 %v511, 0.0
        %v544 = vmax.f32 %v512, 0.0
        %v545 = vmax.f32 %v513, 0.0
        %v546 = vmax.f32 %v514, 0.0
        %v547 = vmax.f32 %v515, 0.0
        %v548 = vmax.f32 %v516, 0.0
        %v549 = vmax.f32 %v517, 0.0
        %v550 = vmax.f32 %v518, 0.0
        %v551 = vmax.f32 %v519, 0.0
        %v552 = vmax.f32 %v520, 0.0
        %v553 = vmax.f32 %v521, 0.0
        %v554 = vmax.f32 %v522, 0.0
        %v555 = vmax.f32 %v523, 0.0
        %v556 = vmax.f32 %v524, 0.0
        %v557 = vmax.f32 %v525, 0.0
        %v558 = vmax.f32 %v526, 0.0
        %v559 = vmax.f32 %v527, 0.0
        %v560 = vmax.f32 %v528, 0.0
        %v561 = vmax.f32 %v529, 0.0
        %v562 = vmax.f32 %v530, 0.0
        %v563 = vmax.f32 %v531, 0.0
        %v564 = vmax.f32 %v532, 0.0
        %v565 = vmax.f32 %v533, 0.0
        %v566 = vmax.f32 %v534, 0.0
        %v567 = vmax.f32 %v535, 0.0
        %v568 = vmax.f32 %v536, 0.0
        %v569 = vmax.f32 %v537, 0.0
        %s570 = scalar_lea.vmem [#allocation2], 48
        %v571 = vld [vmem:[%s570 + $0x2] sm:$0xff]
        %v572 = vld [vmem:[%s570 + $0xa] sm:$0xff]
        %v573 = vld [vmem:[%s570 + $0x1a] sm:$0xff]
        %v574 = vld [vmem:[%s570 + $0x22] sm:$0xff]
        %v575 = vld [vmem:[%s570 + $0x32] sm:$0xff]
        %v576 = vld [vmem:[%s570 + $0x3a] sm:$0xff]
        %v577 = vld [vmem:[%s570 + $0x4a] sm:$0xff]
        %v578 = vld [vmem:[%s570 + $0x52] sm:$0xff]
        %v579 = vld [vmem:[%s570 + $0x62] sm:$0xff]
        %v580 = vld [vmem:[%s570 + $0x6a] sm:$0xff]
        %v581 = vld [vmem:[%s570 + $0x7a] sm:$0xff]
        %v582 = vld [vmem:[%s570 + $0x82] sm:$0xff]
        %v583 = vld [vmem:[%s570 + $0x92] sm:$0xff]
        %v584 = vld [vmem:[%s570 + $0x9a] sm:$0xff]
        %v585 = vld [vmem:[%s570 + $0xaa] sm:$0xff]
        %v586 = vld [vmem:[%s570 + $0xb2] sm:$0xff]
        %v587 = vld [vmem:[%s570 + $0xc2] sm:$0xff]
        %v588 = vld [vmem:[%s570 + $0xca] sm:$0xff]
        %v589 = vld [vmem:[%s570 + $0xda] sm:$0xff]
        %v590 = vld [vmem:[%s570 + $0xe2] sm:$0xff]
        %v591 = vld [vmem:[%s570 + $0xf2] sm:$0xff]
        %v592 = vld [vmem:[%s570 + $0xfa] sm:$0xff]
        %v593 = vld [vmem:[%s570 + $0x10a] sm:$0xff]
        %v594 = vld [vmem:[%s570 + $0x112] sm:$0xff]
        %v595 = vld [vmem:[%s570 + $0x122] sm:$0xff]
        %v596 = vld [vmem:[%s570 + $0x12a] sm:$0xff]
        %v597 = vld [vmem:[%s570 + $0x13a] sm:$0xff]
        %v598 = vld [vmem:[%s570 + $0x142] sm:$0xff]
        %v599 = vld [vmem:[%s570 + $0x152] sm:$0xff]
        %v600 = vld [vmem:[%s570 + $0x15a] sm:$0xff]
        %v601 = vld [vmem:[%s570 + $0x16a] sm:$0xff]
        %v602 = vld [vmem:[%s570 + $0x172] sm:$0xff]
        %v603 = vld [vmem:[%s2] sm:$0x1]
        %v604 = vlaneseq
        %v605 = vshrl.u32 %v604, 7
        %v606 = vsub.s32 0, %v605
        %v607 = vrot.slane %v603, %v606
        %v608 = vmul.f32 %v571, %v607
        %v609 = vmul.f32 %v572, %v607
        %v610 = vmul.f32 %v573, %v607
        %v611 = vmul.f32 %v574, %v607
        %v612 = vmul.f32 %v575, %v607
        %v613 = vmul.f32 %v576, %v607
        %v614 = vmul.f32 %v577, %v607
        %v615 = vmul.f32 %v578, %v607
        %v616 = vmul.f32 %v579, %v607
        %v617 = vmul.f32 %v580, %v607
        %v618 = vmul.f32 %v581, %v607
        %v619 = vmul.f32 %v582, %v607
        %v620 = vmul.f32 %v583, %v607
        %v621 = vmul.f32 %v584, %v607
        %v622 = vmul.f32 %v585, %v607
        %v623 = vmul.f32 %v586, %v607
        %v624 = vmul.f32 %v587, %v607
        %v625 = vmul.f32 %v588, %v607
        %v626 = vmul.f32 %v589, %v607
        %v627 = vmul.f32 %v590, %v607
        %v628 = vmul.f32 %v591, %v607
        %v629 = vmul.f32 %v592, %v607
        %v630 = vmul.f32 %v593, %v607
        %v631 = vmul.f32 %v594, %v607
        %v632 = vmul.f32 %v595, %v607
        %v633 = vmul.f32 %v596, %v607
        %v634 = vmul.f32 %v597, %v607
        %v635 = vmul.f32 %v598, %v607
        %v636 = vmul.f32 %v599, %v607
        %v637 = vmul.f32 %v600, %v607
        %v638 = vmul.f32 %v601, %v607
        %v639 = vmul.f32 %v602, %v607
        %v640 = vadd.f32 %v608, 0.0
        %v641 = vadd.f32 %v609, 0.0
        %v642 = vadd.f32 %v610, 0.0
        %v643 = vadd.f32 %v611, 0.0
        %v644 = vadd.f32 %v612, 0.0
        %v645 = vadd.f32 %v613, 0.0
        %v646 = vadd.f32 %v614, 0.0
        %v647 = vadd.f32 %v615, 0.0
        %v648 = vadd.f32 %v616, 0.0
        %v649 = vadd.f32 %v617, 0.0
        %v650 = vadd.f32 %v618, 0.0
        %v651 = vadd.f32 %v619, 0.0
        %v652 = vadd.f32 %v620, 0.0
        %v653 = vadd.f32 %v621, 0.0
        %v654 = vadd.f32 %v622, 0.0
        %v655 = vadd.f32 %v623, 0.0
        %v656 = vadd.f32 %v624, 0.0
        %v657 = vadd.f32 %v625, 0.0
        %v658 = vadd.f32 %v626, 0.0
        %v659 = vadd.f32 %v627, 0.0
        %v660 = vadd.f32 %v628, 0.0
        %v661 = vadd.f32 %v629, 0.0
        %v662 = vadd.f32 %v630, 0.0
        %v663 = vadd.f32 %v631, 0.0
        %v664 = vadd.f32 %v632, 0.0
        %v665 = vadd.f32 %v633, 0.0
        %v666 = vadd.f32 %v634, 0.0
        %v667 = vadd.f32 %v635, 0.0
        %v668 = vadd.f32 %v636, 0.0
        %v669 = vadd.f32 %v637, 0.0
        %v670 = vadd.f32 %v638, 0.0
        %v671 = vadd.f32 %v639, 0.0
        %v672 = vld [vmem:[%s570 + $0x4] sm:$0xff]
        %v673 = vld [vmem:[%s570 + $0xc] sm:$0xff]
        %v674 = vld [vmem:[%s570 + $0x1c] sm:$0xff]
        %v675 = vld [vmem:[%s570 + $0x24] sm:$0xff]
        %v676 = vld [vmem:[%s570 + $0x34] sm:$0xff]
        %v677 = vld [vmem:[%s570 + $0x3c] sm:$0xff]
        %v678 = vld [vmem:[%s570 + $0x4c] sm:$0xff]
        %v679 = vld [vmem:[%s570 + $0x54] sm:$0xff]
        %v680 = vld [vmem:[%s570 + $0x64] sm:$0xff]
        %v681 = vld [vmem:[%s570 + $0x6c] sm:$0xff]
        %v682 = vld [vmem:[%s570 + $0x7c] sm:$0xff]
        %v683 = vld [vmem:[%s570 + $0x84] sm:$0xff]
        %v684 = vld [vmem:[%s570 + $0x94] sm:$0xff]
        %v685 = vld [vmem:[%s570 + $0x9c] sm:$0xff]
        %v686 = vld [vmem:[%s570 + $0xac] sm:$0xff]
        %v687 = vld [vmem:[%s570 + $0xb4] sm:$0xff]
        %v688 = vld [vmem:[%s570 + $0xc4] sm:$0xff]
        %v689 = vld [vmem:[%s570 + $0xcc] sm:$0xff]
        %v690 = vld [vmem:[%s570 + $0xdc] sm:$0xff]
        %v691 = vld [vmem:[%s570 + $0xe4] sm:$0xff]
        %v692 = vld [vmem:[%s570 + $0xf4] sm:$0xff]
        %v693 = vld [vmem:[%s570 + $0xfc] sm:$0xff]
        %v694 = vld [vmem:[%s570 + $0x10c] sm:$0xff]
        %v695 = vld [vmem:[%s570 + $0x114] sm:$0xff]
        %v696 = vld [vmem:[%s570 + $0x124] sm:$0xff]
        %v697 = vld [vmem:[%s570 + $0x12c] sm:$0xff]
        %v698 = vld [vmem:[%s570 + $0x13c] sm:$0xff]
        %v699 = vld [vmem:[%s570 + $0x144] sm:$0xff]
        %v700 = vld [vmem:[%s570 + $0x154] sm:$0xff]
        %v701 = vld [vmem:[%s570 + $0x15c] sm:$0xff]
        %v702 = vld [vmem:[%s570 + $0x16c] sm:$0xff]
        %v703 = vld [vmem:[%s570 + $0x174] sm:$0xff]
        %v704 = vld [vmem:[%s2 + $0x1] sm:$0x1]
        %v705 = vlaneseq
        %v706 = vshrl.u32 %v705, 7
        %v707 = vsub.s32 0, %v706
        %v708 = vrot.slane %v704, %v707
        %v709 = vmul.f32 %v672, %v708
        %v710 = vmul.f32 %v673, %v708
        %v711 = vmul.f32 %v674, %v708
        %v712 = vmul.f32 %v675, %v708
        %v713 = vmul.f32 %v676, %v708
        %v714 = vmul.f32 %v677, %v708
        %v715 = vmul.f32 %v678, %v708
        %v716 = vmul.f32 %v679, %v708
        %v717 = vmul.f32 %v680, %v708
        %v718 = vmul.f32 %v681, %v708
        %v719 = vmul.f32 %v682, %v708
        %v720 = vmul.f32 %v683, %v708
        %v721 = vmul.f32 %v684, %v708
        %v722 = vmul.f32 %v685, %v708
        %v723 = vmul.f32 %v686, %v708
        %v724 = vmul.f32 %v687, %v708
        %v725 = vmul.f32 %v688, %v708
        %v726 = vmul.f32 %v689, %v708
        %v727 = vmul.f32 %v690, %v708
        %v728 = vmul.f32 %v691, %v708
        %v729 = vmul.f32 %v692, %v708
        %v730 = vmul.f32 %v693, %v708
        %v731 = vmul.f32 %v694, %v708
        %v732 = vmul.f32 %v695, %v708
        %v733 = vmul.f32 %v696, %v708
        %v734 = vmul.f32 %v697, %v708
        %v735 = vmul.f32 %v698, %v708
        %v736 = vmul.f32 %v699, %v708
        %v737 = vmul.f32 %v700, %v708
        %v738 = vmul.f32 %v701, %v708
        %v739 = vmul.f32 %v702, %v708
        %v740 = vmul.f32 %v703, %v708
        %v741 = vadd.f32 %v640, %v709
        %v742 = vadd.f32 %v641, %v710
        %v743 = vadd.f32 %v642, %v711
        %v744 = vadd.f32 %v643, %v712
        %v745 = vadd.f32 %v644, %v713
        %v746 = vadd.f32 %v645, %v714
        %v747 = vadd.f32 %v646, %v715
        %v748 = vadd.f32 %v647, %v716
        %v749 = vadd.f32 %v648, %v717
        %v750 = vadd.f32 %v649, %v718
        %v751 = vadd.f32 %v650, %v719
        %v752 = vadd.f32 %v651, %v720
        %v753 = vadd.f32 %v652, %v721
        %v754 = vadd.f32 %v653, %v722
        %v755 = vadd.f32 %v654, %v723
        %v756 = vadd.f32 %v655, %v724
        %v757 = vadd.f32 %v656, %v725
        %v758 = vadd.f32 %v657, %v726
        %v759 = vadd.f32 %v658, %v727
        %v760 = vadd.f32 %v659, %v728
        %v761 = vadd.f32 %v660, %v729
        %v762 = vadd.f32 %v661, %v730
        %v763 = vadd.f32 %v662, %v731
        %v764 = vadd.f32 %v663, %v732
        %v765 = vadd.f32 %v664, %v733
        %v766 = vadd.f32 %v665, %v734
        %v767 = vadd.f32 %v666, %v735
        %v768 = vadd.f32 %v667, %v736
        %v769 = vadd.f32 %v668, %v737
        %v770 = vadd.f32 %v669, %v738
        %v771 = vadd.f32 %v670, %v739
        %v772 = vadd.f32 %v671, %v740
        %v773 = vld [vmem:[%s570 + $0x6] sm:$0xff]
        %v774 = vld [vmem:[%s570 + $0xe] sm:$0xff]
        %v775 = vld [vmem:[%s570 + $0x1e] sm:$0xff]
        %v776 = vld [vmem:[%s570 + $0x26] sm:$0xff]
        %v777 = vld [vmem:[%s570 + $0x36] sm:$0xff]
        %v778 = vld [vmem:[%s570 + $0x3e] sm:$0xff]
        %v779 = vld [vmem:[%s570 + $0x4e] sm:$0xff]
        %v780 = vld [vmem:[%s570 + $0x56] sm:$0xff]
        %v781 = vld [vmem:[%s570 + $0x66] sm:$0xff]
        %v782 = vld [vmem:[%s570 + $0x6e] sm:$0xff]
        %v783 = vld [vmem:[%s570 + $0x7e] sm:$0xff]
        %v784 = vld [vmem:[%s570 + $0x86] sm:$0xff]
        %v785 = vld [vmem:[%s570 + $0x96] sm:$0xff]
        %v786 = vld [vmem:[%s570 + $0x9e] sm:$0xff]
        %v787 = vld [vmem:[%s570 + $0xae] sm:$0xff]
        %v788 = vld [vmem:[%s570 + $0xb6] sm:$0xff]
        %v789 = vld [vmem:[%s570 + $0xc6] sm:$0xff]
        %v790 = vld [vmem:[%s570 + $0xce] sm:$0xff]
        %v791 = vld [vmem:[%s570 + $0xde] sm:$0xff]
        %v792 = vld [vmem:[%s570 + $0xe6] sm:$0xff]
        %v793 = vld [vmem:[%s570 + $0xf6] sm:$0xff]
        %v794 = vld [vmem:[%s570 + $0xfe] sm:$0xff]
        %v795 = vld [vmem:[%s570 + $0x10e] sm:$0xff]
        %v796 = vld [vmem:[%s570 + $0x116] sm:$0xff]
        %v797 = vld [vmem:[%s570 + $0x126] sm:$0xff]
        %v798 = vld [vmem:[%s570 + $0x12e] sm:$0xff]
        %v799 = vld [vmem:[%s570 + $0x13e] sm:$0xff]
        %v800 = vld [vmem:[%s570 + $0x146] sm:$0xff]
        %v801 = vld [vmem:[%s570 + $0x156] sm:$0xff]
        %v802 = vld [vmem:[%s570 + $0x15e] sm:$0xff]
        %v803 = vld [vmem:[%s570 + $0x16e] sm:$0xff]
        %v804 = vld [vmem:[%s570 + $0x176] sm:$0xff]
        %v805 = vld [vmem:[%s2 + $0x2] sm:$0x1]
        %v806 = vlaneseq
        %v807 = vshrl.u32 %v806, 7
        %v808 = vsub.s32 0, %v807
        %v809 = vrot.slane %v805, %v808
        %v810 = vmul.f32 %v773, %v809
        %v811 = vmul.f32 %v774, %v809
        %v812 = vmul.f32 %v775, %v809
        %v813 = vmul.f32 %v776, %v809
        %v814 = vmul.f32 %v777, %v809
        %v815 = vmul.f32 %v778, %v809
        %v816 = vmul.f32 %v779, %v809
        %v817 = vmul.f32 %v780, %v809
        %v818 = vmul.f32 %v781, %v809
        %v819 = vmul.f32 %v782, %v809
        %v820 = vmul.f32 %v783, %v809
        %v821 = vmul.f32 %v784, %v809
        %v822 = vmul.f32 %v785, %v809
        %v823 = vmul.f32 %v786, %v809
        %v824 = vmul.f32 %v787, %v809
        %v825 = vmul.f32 %v788, %v809
        %v826 = vmul.f32 %v789, %v809
        %v827 = vmul.f32 %v790, %v809
        %v828 = vmul.f32 %v791, %v809
        %v829 = vmul.f32 %v792, %v809
        %v830 = vmul.f32 %v793, %v809
        %v831 = vmul.f32 %v794, %v809
        %v832 = vmul.f32 %v795, %v809
        %v833 = vmul.f32 %v796, %v809
        %v834 = vmul.f32 %v797, %v809
        %v835 = vmul.f32 %v798, %v809
        %v836 = vmul.f32 %v799, %v809
        %v837 = vmul.f32 %v800, %v809
        %v838 = vmul.f32 %v801, %v809
        %v839 = vmul.f32 %v802, %v809
        %v840 = vmul.f32 %v803, %v809
        %v841 = vmul.f32 %v804, %v809
        %v842 = vadd.f32 %v741, %v810
        %v843 = vadd.f32 %v742, %v811
        %v844 = vadd.f32 %v743, %v812
        %v845 = vadd.f32 %v744, %v813
        %v846 = vadd.f32 %v745, %v814
        %v847 = vadd.f32 %v746, %v815
        %v848 = vadd.f32 %v747, %v816
        %v849 = vadd.f32 %v748, %v817
        %v850 = vadd.f32 %v749, %v818
        %v851 = vadd.f32 %v750, %v819
        %v852 = vadd.f32 %v751, %v820
        %v853 = vadd.f32 %v752, %v821
        %v854 = vadd.f32 %v753, %v822
        %v855 = vadd.f32 %v754, %v823
        %v856 = vadd.f32 %v755, %v824
        %v857 = vadd.f32 %v756, %v825
        %v858 = vadd.f32 %v757, %v826
        %v859 = vadd.f32 %v758, %v827
        %v860 = vadd.f32 %v759, %v828
        %v861 = vadd.f32 %v760, %v829
        %v862 = vadd.f32 %v761, %v830
        %v863 = vadd.f32 %v762, %v831
        %v864 = vadd.f32 %v763, %v832
        %v865 = vadd.f32 %v764, %v833
        %v866 = vadd.f32 %v765, %v834
        %v867 = vadd.f32 %v766, %v835
        %v868 = vadd.f32 %v767, %v836
        %v869 = vadd.f32 %v768, %v837
        %v870 = vadd.f32 %v769, %v838
        %v871 = vadd.f32 %v770, %v839
        %v872 = vadd.f32 %v771, %v840
        %v873 = vadd.f32 %v772, %v841
        %v874 = vld [vmem:[%s429 + $0x2] sm:$0xff]
        %v875 = vld [vmem:[%s429 + $0xa] sm:$0xff]
        %v876 = vld [vmem:[%s429 + $0x1a] sm:$0xff]
        %v877 = vld [vmem:[%s429 + $0x22] sm:$0xff]
        %v878 = vld [vmem:[%s429 + $0x32] sm:$0xff]
        %v879 = vld [vmem:[%s429 + $0x3a] sm:$0xff]
        %v880 = vld [vmem:[%s429 + $0x4a] sm:$0xff]
        %v881 = vld [vmem:[%s429 + $0x52] sm:$0xff]
        %v882 = vld [vmem:[%s429 + $0x62] sm:$0xff]
        %v883 = vld [vmem:[%s429 + $0x6a] sm:$0xff]
        %v884 = vld [vmem:[%s429 + $0x7a] sm:$0xff]
        %v885 = vld [vmem:[%s429 + $0x82] sm:$0xff]
        %v886 = vld [vmem:[%s429 + $0x92] sm:$0xff]
        %v887 = vld [vmem:[%s429 + $0x9a] sm:$0xff]
        %v888 = vld [vmem:[%s429 + $0xaa] sm:$0xff]
        %v889 = vld [vmem:[%s429 + $0xb2] sm:$0xff]
        %v890 = vld [vmem:[%s429 + $0xc2] sm:$0xff]
        %v891 = vld [vmem:[%s429 + $0xca] sm:$0xff]
        %v892 = vld [vmem:[%s429 + $0xda] sm:$0xff]
        %v893 = vld [vmem:[%s429 + $0xe2] sm:$0xff]
        %v894 = vld [vmem:[%s429 + $0xf2] sm:$0xff]
        %v895 = vld [vmem:[%s429 + $0xfa] sm:$0xff]
        %v896 = vld [vmem:[%s429 + $0x10a] sm:$0xff]
        %v897 = vld [vmem:[%s429 + $0x112] sm:$0xff]
        %v898 = vld [vmem:[%s429 + $0x122] sm:$0xff]
        %v899 = vld [vmem:[%s429 + $0x12a] sm:$0xff]
        %v900 = vld [vmem:[%s429 + $0x13a] sm:$0xff]
        %v901 = vld [vmem:[%s429 + $0x142] sm:$0xff]
        %v902 = vld [vmem:[%s429 + $0x152] sm:$0xff]
        %v903 = vld [vmem:[%s429 + $0x15a] sm:$0xff]
        %v904 = vld [vmem:[%s429 + $0x16a] sm:$0xff]
        %v905 = vld [vmem:[%s429 + $0x172] sm:$0xff]
        %v906 = vld [vmem:[%s2 + $0x3] sm:$0x1]
        %v907 = vlaneseq
        %v908 = vshrl.u32 %v907, 7
        %v909 = vsub.s32 0, %v908
        %v910 = vrot.slane %v906, %v909
        %v911 = vmul.f32 %v874, %v910
        %v912 = vmul.f32 %v875, %v910
        %v913 = vmul.f32 %v876, %v910
        %v914 = vmul.f32 %v877, %v910
        %v915 = vmul.f32 %v878, %v910
        %v916 = vmul.f32 %v879, %v910
        %v917 = vmul.f32 %v880, %v910
        %v918 = vmul.f32 %v881, %v910
        %v919 = vmul.f32 %v882, %v910
        %v920 = vmul.f32 %v883, %v910
        %v921 = vmul.f32 %v884, %v910
        %v922 = vmul.f32 %v885, %v910
        %v923 = vmul.f32 %v886, %v910
        %v924 = vmul.f32 %v887, %v910
        %v925 = vmul.f32 %v888, %v910
        %v926 = vmul.f32 %v889, %v910
        %v927 = vmul.f32 %v890, %v910
        %v928 = vmul.f32 %v891, %v910
        %v929 = vmul.f32 %v892, %v910
        %v930 = vmul.f32 %v893, %v910
        %v931 = vmul.f32 %v894, %v910
        %v932 = vmul.f32 %v895, %v910
        %v933 = vmul.f32 %v896, %v910
        %v934 = vmul.f32 %v897, %v910
        %v935 = vmul.f32 %v898, %v910
        %v936 = vmul.f32 %v899, %v910
        %v937 = vmul.f32 %v900, %v910
        %v938 = vmul.f32 %v901, %v910
        %v939 = vmul.f32 %v902, %v910
        %v940 = vmul.f32 %v903, %v910
        %v941 = vmul.f32 %v904, %v910
        %v942 = vmul.f32 %v905, %v910
        %v943 = vadd.f32 %v842, %v911
        %v944 = vadd.f32 %v843, %v912
        %v945 = vadd.f32 %v844, %v913
        %v946 = vadd.f32 %v845, %v914
        %v947 = vadd.f32 %v846, %v915
        %v948 = vadd.f32 %v847, %v916
        %v949 = vadd.f32 %v848, %v917
        %v950 = vadd.f32 %v849, %v918
        %v951 = vadd.f32 %v850, %v919
        %v952 = vadd.f32 %v851, %v920
        %v953 = vadd.f32 %v852, %v921
        %v954 = vadd.f32 %v853, %v922
        %v955 = vadd.f32 %v854, %v923
        %v956 = vadd.f32 %v855, %v924
        %v957 = vadd.f32 %v856, %v925
        %v958 = vadd.f32 %v857, %v926
        %v959 = vadd.f32 %v858, %v927
        %v960 = vadd.f32 %v859, %v928
        %v961 = vadd.f32 %v860, %v929
        %v962 = vadd.f32 %v861, %v930
        %v963 = vadd.f32 %v862, %v931
        %v964 = vadd.f32 %v863, %v932
        %v965 = vadd.f32 %v864, %v933
        %v966 = vadd.f32 %v865, %v934
        %v967 = vadd.f32 %v866, %v935
        %v968 = vadd.f32 %v867, %v936
        %v969 = vadd.f32 %v868, %v937
        %v970 = vadd.f32 %v869, %v938
        %v971 = vadd.f32 %v870, %v939
        %v972 = vadd.f32 %v871, %v940
        %v973 = vadd.f32 %v872, %v941
        %v974 = vadd.f32 %v873, %v942
        %v975 = vld [vmem:[%s429 + $0x4] sm:$0xff]
        %v976 = vld [vmem:[%s429 + $0xc] sm:$0xff]
        %v977 = vld [vmem:[%s429 + $0x1c] sm:$0xff]
        %v978 = vld [vmem:[%s429 + $0x24] sm:$0xff]
        %v979 = vld [vmem:[%s429 + $0x34] sm:$0xff]
        %v980 = vld [vmem:[%s429 + $0x3c] sm:$0xff]
        %v981 = vld [vmem:[%s429 + $0x4c] sm:$0xff]
        %v982 = vld [vmem:[%s429 + $0x54] sm:$0xff]
        %v983 = vld [vmem:[%s429 + $0x64] sm:$0xff]
        %v984 = vld [vmem:[%s429 + $0x6c] sm:$0xff]
        %v985 = vld [vmem:[%s429 + $0x7c] sm:$0xff]
        %v986 = vld [vmem:[%s429 + $0x84] sm:$0xff]
        %v987 = vld [vmem:[%s429 + $0x94] sm:$0xff]
        %v988 = vld [vmem:[%s429 + $0x9c] sm:$0xff]
        %v989 = vld [vmem:[%s429 + $0xac] sm:$0xff]
        %v990 = vld [vmem:[%s429 + $0xb4] sm:$0xff]
        %v991 = vld [vmem:[%s429 + $0xc4] sm:$0xff]
        %v992 = vld [vmem:[%s429 + $0xcc] sm:$0xff]
        %v993 = vld [vmem:[%s429 + $0xdc] sm:$0xff]
        %v994 = vld [vmem:[%s429 + $0xe4] sm:$0xff]
        %v995 = vld [vmem:[%s429 + $0xf4] sm:$0xff]
        %v996 = vld [vmem:[%s429 + $0xfc] sm:$0xff]
        %v997 = vld [vmem:[%s429 + $0x10c] sm:$0xff]
        %v998 = vld [vmem:[%s429 + $0x114] sm:$0xff]
        %v999 = vld [vmem:[%s429 + $0x124] sm:$0xff]
        %v1000 = vld [vmem:[%s429 + $0x12c] sm:$0xff]
        %v1001 = vld [vmem:[%s429 + $0x13c] sm:$0xff]
        %v1002 = vld [vmem:[%s429 + $0x144] sm:$0xff]
        %v1003 = vld [vmem:[%s429 + $0x154] sm:$0xff]
        %v1004 = vld [vmem:[%s429 + $0x15c] sm:$0xff]
        %v1005 = vld [vmem:[%s429 + $0x16c] sm:$0xff]
        %v1006 = vld [vmem:[%s429 + $0x174] sm:$0xff]
        %v1007 = vld [vmem:[%s2 + $0x4] sm:$0x1]
        %v1008 = vlaneseq
        %v1009 = vshrl.u32 %v1008, 7
        %v1010 = vsub.s32 0, %v1009
        %v1011 = vrot.slane %v1007, %v1010
        %v1012 = vmul.f32 %v975, %v1011
        %v1013 = vmul.f32 %v976, %v1011
        %v1014 = vmul.f32 %v977, %v1011
        %v1015 = vmul.f32 %v978, %v1011
        %v1016 = vmul.f32 %v979, %v1011
        %v1017 = vmul.f32 %v980, %v1011
        %v1018 = vmul.f32 %v981, %v1011
        %v1019 = vmul.f32 %v982, %v1011
        %v1020 = vmul.f32 %v983, %v1011
        %v1021 = vmul.f32 %v984, %v1011
        %v1022 = vmul.f32 %v985, %v1011
        %v1023 = vmul.f32 %v986, %v1011
        %v1024 = vmul.f32 %v987, %v1011
        %v1025 = vmul.f32 %v988, %v1011
        %v1026 = vmul.f32 %v989, %v1011
        %v1027 = vmul.f32 %v990, %v1011
        %v1028 = vmul.f32 %v991, %v1011
        %v1029 = vmul.f32 %v992, %v1011
        %v1030 = vmul.f32 %v993, %v1011
        %v1031 = vmul.f32 %v994, %v1011
        %v1032 = vmul.f32 %v995, %v1011
        %v1033 = vmul.f32 %v996, %v1011
        %v1034 = vmul.f32 %v997, %v1011
        %v1035 = vmul.f32 %v998, %v1011
        %v1036 = vmul.f32 %v999, %v1011
        %v1037 = vmul.f32 %v1000, %v1011
        %v1038 = vmul.f32 %v1001, %v1011
        %v1039 = vmul.f32 %v1002, %v1011
        %v1040 = vmul.f32 %v1003, %v1011
        %v1041 = vmul.f32 %v1004, %v1011
        %v1042 = vmul.f32 %v1005, %v1011
        %v1043 = vmul.f32 %v1006, %v1011
        %v1044 = vadd.f32 %v943, %v1012
        %v1045 = vadd.f32 %v944, %v1013
        %v1046 = vadd.f32 %v945, %v1014
        %v1047 = vadd.f32 %v946, %v1015
        %v1048 = vadd.f32 %v947, %v1016
        %v1049 = vadd.f32 %v948, %v1017
        %v1050 = vadd.f32 %v949, %v1018
        %v1051 = vadd.f32 %v950, %v1019
        %v1052 = vadd.f32 %v951, %v1020
        %v1053 = vadd.f32 %v952, %v1021
        %v1054 = vadd.f32 %v953, %v1022
        %v1055 = vadd.f32 %v954, %v1023
        %v1056 = vadd.f32 %v955, %v1024
        %v1057 = vadd.f32 %v956, %v1025
        %v1058 = vadd.f32 %v957, %v1026
        %v1059 = vadd.f32 %v958, %v1027
        %v1060 = vadd.f32 %v959, %v1028
        %v1061 = vadd.f32 %v960, %v1029
        %v1062 = vadd.f32 %v961, %v1030
        %v1063 = vadd.f32 %v962, %v1031
        %v1064 = vadd.f32 %v963, %v1032
        %v1065 = vadd.f32 %v964, %v1033
        %v1066 = vadd.f32 %v965, %v1034
        %v1067 = vadd.f32 %v966, %v1035
        %v1068 = vadd.f32 %v967, %v1036
        %v1069 = vadd.f32 %v968, %v1037
        %v1070 = vadd.f32 %v969, %v1038
        %v1071 = vadd.f32 %v970, %v1039
        %v1072 = vadd.f32 %v971, %v1040
        %v1073 = vadd.f32 %v972, %v1041
        %v1074 = vadd.f32 %v973, %v1042
        %v1075 = vadd.f32 %v974, %v1043
        %v1076 = vld [vmem:[%s429 + $0x6] sm:$0xff]
        %v1077 = vld [vmem:[%s429 + $0xe] sm:$0xff]
        %v1078 = vld [vmem:[%s429 + $0x1e] sm:$0xff]
        %v1079 = vld [vmem:[%s429 + $0x26] sm:$0xff]
        %v1080 = vld [vmem:[%s429 + $0x36] sm:$0xff]
        %v1081 = vld [vmem:[%s429 + $0x3e] sm:$0xff]
        %v1082 = vld [vmem:[%s429 + $0x4e] sm:$0xff]
        %v1083 = vld [vmem:[%s429 + $0x56] sm:$0xff]
        %v1084 = vld [vmem:[%s429 + $0x66] sm:$0xff]
        %v1085 = vld [vmem:[%s429 + $0x6e] sm:$0xff]
        %v1086 = vld [vmem:[%s429 + $0x7e] sm:$0xff]
        %v1087 = vld [vmem:[%s429 + $0x86] sm:$0xff]
        %v1088 = vld [vmem:[%s429 + $0x96] sm:$0xff]
        %v1089 = vld [vmem:[%s429 + $0x9e] sm:$0xff]
        %v1090 = vld [vmem:[%s429 + $0xae] sm:$0xff]
        %v1091 = vld [vmem:[%s429 + $0xb6] sm:$0xff]
        %v1092 = vld [vmem:[%s429 + $0xc6] sm:$0xff]
        %v1093 = vld [vmem:[%s429 + $0xce] sm:$0xff]
        %v1094 = vld [vmem:[%s429 + $0xde] sm:$0xff]
        %v1095 = vld [vmem:[%s429 + $0xe6] sm:$0xff]
        %v1096 = vld [vmem:[%s429 + $0xf6] sm:$0xff]
        %v1097 = vld [vmem:[%s429 + $0xfe] sm:$0xff]
        %v1098 = vld [vmem:[%s429 + $0x10e] sm:$0xff]
        %v1099 = vld [vmem:[%s429 + $0x116] sm:$0xff]
        %v1100 = vld [vmem:[%s429 + $0x126] sm:$0xff]
        %v1101 = vld [vmem:[%s429 + $0x12e] sm:$0xff]
        %v1102 = vld [vmem:[%s429 + $0x13e] sm:$0xff]
        %v1103 = vld [vmem:[%s429 + $0x146] sm:$0xff]
        %v1104 = vld [vmem:[%s429 + $0x156] sm:$0xff]
        %v1105 = vld [vmem:[%s429 + $0x15e] sm:$0xff]
        %v1106 = vld [vmem:[%s429 + $0x16e] sm:$0xff]
        %v1107 = vld [vmem:[%s429 + $0x176] sm:$0xff]
        %v1108 = vld [vmem:[%s2 + $0x5] sm:$0x1]
        %v1109 = vlaneseq
        %v1110 = vshrl.u32 %v1109, 7
        %v1111 = vsub.s32 0, %v1110
        %v1112 = vrot.slane %v1108, %v1111
        %v1113 = vmul.f32 %v1076, %v1112
        %v1114 = vmul.f32 %v1077, %v1112
        %v1115 = vmul.f32 %v1078, %v1112
        %v1116 = vmul.f32 %v1079, %v1112
        %v1117 = vmul.f32 %v1080, %v1112
        %v1118 = vmul.f32 %v1081, %v1112
        %v1119 = vmul.f32 %v1082, %v1112
        %v1120 = vmul.f32 %v1083, %v1112
        %v1121 = vmul.f32 %v1084, %v1112
        %v1122 = vmul.f32 %v1085, %v1112
        %v1123 = vmul.f32 %v1086, %v1112
        %v1124 = vmul.f32 %v1087, %v1112
        %v1125 = vmul.f32 %v1088, %v1112
        %v1126 = vmul.f32 %v1089, %v1112
        %v1127 = vmul.f32 %v1090, %v1112
        %v1128 = vmul.f32 %v1091, %v1112
        %v1129 = vmul.f32 %v1092, %v1112
        %v1130 = vmul.f32 %v1093, %v1112
        %v1131 = vmul.f32 %v1094, %v1112
        %v1132 = vmul.f32 %v1095, %v1112
        %v1133 = vmul.f32 %v1096, %v1112
        %v1134 = vmul.f32 %v1097, %v1112
        %v1135 = vmul.f32 %v1098, %v1112
        %v1136 = vmul.f32 %v1099, %v1112
        %v1137 = vmul.f32 %v1100, %v1112
        %v1138 = vmul.f32 %v1101, %v1112
        %v1139 = vmul.f32 %v1102, %v1112
        %v1140 = vmul.f32 %v1103, %v1112
        %v1141 = vmul.f32 %v1104, %v1112
        %v1142 = vmul.f32 %v1105, %v1112
        %v1143 = vmul.f32 %v1106, %v1112
        %v1144 = vmul.f32 %v1107, %v1112
        %v1145 = vadd.f32 %v1044, %v1113
        %v1146 = vadd.f32 %v1045, %v1114
        %v1147 = vadd.f32 %v1046, %v1115
        %v1148 = vadd.f32 %v1047, %v1116
        %v1149 = vadd.f32 %v1048, %v1117
        %v1150 = vadd.f32 %v1049, %v1118
        %v1151 = vadd.f32 %v1050, %v1119
        %v1152 = vadd.f32 %v1051, %v1120
        %v1153 = vadd.f32 %v1052, %v1121
        %v1154 = vadd.f32 %v1053, %v1122
        %v1155 = vadd.f32 %v1054, %v1123
        %v1156 = vadd.f32 %v1055, %v1124
        %v1157 = vadd.f32 %v1056, %v1125
        %v1158 = vadd.f32 %v1057, %v1126
        %v1159 = vadd.f32 %v1058, %v1127
        %v1160 = vadd.f32 %v1059, %v1128
        %v1161 = vadd.f32 %v1060, %v1129
        %v1162 = vadd.f32 %v1061, %v1130
        %v1163 = vadd.f32 %v1062, %v1131
        %v1164 = vadd.f32 %v1063, %v1132
        %v1165 = vadd.f32 %v1064, %v1133
        %v1166 = vadd.f32 %v1065, %v1134
        %v1167 = vadd.f32 %v1066, %v1135
        %v1168 = vadd.f32 %v1067, %v1136
        %v1169 = vadd.f32 %v1068, %v1137
        %v1170 = vadd.f32 %v1069, %v1138
        %v1171 = vadd.f32 %v1070, %v1139
        %v1172 = vadd.f32 %v1071, %v1140
        %v1173 = vadd.f32 %v1072, %v1141
        %v1174 = vadd.f32 %v1073, %v1142
        %v1175 = vadd.f32 %v1074, %v1143
        %v1176 = vadd.f32 %v1075, %v1144
        %s1177 = scalar_lea.vmem [#allocation2], 144
        %v1178 = vld [vmem:[%s1177 + $0x2] sm:$0xff]
        %v1179 = vld [vmem:[%s1177 + $0xa] sm:$0xff]
        %v1180 = vld [vmem:[%s1177 + $0x1a] sm:$0xff]
        %v1181 = vld [vmem:[%s1177 + $0x22] sm:$0xff]
        %v1182 = vld [vmem:[%s1177 + $0x32] sm:$0xff]
        %v1183 = vld [vmem:[%s1177 + $0x3a] sm:$0xff]
        %v1184 = vld [vmem:[%s1177 + $0x4a] sm:$0xff]
        %v1185 = vld [vmem:[%s1177 + $0x52] sm:$0xff]
        %v1186 = vld [vmem:[%s1177 + $0x62] sm:$0xff]
        %v1187 = vld [vmem:[%s1177 + $0x6a] sm:$0xff]
        %v1188 = vld [vmem:[%s1177 + $0x7a] sm:$0xff]
        %v1189 = vld [vmem:[%s1177 + $0x82] sm:$0xff]
        %v1190 = vld [vmem:[%s1177 + $0x92] sm:$0xff]
        %v1191 = vld [vmem:[%s1177 + $0x9a] sm:$0xff]
        %v1192 = vld [vmem:[%s1177 + $0xaa] sm:$0xff]
        %v1193 = vld [vmem:[%s1177 + $0xb2] sm:$0xff]
        %v1194 = vld [vmem:[%s1177 + $0xc2] sm:$0xff]
        %v1195 = vld [vmem:[%s1177 + $0xca] sm:$0xff]
        %v1196 = vld [vmem:[%s1177 + $0xda] sm:$0xff]
        %v1197 = vld [vmem:[%s1177 + $0xe2] sm:$0xff]
        %v1198 = vld [vmem:[%s1177 + $0xf2] sm:$0xff]
        %v1199 = vld [vmem:[%s1177 + $0xfa] sm:$0xff]
        %v1200 = vld [vmem:[%s1177 + $0x10a] sm:$0xff]
        %v1201 = vld [vmem:[%s1177 + $0x112] sm:$0xff]
        %v1202 = vld [vmem:[%s1177 + $0x122] sm:$0xff]
        %v1203 = vld [vmem:[%s1177 + $0x12a] sm:$0xff]
        %v1204 = vld [vmem:[%s1177 + $0x13a] sm:$0xff]
        %v1205 = vld [vmem:[%s1177 + $0x142] sm:$0xff]
        %v1206 = vld [vmem:[%s1177 + $0x152] sm:$0xff]
        %v1207 = vld [vmem:[%s1177 + $0x15a] sm:$0xff]
        %v1208 = vld [vmem:[%s1177 + $0x16a] sm:$0xff]
        %v1209 = vld [vmem:[%s1177 + $0x172] sm:$0xff]
        %v1210 = vld [vmem:[%s2 + $0x6] sm:$0x1]
        %v1211 = vlaneseq
        %v1212 = vshrl.u32 %v1211, 7
        %v1213 = vsub.s32 0, %v1212
        %v1214 = vrot.slane %v1210, %v1213
        %v1215 = vmul.f32 %v1178, %v1214
        %v1216 = vmul.f32 %v1179, %v1214
        %v1217 = vmul.f32 %v1180, %v1214
        %v1218 = vmul.f32 %v1181, %v1214
        %v1219 = vmul.f32 %v1182, %v1214
        %v1220 = vmul.f32 %v1183, %v1214
        %v1221 = vmul.f32 %v1184, %v1214
        %v1222 = vmul.f32 %v1185, %v1214
        %v1223 = vmul.f32 %v1186, %v1214
        %v1224 = vmul.f32 %v1187, %v1214
        %v1225 = vmul.f32 %v1188, %v1214
        %v1226 = vmul.f32 %v1189, %v1214
        %v1227 = vmul.f32 %v1190, %v1214
        %v1228 = vmul.f32 %v1191, %v1214
        %v1229 = vmul.f32 %v1192, %v1214
        %v1230 = vmul.f32 %v1193, %v1214
        %v1231 = vmul.f32 %v1194, %v1214
        %v1232 = vmul.f32 %v1195, %v1214
        %v1233 = vmul.f32 %v1196, %v1214
        %v1234 = vmul.f32 %v1197, %v1214
        %v1235 = vmul.f32 %v1198, %v1214
        %v1236 = vmul.f32 %v1199, %v1214
        %v1237 = vmul.f32 %v1200, %v1214
        %v1238 = vmul.f32 %v1201, %v1214
        %v1239 = vmul.f32 %v1202, %v1214
        %v1240 = vmul.f32 %v1203, %v1214
        %v1241 = vmul.f32 %v1204, %v1214
        %v1242 = vmul.f32 %v1205, %v1214
        %v1243 = vmul.f32 %v1206, %v1214
        %v1244 = vmul.f32 %v1207, %v1214
        %v1245 = vmul.f32 %v1208, %v1214
        %v1246 = vmul.f32 %v1209, %v1214
        %v1247 = vadd.f32 %v1145, %v1215
        %v1248 = vadd.f32 %v1146, %v1216
        %v1249 = vadd.f32 %v1147, %v1217
        %v1250 = vadd.f32 %v1148, %v1218
        %v1251 = vadd.f32 %v1149, %v1219
        %v1252 = vadd.f32 %v1150, %v1220
        %v1253 = vadd.f32 %v1151, %v1221
        %v1254 = vadd.f32 %v1152, %v1222
        %v1255 = vadd.f32 %v1153, %v1223
        %v1256 = vadd.f32 %v1154, %v1224
        %v1257 = vadd.f32 %v1155, %v1225
        %v1258 = vadd.f32 %v1156, %v1226
        %v1259 = vadd.f32 %v1157, %v1227
        %v1260 = vadd.f32 %v1158, %v1228
        %v1261 = vadd.f32 %v1159, %v1229
        %v1262 = vadd.f32 %v1160, %v1230
        %v1263 = vadd.f32 %v1161, %v1231
        %v1264 = vadd.f32 %v1162, %v1232
        %v1265 = vadd.f32 %v1163, %v1233
        %v1266 = vadd.f32 %v1164, %v1234
        %v1267 = vadd.f32 %v1165, %v1235
        %v1268 = vadd.f32 %v1166, %v1236
        %v1269 = vadd.f32 %v1167, %v1237
        %v1270 = vadd.f32 %v1168, %v1238
        %v1271 = vadd.f32 %v1169, %v1239
        %v1272 = vadd.f32 %v1170, %v1240
        %v1273 = vadd.f32 %v1171, %v1241
        %v1274 = vadd.f32 %v1172, %v1242
        %v1275 = vadd.f32 %v1173, %v1243
        %v1276 = vadd.f32 %v1174, %v1244
        %v1277 = vadd.f32 %v1175, %v1245
        %v1278 = vadd.f32 %v1176, %v1246
        %v1279 = vld [vmem:[%s1177 + $0x4] sm:$0xff]
        %v1280 = vld [vmem:[%s1177 + $0xc] sm:$0xff]
        %v1281 = vld [vmem:[%s1177 + $0x1c] sm:$0xff]
        %v1282 = vld [vmem:[%s1177 + $0x24] sm:$0xff]
        %v1283 = vld [vmem:[%s1177 + $0x34] sm:$0xff]
        %v1284 = vld [vmem:[%s1177 + $0x3c] sm:$0xff]
        %v1285 = vld [vmem:[%s1177 + $0x4c] sm:$0xff]
        %v1286 = vld [vmem:[%s1177 + $0x54] sm:$0xff]
        %v1287 = vld [vmem:[%s1177 + $0x64] sm:$0xff]
        %v1288 = vld [vmem:[%s1177 + $0x6c] sm:$0xff]
        %v1289 = vld [vmem:[%s1177 + $0x7c] sm:$0xff]
        %v1290 = vld [vmem:[%s1177 + $0x84] sm:$0xff]
        %v1291 = vld [vmem:[%s1177 + $0x94] sm:$0xff]
        %v1292 = vld [vmem:[%s1177 + $0x9c] sm:$0xff]
        %v1293 = vld [vmem:[%s1177 + $0xac] sm:$0xff]
        %v1294 = vld [vmem:[%s1177 + $0xb4] sm:$0xff]
        %v1295 = vld [vmem:[%s1177 + $0xc4] sm:$0xff]
        %v1296 = vld [vmem:[%s1177 + $0xcc] sm:$0xff]
        %v1297 = vld [vmem:[%s1177 + $0xdc] sm:$0xff]
        %v1298 = vld [vmem:[%s1177 + $0xe4] sm:$0xff]
        %v1299 = vld [vmem:[%s1177 + $0xf4] sm:$0xff]
        %v1300 = vld [vmem:[%s1177 + $0xfc] sm:$0xff]
        %v1301 = vld [vmem:[%s1177 + $0x10c] sm:$0xff]
        %v1302 = vld [vmem:[%s1177 + $0x114] sm:$0xff]
        %v1303 = vld [vmem:[%s1177 + $0x124] sm:$0xff]
        %v1304 = vld [vmem:[%s1177 + $0x12c] sm:$0xff]
        %v1305 = vld [vmem:[%s1177 + $0x13c] sm:$0xff]
        %v1306 = vld [vmem:[%s1177 + $0x144] sm:$0xff]
        %v1307 = vld [vmem:[%s1177 + $0x154] sm:$0xff]
        %v1308 = vld [vmem:[%s1177 + $0x15c] sm:$0xff]
        %v1309 = vld [vmem:[%s1177 + $0x16c] sm:$0xff]
        %v1310 = vld [vmem:[%s1177 + $0x174] sm:$0xff]
        %v1311 = vld [vmem:[%s2 + $0x7] sm:$0x1]
        %v1312 = vlaneseq
        %v1313 = vshrl.u32 %v1312, 7
        %v1314 = vsub.s32 0, %v1313
        %v1315 = vrot.slane %v1311, %v1314
        %v1316 = vmul.f32 %v1279, %v1315
        %v1317 = vmul.f32 %v1280, %v1315
        %v1318 = vmul.f32 %v1281, %v1315
        %v1319 = vmul.f32 %v1282, %v1315
        %v1320 = vmul.f32 %v1283, %v1315
        %v1321 = vmul.f32 %v1284, %v1315
        %v1322 = vmul.f32 %v1285, %v1315
        %v1323 = vmul.f32 %v1286, %v1315
        %v1324 = vmul.f32 %v1287, %v1315
        %v1325 = vmul.f32 %v1288, %v1315
        %v1326 = vmul.f32 %v1289, %v1315
        %v1327 = vmul.f32 %v1290, %v1315
        %v1328 = vmul.f32 %v1291, %v1315
        %v1329 = vmul.f32 %v1292, %v1315
        %v1330 = vmul.f32 %v1293, %v1315
        %v1331 = vmul.f32 %v1294, %v1315
        %v1332 = vmul.f32 %v1295, %v1315
        %v1333 = vmul.f32 %v1296, %v1315
        %v1334 = vmul.f32 %v1297, %v1315
        %v1335 = vmul.f32 %v1298, %v1315
        %v1336 = vmul.f32 %v1299, %v1315
        %v1337 = vmul.f32 %v1300, %v1315
        %v1338 = vmul.f32 %v1301, %v1315
        %v1339 = vmul.f32 %v1302, %v1315
        %v1340 = vmul.f32 %v1303, %v1315
        %v1341 = vmul.f32 %v1304, %v1315
        %v1342 = vmul.f32 %v1305, %v1315
        %v1343 = vmul.f32 %v1306, %v1315
        %v1344 = vmul.f32 %v1307, %v1315
        %v1345 = vmul.f32 %v1308, %v1315
        %v1346 = vmul.f32 %v1309, %v1315
        %v1347 = vmul.f32 %v1310, %v1315
        %v1348 = vadd.f32 %v1247, %v1316
        %v1349 = vadd.f32 %v1248, %v1317
        %v1350 = vadd.f32 %v1249, %v1318
        %v1351 = vadd.f32 %v1250, %v1319
        %v1352 = vadd.f32 %v1251, %v1320
        %v1353 = vadd.f32 %v1252, %v1321
        %v1354 = vadd.f32 %v1253, %v1322
        %v1355 = vadd.f32 %v1254, %v1323
        %v1356 = vadd.f32 %v1255, %v1324
        %v1357 = vadd.f32 %v1256, %v1325
        %v1358 = vadd.f32 %v1257, %v1326
        %v1359 = vadd.f32 %v1258, %v1327
        %v1360 = vadd.f32 %v1259, %v1328
        %v1361 = vadd.f32 %v1260, %v1329
        %v1362 = vadd.f32 %v1261, %v1330
        %v1363 = vadd.f32 %v1262, %v1331
        %v1364 = vadd.f32 %v1263, %v1332
        %v1365 = vadd.f32 %v1264, %v1333
        %v1366 = vadd.f32 %v1265, %v1334
        %v1367 = vadd.f32 %v1266, %v1335
        %v1368 = vadd.f32 %v1267, %v1336
        %v1369 = vadd.f32 %v1268, %v1337
        %v1370 = vadd.f32 %v1269, %v1338
        %v1371 = vadd.f32 %v1270, %v1339
        %v1372 = vadd.f32 %v1271, %v1340
        %v1373 = vadd.f32 %v1272, %v1341
        %v1374 = vadd.f32 %v1273, %v1342
        %v1375 = vadd.f32 %v1274, %v1343
        %v1376 = vadd.f32 %v1275, %v1344
        %v1377 = vadd.f32 %v1276, %v1345
        %v1378 = vadd.f32 %v1277, %v1346
        %v1379 = vadd.f32 %v1278, %v1347
        %v1380 = vld [vmem:[%s1177 + $0x6] sm:$0xff]
        %v1381 = vld [vmem:[%s1177 + $0xe] sm:$0xff]
        %v1382 = vld [vmem:[%s1177 + $0x1e] sm:$0xff]
        %v1383 = vld [vmem:[%s1177 + $0x26] sm:$0xff]
        %v1384 = vld [vmem:[%s1177 + $0x36] sm:$0xff]
        %v1385 = vld [vmem:[%s1177 + $0x3e] sm:$0xff]
        %v1386 = vld [vmem:[%s1177 + $0x4e] sm:$0xff]
        %v1387 = vld [vmem:[%s1177 + $0x56] sm:$0xff]
        %v1388 = vld [vmem:[%s1177 + $0x66] sm:$0xff]
        %v1389 = vld [vmem:[%s1177 + $0x6e] sm:$0xff]
        %v1390 = vld [vmem:[%s1177 + $0x7e] sm:$0xff]
        %v1391 = vld [vmem:[%s1177 + $0x86] sm:$0xff]
        %v1392 = vld [vmem:[%s1177 + $0x96] sm:$0xff]
        %v1393 = vld [vmem:[%s1177 + $0x9e] sm:$0xff]
        %v1394 = vld [vmem:[%s1177 + $0xae] sm:$0xff]
        %v1395 = vld [vmem:[%s1177 + $0xb6] sm:$0xff]
        %v1396 = vld [vmem:[%s1177 + $0xc6] sm:$0xff]
        %v1397 = vld [vmem:[%s1177 + $0xce] sm:$0xff]
        %v1398 = vld [vmem:[%s1177 + $0xde] sm:$0xff]
        %v1399 = vld [vmem:[%s1177 + $0xe6] sm:$0xff]
        %v1400 = vld [vmem:[%s1177 + $0xf6] sm:$0xff]
        %v1401 = vld [vmem:[%s1177 + $0xfe] sm:$0xff]
        %v1402 = vld [vmem:[%s1177 + $0x10e] sm:$0xff]
        %v1403 = vld [vmem:[%s1177 + $0x116] sm:$0xff]
        %v1404 = vld [vmem:[%s1177 + $0x126] sm:$0xff]
        %v1405 = vld [vmem:[%s1177 + $0x12e] sm:$0xff]
        %v1406 = vld [vmem:[%s1177 + $0x13e] sm:$0xff]
        %v1407 = vld [vmem:[%s1177 + $0x146] sm:$0xff]
        %v1408 = vld [vmem:[%s1177 + $0x156] sm:$0xff]
        %v1409 = vld [vmem:[%s1177 + $0x15e] sm:$0xff]
        %v1410 = vld [vmem:[%s1177 + $0x16e] sm:$0xff]
        %v1411 = vld [vmem:[%s1177 + $0x176] sm:$0xff]
        %v1412 = vld [vmem:[%s2 + $0x8] sm:$0x1]
        %v1413 = vlaneseq
        %v1414 = vshrl.u32 %v1413, 7
        %v1415 = vsub.s32 0, %v1414
        %v1416 = vrot.slane %v1412, %v1415
        %v1417 = vmul.f32 %v1380, %v1416
        %v1418 = vmul.f32 %v1381, %v1416
        %v1419 = vmul.f32 %v1382, %v1416
        %v1420 = vmul.f32 %v1383, %v1416
        %v1421 = vmul.f32 %v1384, %v1416
        %v1422 = vmul.f32 %v1385, %v1416
        %v1423 = vmul.f32 %v1386, %v1416
        %v1424 = vmul.f32 %v1387, %v1416
        %v1425 = vmul.f32 %v1388, %v1416
        %v1426 = vmul.f32 %v1389, %v1416
        %v1427 = vmul.f32 %v1390, %v1416
        %v1428 = vmul.f32 %v1391, %v1416
        %v1429 = vmul.f32 %v1392, %v1416
        %v1430 = vmul.f32 %v1393, %v1416
        %v1431 = vmul.f32 %v1394, %v1416
        %v1432 = vmul.f32 %v1395, %v1416
        %v1433 = vmul.f32 %v1396, %v1416
        %v1434 = vmul.f32 %v1397, %v1416
        %v1435 = vmul.f32 %v1398, %v1416
        %v1436 = vmul.f32 %v1399, %v1416
        %v1437 = vmul.f32 %v1400, %v1416
        %v1438 = vmul.f32 %v1401, %v1416
        %v1439 = vmul.f32 %v1402, %v1416
        %v1440 = vmul.f32 %v1403, %v1416
        %v1441 = vmul.f32 %v1404, %v1416
        %v1442 = vmul.f32 %v1405, %v1416
        %v1443 = vmul.f32 %v1406, %v1416
        %v1444 = vmul.f32 %v1407, %v1416
        %v1445 = vmul.f32 %v1408, %v1416
        %v1446 = vmul.f32 %v1409, %v1416
        %v1447 = vmul.f32 %v1410, %v1416
        %v1448 = vmul.f32 %v1411, %v1416
        %v1449 = vadd.f32 %v1348, %v1417
        %v1450 = vadd.f32 %v1349, %v1418
        %v1451 = vadd.f32 %v1350, %v1419
        %v1452 = vadd.f32 %v1351, %v1420
        %v1453 = vadd.f32 %v1352, %v1421
        %v1454 = vadd.f32 %v1353, %v1422
        %v1455 = vadd.f32 %v1354, %v1423
        %v1456 = vadd.f32 %v1355, %v1424
        %v1457 = vadd.f32 %v1356, %v1425
        %v1458 = vadd.f32 %v1357, %v1426
        %v1459 = vadd.f32 %v1358, %v1427
        %v1460 = vadd.f32 %v1359, %v1428
        %v1461 = vadd.f32 %v1360, %v1429
        %v1462 = vadd.f32 %v1361, %v1430
        %v1463 = vadd.f32 %v1362, %v1431
        %v1464 = vadd.f32 %v1363, %v1432
        %v1465 = vadd.f32 %v1364, %v1433
        %v1466 = vadd.f32 %v1365, %v1434
        %v1467 = vadd.f32 %v1366, %v1435
        %v1468 = vadd.f32 %v1367, %v1436
        %v1469 = vadd.f32 %v1368, %v1437
        %v1470 = vadd.f32 %v1369, %v1438
        %v1471 = vadd.f32 %v1370, %v1439
        %v1472 = vadd.f32 %v1371, %v1440
        %v1473 = vadd.f32 %v1372, %v1441
        %v1474 = vadd.f32 %v1373, %v1442
        %v1475 = vadd.f32 %v1374, %v1443
        %v1476 = vadd.f32 %v1375, %v1444
        %v1477 = vadd.f32 %v1376, %v1445
        %v1478 = vadd.f32 %v1377, %v1446
        %v1479 = vadd.f32 %v1378, %v1447
        %v1480 = vadd.f32 %v1379, %v1448
        %v1481 = vld [vmem:[%s3 + $0x1] sm:$0x1]
        %v1482 = vlaneseq
        %v1483 = vshrl.u32 %v1482, 7
        %v1484 = vsub.s32 0, %v1483
        %v1485 = vrot.slane %v1481, %v1484
        %v1486 = vadd.f32 %v1449, %v1485
        %v1487 = vadd.f32 %v1450, %v1485
        %v1488 = vadd.f32 %v1451, %v1485
        %v1489 = vadd.f32 %v1452, %v1485
        %v1490 = vadd.f32 %v1453, %v1485
        %v1491 = vadd.f32 %v1454, %v1485
        %v1492 = vadd.f32 %v1455, %v1485
        %v1493 = vadd.f32 %v1456, %v1485
        %v1494 = vadd.f32 %v1457, %v1485
        %v1495 = vadd.f32 %v1458, %v1485
        %v1496 = vadd.f32 %v1459, %v1485
        %v1497 = vadd.f32 %v1460, %v1485
        %v1498 = vadd.f32 %v1461, %v1485
        %v1499 = vadd.f32 %v1462, %v1485
        %v1500 = vadd.f32 %v1463, %v1485
        %v1501 = vadd.f32 %v1464, %v1485
        %v1502 = vadd.f32 %v1465, %v1485
        %v1503 = vadd.f32 %v1466, %v1485
        %v1504 = vadd.f32 %v1467, %v1485
        %v1505 = vadd.f32 %v1468, %v1485
        %v1506 = vadd.f32 %v1469, %v1485
        %v1507 = vadd.f32 %v1470, %v1485
        %v1508 = vadd.f32 %v1471, %v1485
        %v1509 = vadd.f32 %v1472, %v1485
        %v1510 = vadd.f32 %v1473, %v1485
        %v1511 = vadd.f32 %v1474, %v1485
        %v1512 = vadd.f32 %v1475, %v1485
        %v1513 = vadd.f32 %v1476, %v1485
        %v1514 = vadd.f32 %v1477, %v1485
        %v1515 = vadd.f32 %v1478, %v1485
        %v1516 = vadd.f32 %v1479, %v1485
        %v1517 = vadd.f32 %v1480, %v1485
        %v1518 = vmax.f32 %v1486, 0.0
        %v1519 = vmax.f32 %v1487, 0.0
        %v1520 = vmax.f32 %v1488, 0.0
        %v1521 = vmax.f32 %v1489, 0.0
        %v1522 = vmax.f32 %v1490, 0.0
        %v1523 = vmax.f32 %v1491, 0.0
        %v1524 = vmax.f32 %v1492, 0.0
        %v1525 = vmax.f32 %v1493, 0.0
        %v1526 = vmax.f32 %v1494, 0.0
        %v1527 = vmax.f32 %v1495, 0.0
        %v1528 = vmax.f32 %v1496, 0.0
        %v1529 = vmax.f32 %v1497, 0.0
        %v1530 = vmax.f32 %v1498, 0.0
        %v1531 = vmax.f32 %v1499, 0.0
        %v1532 = vmax.f32 %v1500, 0.0
        %v1533 = vmax.f32 %v1501, 0.0
        %v1534 = vmax.f32 %v1502, 0.0
        %v1535 = vmax.f32 %v1503, 0.0
        %v1536 = vmax.f32 %v1504, 0.0
        %v1537 = vmax.f32 %v1505, 0.0
        %v1538 = vmax.f32 %v1506, 0.0
        %v1539 = vmax.f32 %v1507, 0.0
        %v1540 = vmax.f32 %v1508, 0.0
        %v1541 = vmax.f32 %v1509, 0.0
        %v1542 = vmax.f32 %v1510, 0.0
        %v1543 = vmax.f32 %v1511, 0.0
        %v1544 = vmax.f32 %v1512, 0.0
        %v1545 = vmax.f32 %v1513, 0.0
        %v1546 = vmax.f32 %v1514, 0.0
        %v1547 = vmax.f32 %v1515, 0.0
        %v1548 = vmax.f32 %v1516, 0.0
        %v1549 = vmax.f32 %v1517, 0.0
        %s1550 = scalar_lea.vmem [#allocation2], 24
        %v1551 = vld [vmem:[%s1550 + $0x1] sm:$0xff]
        %v1552 = vld [vmem:[%s1550 + $0x9] sm:$0xff]
        %v1553 = vld [vmem:[%s1550 + $0x19] sm:$0xff]
        %v1554 = vld [vmem:[%s1550 + $0x21] sm:$0xff]
        %v1555 = vld [vmem:[%s1550 + $0x31] sm:$0xff]
        %v1556 = vld [vmem:[%s1550 + $0x39] sm:$0xff]
        %v1557 = vld [vmem:[%s1550 + $0x49] sm:$0xff]
        %v1558 = vld [vmem:[%s1550 + $0x51] sm:$0xff]
        %v1559 = vld [vmem:[%s1550 + $0x61] sm:$0xff]
        %v1560 = vld [vmem:[%s1550 + $0x69] sm:$0xff]
        %v1561 = vld [vmem:[%s1550 + $0x79] sm:$0xff]
        %v1562 = vld [vmem:[%s1550 + $0x81] sm:$0xff]
        %v1563 = vld [vmem:[%s1550 + $0x91] sm:$0xff]
        %v1564 = vld [vmem:[%s1550 + $0x99] sm:$0xff]
        %v1565 = vld [vmem:[%s1550 + $0xa9] sm:$0xff]
        %v1566 = vld [vmem:[%s1550 + $0xb1] sm:$0xff]
        %v1567 = vld [vmem:[%s1550 + $0xc1] sm:$0xff]
        %v1568 = vld [vmem:[%s1550 + $0xc9] sm:$0xff]
        %v1569 = vld [vmem:[%s1550 + $0xd9] sm:$0xff]
        %v1570 = vld [vmem:[%s1550 + $0xe1] sm:$0xff]
        %v1571 = vld [vmem:[%s1550 + $0xf1] sm:$0xff]
        %v1572 = vld [vmem:[%s1550 + $0xf9] sm:$0xff]
        %v1573 = vld [vmem:[%s1550 + $0x109] sm:$0xff]
        %v1574 = vld [vmem:[%s1550 + $0x111] sm:$0xff]
        %v1575 = vld [vmem:[%s1550 + $0x121] sm:$0xff]
        %v1576 = vld [vmem:[%s1550 + $0x129] sm:$0xff]
        %v1577 = vld [vmem:[%s1550 + $0x139] sm:$0xff]
        %v1578 = vld [vmem:[%s1550 + $0x141] sm:$0xff]
        %v1579 = vld [vmem:[%s1550 + $0x151] sm:$0xff]
        %v1580 = vld [vmem:[%s1550 + $0x159] sm:$0xff]
        %v1581 = vld [vmem:[%s1550 + $0x169] sm:$0xff]
        %v1582 = vld [vmem:[%s1550 + $0x171] sm:$0xff]
        %v1583 = vld [vmem:[%s2 + $0x9] sm:$0x1]
        %v1584 = vlaneseq
        %v1585 = vshrl.u32 %v1584, 7
        %v1586 = vsub.s32 0, %v1585
        %v1587 = vrot.slane %v1583, %v1586
        %v1588 = vmul.f32 %v1551, %v1587
        %v1589 = vmul.f32 %v1552, %v1587
        %v1590 = vmul.f32 %v1553, %v1587
        %v1591 = vmul.f32 %v1554, %v1587
        %v1592 = vmul.f32 %v1555, %v1587
        %v1593 = vmul.f32 %v1556, %v1587
        %v1594 = vmul.f32 %v1557, %v1587
        %v1595 = vmul.f32 %v1558, %v1587
        %v1596 = vmul.f32 %v1559, %v1587
        %v1597 = vmul.f32 %v1560, %v1587
        %v1598 = vmul.f32 %v1561, %v1587
        %v1599 = vmul.f32 %v1562, %v1587
        %v1600 = vmul.f32 %v1563, %v1587
        %v1601 = vmul.f32 %v1564, %v1587
        %v1602 = vmul.f32 %v1565, %v1587
        %v1603 = vmul.f32 %v1566, %v1587
        %v1604 = vmul.f32 %v1567, %v1587
        %v1605 = vmul.f32 %v1568, %v1587
        %v1606 = vmul.f32 %v1569, %v1587
        %v1607 = vmul.f32 %v1570, %v1587
        %v1608 = vmul.f32 %v1571, %v1587
        %v1609 = vmul.f32 %v1572, %v1587
        %v1610 = vmul.f32 %v1573, %v1587
        %v1611 = vmul.f32 %v1574, %v1587
        %v1612 = vmul.f32 %v1575, %v1587
        %v1613 = vmul.f32 %v1576, %v1587
        %v1614 = vmul.f32 %v1577, %v1587
        %v1615 = vmul.f32 %v1578, %v1587
        %v1616 = vmul.f32 %v1579, %v1587
        %v1617 = vmul.f32 %v1580, %v1587
        %v1618 = vmul.f32 %v1581, %v1587
        %v1619 = vmul.f32 %v1582, %v1587
        %v1620 = vadd.f32 %v1588, 0.0
        %v1621 = vadd.f32 %v1589, 0.0
        %v1622 = vadd.f32 %v1590, 0.0
        %v1623 = vadd.f32 %v1591, 0.0
        %v1624 = vadd.f32 %v1592, 0.0
        %v1625 = vadd.f32 %v1593, 0.0
        %v1626 = vadd.f32 %v1594, 0.0
        %v1627 = vadd.f32 %v1595, 0.0
        %v1628 = vadd.f32 %v1596, 0.0
        %v1629 = vadd.f32 %v1597, 0.0
        %v1630 = vadd.f32 %v1598, 0.0
        %v1631 = vadd.f32 %v1599, 0.0
        %v1632 = vadd.f32 %v1600, 0.0
        %v1633 = vadd.f32 %v1601, 0.0
        %v1634 = vadd.f32 %v1602, 0.0
        %v1635 = vadd.f32 %v1603, 0.0
        %v1636 = vadd.f32 %v1604, 0.0
        %v1637 = vadd.f32 %v1605, 0.0
        %v1638 = vadd.f32 %v1606, 0.0
        %v1639 = vadd.f32 %v1607, 0.0
        %v1640 = vadd.f32 %v1608, 0.0
        %v1641 = vadd.f32 %v1609, 0.0
        %v1642 = vadd.f32 %v1610, 0.0
        %v1643 = vadd.f32 %v1611, 0.0
        %v1644 = vadd.f32 %v1612, 0.0
        %v1645 = vadd.f32 %v1613, 0.0
        %v1646 = vadd.f32 %v1614, 0.0
        %v1647 = vadd.f32 %v1615, 0.0
        %v1648 = vadd.f32 %v1616, 0.0
        %v1649 = vadd.f32 %v1617, 0.0
        %v1650 = vadd.f32 %v1618, 0.0
        %v1651 = vadd.f32 %v1619, 0.0
        %v1652 = vld [vmem:[%s1550 + $0x4] sm:$0xff]
        %v1653 = vld [vmem:[%s1550 + $0xc] sm:$0xff]
        %v1654 = vld [vmem:[%s1550 + $0x1c] sm:$0xff]
        %v1655 = vld [vmem:[%s1550 + $0x24] sm:$0xff]
        %v1656 = vld [vmem:[%s1550 + $0x34] sm:$0xff]
        %v1657 = vld [vmem:[%s1550 + $0x3c] sm:$0xff]
        %v1658 = vld [vmem:[%s1550 + $0x4c] sm:$0xff]
        %v1659 = vld [vmem:[%s1550 + $0x54] sm:$0xff]
        %v1660 = vld [vmem:[%s1550 + $0x64] sm:$0xff]
        %v1661 = vld [vmem:[%s1550 + $0x6c] sm:$0xff]
        %v1662 = vld [vmem:[%s1550 + $0x7c] sm:$0xff]
        %v1663 = vld [vmem:[%s1550 + $0x84] sm:$0xff]
        %v1664 = vld [vmem:[%s1550 + $0x94] sm:$0xff]
        %v1665 = vld [vmem:[%s1550 + $0x9c] sm:$0xff]
        %v1666 = vld [vmem:[%s1550 + $0xac] sm:$0xff]
        %v1667 = vld [vmem:[%s1550 + $0xb4] sm:$0xff]
        %v1668 = vld [vmem:[%s1550 + $0xc4] sm:$0xff]
        %v1669 = vld [vmem:[%s1550 + $0xcc] sm:$0xff]
        %v1670 = vld [vmem:[%s1550 + $0xdc] sm:$0xff]
        %v1671 = vld [vmem:[%s1550 + $0xe4] sm:$0xff]
        %v1672 = vld [vmem:[%s1550 + $0xf4] sm:$0xff]
        %v1673 = vld [vmem:[%s1550 + $0xfc] sm:$0xff]
        %v1674 = vld [vmem:[%s1550 + $0x10c] sm:$0xff]
        %v1675 = vld [vmem:[%s1550 + $0x114] sm:$0xff]
        %v1676 = vld [vmem:[%s1550 + $0x124] sm:$0xff]
        %v1677 = vld [vmem:[%s1550 + $0x12c] sm:$0xff]
        %v1678 = vld [vmem:[%s1550 + $0x13c] sm:$0xff]
        %v1679 = vld [vmem:[%s1550 + $0x144] sm:$0xff]
        %v1680 = vld [vmem:[%s1550 + $0x154] sm:$0xff]
        %v1681 = vld [vmem:[%s1550 + $0x15c] sm:$0xff]
        %v1682 = vld [vmem:[%s1550 + $0x16c] sm:$0xff]
        %v1683 = vld [vmem:[%s1550 + $0x174] sm:$0xff]
        %v1684 = vld [vmem:[%s2 + $0xa] sm:$0x1]
        %v1685 = vlaneseq
        %v1686 = vshrl.u32 %v1685, 7
        %v1687 = vsub.s32 0, %v1686
        %v1688 = vrot.slane %v1684, %v1687
        %v1689 = vmul.f32 %v1652, %v1688
        %v1690 = vmul.f32 %v1653, %v1688
        %v1691 = vmul.f32 %v1654, %v1688
        %v1692 = vmul.f32 %v1655, %v1688
        %v1693 = vmul.f32 %v1656, %v1688
        %v1694 = vmul.f32 %v1657, %v1688
        %v1695 = vmul.f32 %v1658, %v1688
        %v1696 = vmul.f32 %v1659, %v1688
        %v1697 = vmul.f32 %v1660, %v1688
        %v1698 = vmul.f32 %v1661, %v1688
        %v1699 = vmul.f32 %v1662, %v1688
        %v1700 = vmul.f32 %v1663, %v1688
        %v1701 = vmul.f32 %v1664, %v1688
        %v1702 = vmul.f32 %v1665, %v1688
        %v1703 = vmul.f32 %v1666, %v1688
        %v1704 = vmul.f32 %v1667, %v1688
        %v1705 = vmul.f32 %v1668, %v1688
        %v1706 = vmul.f32 %v1669, %v1688
        %v1707 = vmul.f32 %v1670, %v1688
        %v1708 = vmul.f32 %v1671, %v1688
        %v1709 = vmul.f32 %v1672, %v1688
        %v1710 = vmul.f32 %v1673, %v1688
        %v1711 = vmul.f32 %v1674, %v1688
        %v1712 = vmul.f32 %v1675, %v1688
        %v1713 = vmul.f32 %v1676, %v1688
        %v1714 = vmul.f32 %v1677, %v1688
        %v1715 = vmul.f32 %v1678, %v1688
        %v1716 = vmul.f32 %v1679, %v1688
        %v1717 = vmul.f32 %v1680, %v1688
        %v1718 = vmul.f32 %v1681, %v1688
        %v1719 = vmul.f32 %v1682, %v1688
        %v1720 = vmul.f32 %v1683, %v1688
        %v1721 = vadd.f32 %v1620, %v1689
        %v1722 = vadd.f32 %v1621, %v1690
        %v1723 = vadd.f32 %v1622, %v1691
        %v1724 = vadd.f32 %v1623, %v1692
        %v1725 = vadd.f32 %v1624, %v1693
        %v1726 = vadd.f32 %v1625, %v1694
        %v1727 = vadd.f32 %v1626, %v1695
        %v1728 = vadd.f32 %v1627, %v1696
        %v1729 = vadd.f32 %v1628, %v1697
        %v1730 = vadd.f32 %v1629, %v1698
        %v1731 = vadd.f32 %v1630, %v1699
        %v1732 = vadd.f32 %v1631, %v1700
        %v1733 = vadd.f32 %v1632, %v1701
        %v1734 = vadd.f32 %v1633, %v1702
        %v1735 = vadd.f32 %v1634, %v1703
        %v1736 = vadd.f32 %v1635, %v1704
        %v1737 = vadd.f32 %v1636, %v1705
        %v1738 = vadd.f32 %v1637, %v1706
        %v1739 = vadd.f32 %v1638, %v1707
        %v1740 = vadd.f32 %v1639, %v1708
        %v1741 = vadd.f32 %v1640, %v1709
        %v1742 = vadd.f32 %v1641, %v1710
        %v1743 = vadd.f32 %v1642, %v1711
        %v1744 = vadd.f32 %v1643, %v1712
        %v1745 = vadd.f32 %v1644, %v1713
        %v1746 = vadd.f32 %v1645, %v1714
        %v1747 = vadd.f32 %v1646, %v1715
        %v1748 = vadd.f32 %v1647, %v1716
        %v1749 = vadd.f32 %v1648, %v1717
        %v1750 = vadd.f32 %v1649, %v1718
        %v1751 = vadd.f32 %v1650, %v1719
        %v1752 = vadd.f32 %v1651, %v1720
        %v1753 = vld [vmem:[%s1550 + $0x7] sm:$0xff]
        %v1754 = vld [vmem:[%s1550 + $0xf] sm:$0xff]
        %v1755 = vld [vmem:[%s1550 + $0x1f] sm:$0xff]
        %v1756 = vld [vmem:[%s1550 + $0x27] sm:$0xff]
        %v1757 = vld [vmem:[%s1550 + $0x37] sm:$0xff]
        %v1758 = vld [vmem:[%s1550 + $0x3f] sm:$0xff]
        %v1759 = vld [vmem:[%s1550 + $0x4f] sm:$0xff]
        %v1760 = vld [vmem:[%s1550 + $0x57] sm:$0xff]
        %v1761 = vld [vmem:[%s1550 + $0x67] sm:$0xff]
        %v1762 = vld [vmem:[%s1550 + $0x6f] sm:$0xff]
        %v1763 = vld [vmem:[%s1550 + $0x7f] sm:$0xff]
        %v1764 = vld [vmem:[%s1550 + $0x87] sm:$0xff]
        %v1765 = vld [vmem:[%s1550 + $0x97] sm:$0xff]
        %v1766 = vld [vmem:[%s1550 + $0x9f] sm:$0xff]
        %v1767 = vld [vmem:[%s1550 + $0xaf] sm:$0xff]
        %v1768 = vld [vmem:[%s1550 + $0xb7] sm:$0xff]
        %v1769 = vld [vmem:[%s1550 + $0xc7] sm:$0xff]
        %v1770 = vld [vmem:[%s1550 + $0xcf] sm:$0xff]
        %v1771 = vld [vmem:[%s1550 + $0xdf] sm:$0xff]
        %v1772 = vld [vmem:[%s1550 + $0xe7] sm:$0xff]
        %v1773 = vld [vmem:[%s1550 + $0xf7] sm:$0xff]
        %v1774 = vld [vmem:[%s1550 + $0xff] sm:$0xff]
        %v1775 = vld [vmem:[%s1550 + $0x10f] sm:$0xff]
        %v1776 = vld [vmem:[%s1550 + $0x117] sm:$0xff]
        %v1777 = vld [vmem:[%s1550 + $0x127] sm:$0xff]
        %v1778 = vld [vmem:[%s1550 + $0x12f] sm:$0xff]
        %v1779 = vld [vmem:[%s1550 + $0x13f] sm:$0xff]
        %v1780 = vld [vmem:[%s1550 + $0x147] sm:$0xff]
        %v1781 = vld [vmem:[%s1550 + $0x157] sm:$0xff]
        %v1782 = vld [vmem:[%s1550 + $0x15f] sm:$0xff]
        %v1783 = vld [vmem:[%s1550 + $0x16f] sm:$0xff]
        %v1784 = vld [vmem:[%s1550 + $0x177] sm:$0xff]
        %v1785 = vld [vmem:[%s2 + $0xb] sm:$0x1]
        %v1786 = vlaneseq
        %v1787 = vshrl.u32 %v1786, 7
        %v1788 = vsub.s32 0, %v1787
        %v1789 = vrot.slane %v1785, %v1788
        %v1790 = vmul.f32 %v1753, %v1789
        %v1791 = vmul.f32 %v1754, %v1789
        %v1792 = vmul.f32 %v1755, %v1789
        %v1793 = vmul.f32 %v1756, %v1789
        %v1794 = vmul.f32 %v1757, %v1789
        %v1795 = vmul.f32 %v1758, %v1789
        %v1796 = vmul.f32 %v1759, %v1789
        %v1797 = vmul.f32 %v1760, %v1789
        %v1798 = vmul.f32 %v1761, %v1789
        %v1799 = vmul.f32 %v1762, %v1789
        %v1800 = vmul.f32 %v1763, %v1789
        %v1801 = vmul.f32 %v1764, %v1789
        %v1802 = vmul.f32 %v1765, %v1789
        %v1803 = vmul.f32 %v1766, %v1789
        %v1804 = vmul.f32 %v1767, %v1789
        %v1805 = vmul.f32 %v1768, %v1789
        %v1806 = vmul.f32 %v1769, %v1789
        %v1807 = vmul.f32 %v1770, %v1789
        %v1808 = vmul.f32 %v1771, %v1789
        %v1809 = vmul.f32 %v1772, %v1789
        %v1810 = vmul.f32 %v1773, %v1789
        %v1811 = vmul.f32 %v1774, %v1789
        %v1812 = vmul.f32 %v1775, %v1789
        %v1813 = vmul.f32 %v1776, %v1789
        %v1814 = vmul.f32 %v1777, %v1789
        %v1815 = vmul.f32 %v1778, %v1789
        %v1816 = vmul.f32 %v1779, %v1789
        %v1817 = vmul.f32 %v1780, %v1789
        %v1818 = vmul.f32 %v1781, %v1789
        %v1819 = vmul.f32 %v1782, %v1789
        %v1820 = vmul.f32 %v1783, %v1789
        %v1821 = vmul.f32 %v1784, %v1789
        %v1822 = vadd.f32 %v1721, %v1790
        %v1823 = vadd.f32 %v1722, %v1791
        %v1824 = vadd.f32 %v1723, %v1792
        %v1825 = vadd.f32 %v1724, %v1793
        %v1826 = vadd.f32 %v1725, %v1794
        %v1827 = vadd.f32 %v1726, %v1795
        %v1828 = vadd.f32 %v1727, %v1796
        %v1829 = vadd.f32 %v1728, %v1797
        %v1830 = vadd.f32 %v1729, %v1798
        %v1831 = vadd.f32 %v1730, %v1799
        %v1832 = vadd.f32 %v1731, %v1800
        %v1833 = vadd.f32 %v1732, %v1801
        %v1834 = vadd.f32 %v1733, %v1802
        %v1835 = vadd.f32 %v1734, %v1803
        %v1836 = vadd.f32 %v1735, %v1804
        %v1837 = vadd.f32 %v1736, %v1805
        %v1838 = vadd.f32 %v1737, %v1806
        %v1839 = vadd.f32 %v1738, %v1807
        %v1840 = vadd.f32 %v1739, %v1808
        %v1841 = vadd.f32 %v1740, %v1809
        %v1842 = vadd.f32 %v1741, %v1810
        %v1843 = vadd.f32 %v1742, %v1811
        %v1844 = vadd.f32 %v1743, %v1812
        %v1845 = vadd.f32 %v1744, %v1813
        %v1846 = vadd.f32 %v1745, %v1814
        %v1847 = vadd.f32 %v1746, %v1815
        %v1848 = vadd.f32 %v1747, %v1816
        %v1849 = vadd.f32 %v1748, %v1817
        %v1850 = vadd.f32 %v1749, %v1818
        %v1851 = vadd.f32 %v1750, %v1819
        %v1852 = vadd.f32 %v1751, %v1820
        %v1853 = vadd.f32 %v1752, %v1821
        %v1854 = vld [vmem:[%s429 + $0x1] sm:$0xff]
        %v1855 = vld [vmem:[%s429 + $0x9] sm:$0xff]
        %v1856 = vld [vmem:[%s429 + $0x19] sm:$0xff]
        %v1857 = vld [vmem:[%s429 + $0x21] sm:$0xff]
        %v1858 = vld [vmem:[%s429 + $0x31] sm:$0xff]
        %v1859 = vld [vmem:[%s429 + $0x39] sm:$0xff]
        %v1860 = vld [vmem:[%s429 + $0x49] sm:$0xff]
        %v1861 = vld [vmem:[%s429 + $0x51] sm:$0xff]
        %v1862 = vld [vmem:[%s429 + $0x61] sm:$0xff]
        %v1863 = vld [vmem:[%s429 + $0x69] sm:$0xff]
        %v1864 = vld [vmem:[%s429 + $0x79] sm:$0xff]
        %v1865 = vld [vmem:[%s429 + $0x81] sm:$0xff]
        %v1866 = vld [vmem:[%s429 + $0x91] sm:$0xff]
        %v1867 = vld [vmem:[%s429 + $0x99] sm:$0xff]
        %v1868 = vld [vmem:[%s429 + $0xa9] sm:$0xff]
        %v1869 = vld [vmem:[%s429 + $0xb1] sm:$0xff]
        %v1870 = vld [vmem:[%s429 + $0xc1] sm:$0xff]
        %v1871 = vld [vmem:[%s429 + $0xc9] sm:$0xff]
        %v1872 = vld [vmem:[%s429 + $0xd9] sm:$0xff]
        %v1873 = vld [vmem:[%s429 + $0xe1] sm:$0xff]
        %v1874 = vld [vmem:[%s429 + $0xf1] sm:$0xff]
        %v1875 = vld [vmem:[%s429 + $0xf9] sm:$0xff]
        %v1876 = vld [vmem:[%s429 + $0x109] sm:$0xff]
        %v1877 = vld [vmem:[%s429 + $0x111] sm:$0xff]
        %v1878 = vld [vmem:[%s429 + $0x121] sm:$0xff]
        %v1879 = vld [vmem:[%s429 + $0x129] sm:$0xff]
        %v1880 = vld [vmem:[%s429 + $0x139] sm:$0xff]
        %v1881 = vld [vmem:[%s429 + $0x141] sm:$0xff]
        %v1882 = vld [vmem:[%s429 + $0x151] sm:$0xff]
        %v1883 = vld [vmem:[%s429 + $0x159] sm:$0xff]
        %v1884 = vld [vmem:[%s429 + $0x169] sm:$0xff]
        %v1885 = vld [vmem:[%s429 + $0x171] sm:$0xff]
        %v1886 = vld [vmem:[%s2 + $0xc] sm:$0x1]
        %v1887 = vlaneseq
        %v1888 = vshrl.u32 %v1887, 7
        %v1889 = vsub.s32 0, %v1888
        %v1890 = vrot.slane %v1886, %v1889
        %v1891 = vmul.f32 %v1854, %v1890
        %v1892 = vmul.f32 %v1855, %v1890
        %v1893 = vmul.f32 %v1856, %v1890
        %v1894 = vmul.f32 %v1857, %v1890
        %v1895 = vmul.f32 %v1858, %v1890
        %v1896 = vmul.f32 %v1859, %v1890
        %v1897 = vmul.f32 %v1860, %v1890
        %v1898 = vmul.f32 %v1861, %v1890
        %v1899 = vmul.f32 %v1862, %v1890
        %v1900 = vmul.f32 %v1863, %v1890
        %v1901 = vmul.f32 %v1864, %v1890
        %v1902 = vmul.f32 %v1865, %v1890
        %v1903 = vmul.f32 %v1866, %v1890
        %v1904 = vmul.f32 %v1867, %v1890
        %v1905 = vmul.f32 %v1868, %v1890
        %v1906 = vmul.f32 %v1869, %v1890
        %v1907 = vmul.f32 %v1870, %v1890
        %v1908 = vmul.f32 %v1871, %v1890
        %v1909 = vmul.f32 %v1872, %v1890
        %v1910 = vmul.f32 %v1873, %v1890
        %v1911 = vmul.f32 %v1874, %v1890
        %v1912 = vmul.f32 %v1875, %v1890
        %v1913 = vmul.f32 %v1876, %v1890
        %v1914 = vmul.f32 %v1877, %v1890
        %v1915 = vmul.f32 %v1878, %v1890
        %v1916 = vmul.f32 %v1879, %v1890
        %v1917 = vmul.f32 %v1880, %v1890
        %v1918 = vmul.f32 %v1881, %v1890
        %v1919 = vmul.f32 %v1882, %v1890
        %v1920 = vmul.f32 %v1883, %v1890
        %v1921 = vmul.f32 %v1884, %v1890
        %v1922 = vmul.f32 %v1885, %v1890
        %v1923 = vadd.f32 %v1822, %v1891
        %v1924 = vadd.f32 %v1823, %v1892
        %v1925 = vadd.f32 %v1824, %v1893
        %v1926 = vadd.f32 %v1825, %v1894
        %v1927 = vadd.f32 %v1826, %v1895
        %v1928 = vadd.f32 %v1827, %v1896
        %v1929 = vadd.f32 %v1828, %v1897
        %v1930 = vadd.f32 %v1829, %v1898
        %v1931 = vadd.f32 %v1830, %v1899
        %v1932 = vadd.f32 %v1831, %v1900
        %v1933 = vadd.f32 %v1832, %v1901
        %v1934 = vadd.f32 %v1833, %v1902
        %v1935 = vadd.f32 %v1834, %v1903
        %v1936 = vadd.f32 %v1835, %v1904
        %v1937 = vadd.f32 %v1836, %v1905
        %v1938 = vadd.f32 %v1837, %v1906
        %v1939 = vadd.f32 %v1838, %v1907
        %v1940 = vadd.f32 %v1839, %v1908
        %v1941 = vadd.f32 %v1840, %v1909
        %v1942 = vadd.f32 %v1841, %v1910
        %v1943 = vadd.f32 %v1842, %v1911
        %v1944 = vadd.f32 %v1843, %v1912
        %v1945 = vadd.f32 %v1844, %v1913
        %v1946 = vadd.f32 %v1845, %v1914
        %v1947 = vadd.f32 %v1846, %v1915
        %v1948 = vadd.f32 %v1847, %v1916
        %v1949 = vadd.f32 %v1848, %v1917
        %v1950 = vadd.f32 %v1849, %v1918
        %v1951 = vadd.f32 %v1850, %v1919
        %v1952 = vadd.f32 %v1851, %v1920
        %v1953 = vadd.f32 %v1852, %v1921
        %v1954 = vadd.f32 %v1853, %v1922
        %v1955 = vld [vmem:[%s2 + $0xd] sm:$0x1]
        %v1956 = vlaneseq
        %v1957 = vshrl.u32 %v1956, 7
        %v1958 = vsub.s32 0, %v1957
        %v1959 = vrot.slane %v1955, %v1958
        %v1960 = vmul.f32 %v975, %v1959
        %v1961 = vmul.f32 %v976, %v1959
        %v1962 = vmul.f32 %v977, %v1959
        %v1963 = vmul.f32 %v978, %v1959
        %v1964 = vmul.f32 %v979, %v1959
        %v1965 = vmul.f32 %v980, %v1959
        %v1966 = vmul.f32 %v981, %v1959
        %v1967 = vmul.f32 %v982, %v1959
        %v1968 = vmul.f32 %v983, %v1959
        %v1969 = vmul.f32 %v984, %v1959
        %v1970 = vmul.f32 %v985, %v1959
        %v1971 = vmul.f32 %v986, %v1959
        %v1972 = vmul.f32 %v987, %v1959
        %v1973 = vmul.f32 %v988, %v1959
        %v1974 = vmul.f32 %v989, %v1959
        %v1975 = vmul.f32 %v990, %v1959
        %v1976 = vmul.f32 %v991, %v1959
        %v1977 = vmul.f32 %v992, %v1959
        %v1978 = vmul.f32 %v993, %v1959
        %v1979 = vmul.f32 %v994, %v1959
        %v1980 = vmul.f32 %v995, %v1959
        %v1981 = vmul.f32 %v996, %v1959
        %v1982 = vmul.f32 %v997, %v1959
        %v1983 = vmul.f32 %v998, %v1959
        %v1984 = vmul.f32 %v999, %v1959
        %v1985 = vmul.f32 %v1000, %v1959
        %v1986 = vmul.f32 %v1001, %v1959
        %v1987 = vmul.f32 %v1002, %v1959
        %v1988 = vmul.f32 %v1003, %v1959
        %v1989 = vmul.f32 %v1004, %v1959
        %v1990 = vmul.f32 %v1005, %v1959
        %v1991 = vmul.f32 %v1006, %v1959
        %v1992 = vadd.f32 %v1923, %v1960
        %v1993 = vadd.f32 %v1924, %v1961
        %v1994 = vadd.f32 %v1925, %v1962
        %v1995 = vadd.f32 %v1926, %v1963
        %v1996 = vadd.f32 %v1927, %v1964
        %v1997 = vadd.f32 %v1928, %v1965
        %v1998 = vadd.f32 %v1929, %v1966
        %v1999 = vadd.f32 %v1930, %v1967
        %v2000 = vadd.f32 %v1931, %v1968
        %v2001 = vadd.f32 %v1932, %v1969
        %v2002 = vadd.f32 %v1933, %v1970
        %v2003 = vadd.f32 %v1934, %v1971
        %v2004 = vadd.f32 %v1935, %v1972
        %v2005 = vadd.f32 %v1936, %v1973
        %v2006 = vadd.f32 %v1937, %v1974
        %v2007 = vadd.f32 %v1938, %v1975
        %v2008 = vadd.f32 %v1939, %v1976
        %v2009 = vadd.f32 %v1940, %v1977
        %v2010 = vadd.f32 %v1941, %v1978
        %v2011 = vadd.f32 %v1942, %v1979
        %v2012 = vadd.f32 %v1943, %v1980
        %v2013 = vadd.f32 %v1944, %v1981
        %v2014 = vadd.f32 %v1945, %v1982
        %v2015 = vadd.f32 %v1946, %v1983
        %v2016 = vadd.f32 %v1947, %v1984
        %v2017 = vadd.f32 %v1948, %v1985
        %v2018 = vadd.f32 %v1949, %v1986
        %v2019 = vadd.f32 %v1950, %v1987
        %v2020 = vadd.f32 %v1951, %v1988
        %v2021 = vadd.f32 %v1952, %v1989
        %v2022 = vadd.f32 %v1953, %v1990
        %v2023 = vadd.f32 %v1954, %v1991
        %v2024 = vld [vmem:[%s429 + $0x7] sm:$0xff]
        %v2025 = vld [vmem:[%s429 + $0xf] sm:$0xff]
        %v2026 = vld [vmem:[%s429 + $0x1f] sm:$0xff]
        %v2027 = vld [vmem:[%s429 + $0x27] sm:$0xff]
        %v2028 = vld [vmem:[%s429 + $0x37] sm:$0xff]
        %v2029 = vld [vmem:[%s429 + $0x3f] sm:$0xff]
        %v2030 = vld [vmem:[%s429 + $0x4f] sm:$0xff]
        %v2031 = vld [vmem:[%s429 + $0x57] sm:$0xff]
        %v2032 = vld [vmem:[%s429 + $0x67] sm:$0xff]
        %v2033 = vld [vmem:[%s429 + $0x6f] sm:$0xff]
        %v2034 = vld [vmem:[%s429 + $0x7f] sm:$0xff]
        %v2035 = vld [vmem:[%s429 + $0x87] sm:$0xff]
        %v2036 = vld [vmem:[%s429 + $0x97] sm:$0xff]
        %v2037 = vld [vmem:[%s429 + $0x9f] sm:$0xff]
        %v2038 = vld [vmem:[%s429 + $0xaf] sm:$0xff]
        %v2039 = vld [vmem:[%s429 + $0xb7] sm:$0xff]
        %v2040 = vld [vmem:[%s429 + $0xc7] sm:$0xff]
        %v2041 = vld [vmem:[%s429 + $0xcf] sm:$0xff]
        %v2042 = vld [vmem:[%s429 + $0xdf] sm:$0xff]
        %v2043 = vld [vmem:[%s429 + $0xe7] sm:$0xff]
        %v2044 = vld [vmem:[%s429 + $0xf7] sm:$0xff]
        %v2045 = vld [vmem:[%s429 + $0xff] sm:$0xff]
        %v2046 = vld [vmem:[%s429 + $0x10f] sm:$0xff]
        %v2047 = vld [vmem:[%s429 + $0x117] sm:$0xff]
        %v2048 = vld [vmem:[%s429 + $0x127] sm:$0xff]
        %v2049 = vld [vmem:[%s429 + $0x12f] sm:$0xff]
        %v2050 = vld [vmem:[%s429 + $0x13f] sm:$0xff]
        %v2051 = vld [vmem:[%s429 + $0x147] sm:$0xff]
        %v2052 = vld [vmem:[%s429 + $0x157] sm:$0xff]
        %v2053 = vld [vmem:[%s429 + $0x15f] sm:$0xff]
        %v2054 = vld [vmem:[%s429 + $0x16f] sm:$0xff]
        %v2055 = vld [vmem:[%s429 + $0x177] sm:$0xff]
        %v2056 = vld [vmem:[%s2 + $0xe] sm:$0x1]
        %v2057 = vlaneseq
        %v2058 = vshrl.u32 %v2057, 7
        %v2059 = vsub.s32 0, %v2058
        %v2060 = vrot.slane %v2056, %v2059
        %v2061 = vmul.f32 %v2024, %v2060
        %v2062 = vmul.f32 %v2025, %v2060
        %v2063 = vmul.f32 %v2026, %v2060
        %v2064 = vmul.f32 %v2027, %v2060
        %v2065 = vmul.f32 %v2028, %v2060
        %v2066 = vmul.f32 %v2029, %v2060
        %v2067 = vmul.f32 %v2030, %v2060
        %v2068 = vmul.f32 %v2031, %v2060
        %v2069 = vmul.f32 %v2032, %v2060
        %v2070 = vmul.f32 %v2033, %v2060
        %v2071 = vmul.f32 %v2034, %v2060
        %v2072 = vmul.f32 %v2035, %v2060
        %v2073 = vmul.f32 %v2036, %v2060
        %v2074 = vmul.f32 %v2037, %v2060
        %v2075 = vmul.f32 %v2038, %v2060
        %v2076 = vmul.f32 %v2039, %v2060
        %v2077 = vmul.f32 %v2040, %v2060
        %v2078 = vmul.f32 %v2041, %v2060
        %v2079 = vmul.f32 %v2042, %v2060
        %v2080 = vmul.f32 %v2043, %v2060
        %v2081 = vmul.f32 %v2044, %v2060
        %v2082 = vmul.f32 %v2045, %v2060
        %v2083 = vmul.f32 %v2046, %v2060
        %v2084 = vmul.f32 %v2047, %v2060
        %v2085 = vmul.f32 %v2048, %v2060
        %v2086 = vmul.f32 %v2049, %v2060
        %v2087 = vmul.f32 %v2050, %v2060
        %v2088 = vmul.f32 %v2051, %v2060
        %v2089 = vmul.f32 %v2052, %v2060
        %v2090 = vmul.f32 %v2053, %v2060
        %v2091 = vmul.f32 %v2054, %v2060
        %v2092 = vmul.f32 %v2055, %v2060
        %v2093 = vadd.f32 %v1992, %v2061
        %v2094 = vadd.f32 %v1993, %v2062
        %v2095 = vadd.f32 %v1994, %v2063
        %v2096 = vadd.f32 %v1995, %v2064
        %v2097 = vadd.f32 %v1996, %v2065
        %v2098 = vadd.f32 %v1997, %v2066
        %v2099 = vadd.f32 %v1998, %v2067
        %v2100 = vadd.f32 %v1999, %v2068
        %v2101 = vadd.f32 %v2000, %v2069
        %v2102 = vadd.f32 %v2001, %v2070
        %v2103 = vadd.f32 %v2002, %v2071
        %v2104 = vadd.f32 %v2003, %v2072
        %v2105 = vadd.f32 %v2004, %v2073
        %v2106 = vadd.f32 %v2005, %v2074
        %v2107 = vadd.f32 %v2006, %v2075
        %v2108 = vadd.f32 %v2007, %v2076
        %v2109 = vadd.f32 %v2008, %v2077
        %v2110 = vadd.f32 %v2009, %v2078
        %v2111 = vadd.f32 %v2010, %v2079
        %v2112 = vadd.f32 %v2011, %v2080
        %v2113 = vadd.f32 %v2012, %v2081
        %v2114 = vadd.f32 %v2013, %v2082
        %v2115 = vadd.f32 %v2014, %v2083
        %v2116 = vadd.f32 %v2015, %v2084
        %v2117 = vadd.f32 %v2016, %v2085
        %v2118 = vadd.f32 %v2017, %v2086
        %v2119 = vadd.f32 %v2018, %v2087
        %v2120 = vadd.f32 %v2019, %v2088
        %v2121 = vadd.f32 %v2020, %v2089
        %v2122 = vadd.f32 %v2021, %v2090
        %v2123 = vadd.f32 %v2022, %v2091
        %v2124 = vadd.f32 %v2023, %v2092
        %s2125 = scalar_lea.vmem [#allocation2], 168
        %v2126 = vld [vmem:[%s2125 + $0x1] sm:$0xff]
        %v2127 = vld [vmem:[%s2125 + $0x9] sm:$0xff]
        %v2128 = vld [vmem:[%s2125 + $0x19] sm:$0xff]
        %v2129 = vld [vmem:[%s2125 + $0x21] sm:$0xff]
        %v2130 = vld [vmem:[%s2125 + $0x31] sm:$0xff]
        %v2131 = vld [vmem:[%s2125 + $0x39] sm:$0xff]
        %v2132 = vld [vmem:[%s2125 + $0x49] sm:$0xff]
        %v2133 = vld [vmem:[%s2125 + $0x51] sm:$0xff]
        %v2134 = vld [vmem:[%s2125 + $0x61] sm:$0xff]
        %v2135 = vld [vmem:[%s2125 + $0x69] sm:$0xff]
        %v2136 = vld [vmem:[%s2125 + $0x79] sm:$0xff]
        %v2137 = vld [vmem:[%s2125 + $0x81] sm:$0xff]
        %v2138 = vld [vmem:[%s2125 + $0x91] sm:$0xff]
        %v2139 = vld [vmem:[%s2125 + $0x99] sm:$0xff]
        %v2140 = vld [vmem:[%s2125 + $0xa9] sm:$0xff]
        %v2141 = vld [vmem:[%s2125 + $0xb1] sm:$0xff]
        %v2142 = vld [vmem:[%s2125 + $0xc1] sm:$0xff]
        %v2143 = vld [vmem:[%s2125 + $0xc9] sm:$0xff]
        %v2144 = vld [vmem:[%s2125 + $0xd9] sm:$0xff]
        %v2145 = vld [vmem:[%s2125 + $0xe1] sm:$0xff]
        %v2146 = vld [vmem:[%s2125 + $0xf1] sm:$0xff]
        %v2147 = vld [vmem:[%s2125 + $0xf9] sm:$0xff]
        %v2148 = vld [vmem:[%s2125 + $0x109] sm:$0xff]
        %v2149 = vld [vmem:[%s2125 + $0x111] sm:$0xff]
        %v2150 = vld [vmem:[%s2125 + $0x121] sm:$0xff]
        %v2151 = vld [vmem:[%s2125 + $0x129] sm:$0xff]
        %v2152 = vld [vmem:[%s2125 + $0x139] sm:$0xff]
        %v2153 = vld [vmem:[%s2125 + $0x141] sm:$0xff]
        %v2154 = vld [vmem:[%s2125 + $0x151] sm:$0xff]
        %v2155 = vld [vmem:[%s2125 + $0x159] sm:$0xff]
        %v2156 = vld [vmem:[%s2125 + $0x169] sm:$0xff]
        %v2157 = vld [vmem:[%s2125 + $0x171] sm:$0xff]
        %v2158 = vld [vmem:[%s2 + $0xf] sm:$0x1]
        %v2159 = vlaneseq
        %v2160 = vshrl.u32 %v2159, 7
        %v2161 = vsub.s32 0, %v2160
        %v2162 = vrot.slane %v2158, %v2161
        %v2163 = vmul.f32 %v2126, %v2162
        %v2164 = vmul.f32 %v2127, %v2162
        %v2165 = vmul.f32 %v2128, %v2162
        %v2166 = vmul.f32 %v2129, %v2162
        %v2167 = vmul.f32 %v2130, %v2162
        %v2168 = vmul.f32 %v2131, %v2162
        %v2169 = vmul.f32 %v2132, %v2162
        %v2170 = vmul.f32 %v2133, %v2162
        %v2171 = vmul.f32 %v2134, %v2162
        %v2172 = vmul.f32 %v2135, %v2162
        %v2173 = vmul.f32 %v2136, %v2162
        %v2174 = vmul.f32 %v2137, %v2162
        %v2175 = vmul.f32 %v2138, %v2162
        %v2176 = vmul.f32 %v2139, %v2162
        %v2177 = vmul.f32 %v2140, %v2162
        %v2178 = vmul.f32 %v2141, %v2162
        %v2179 = vmul.f32 %v2142, %v2162
        %v2180 = vmul.f32 %v2143, %v2162
        %v2181 = vmul.f32 %v2144, %v2162
        %v2182 = vmul.f32 %v2145, %v2162
        %v2183 = vmul.f32 %v2146, %v2162
        %v2184 = vmul.f32 %v2147, %v2162
        %v2185 = vmul.f32 %v2148, %v2162
        %v2186 = vmul.f32 %v2149, %v2162
        %v2187 = vmul.f32 %v2150, %v2162
        %v2188 = vmul.f32 %v2151, %v2162
        %v2189 = vmul.f32 %v2152, %v2162
        %v2190 = vmul.f32 %v2153, %v2162
        %v2191 = vmul.f32 %v2154, %v2162
        %v2192 = vmul.f32 %v2155, %v2162
        %v2193 = vmul.f32 %v2156, %v2162
        %v2194 = vmul.f32 %v2157, %v2162
        %v2195 = vadd.f32 %v2093, %v2163
        %v2196 = vadd.f32 %v2094, %v2164
        %v2197 = vadd.f32 %v2095, %v2165
        %v2198 = vadd.f32 %v2096, %v2166
        %v2199 = vadd.f32 %v2097, %v2167
        %v2200 = vadd.f32 %v2098, %v2168
        %v2201 = vadd.f32 %v2099, %v2169
        %v2202 = vadd.f32 %v2100, %v2170
        %v2203 = vadd.f32 %v2101, %v2171
        %v2204 = vadd.f32 %v2102, %v2172
        %v2205 = vadd.f32 %v2103, %v2173
        %v2206 = vadd.f32 %v2104, %v2174
        %v2207 = vadd.f32 %v2105, %v2175
        %v2208 = vadd.f32 %v2106, %v2176
        %v2209 = vadd.f32 %v2107, %v2177
        %v2210 = vadd.f32 %v2108, %v2178
        %v2211 = vadd.f32 %v2109, %v2179
        %v2212 = vadd.f32 %v2110, %v2180
        %v2213 = vadd.f32 %v2111, %v2181
        %v2214 = vadd.f32 %v2112, %v2182
        %v2215 = vadd.f32 %v2113, %v2183
        %v2216 = vadd.f32 %v2114, %v2184
        %v2217 = vadd.f32 %v2115, %v2185
        %v2218 = vadd.f32 %v2116, %v2186
        %v2219 = vadd.f32 %v2117, %v2187
        %v2220 = vadd.f32 %v2118, %v2188
        %v2221 = vadd.f32 %v2119, %v2189
        %v2222 = vadd.f32 %v2120, %v2190
        %v2223 = vadd.f32 %v2121, %v2191
        %v2224 = vadd.f32 %v2122, %v2192
        %v2225 = vadd.f32 %v2123, %v2193
        %v2226 = vadd.f32 %v2124, %v2194
        %v2227 = vld [vmem:[%s2125 + $0x4] sm:$0xff]
        %v2228 = vld [vmem:[%s2125 + $0xc] sm:$0xff]
        %v2229 = vld [vmem:[%s2125 + $0x1c] sm:$0xff]
        %v2230 = vld [vmem:[%s2125 + $0x24] sm:$0xff]
        %v2231 = vld [vmem:[%s2125 + $0x34] sm:$0xff]
        %v2232 = vld [vmem:[%s2125 + $0x3c] sm:$0xff]
        %v2233 = vld [vmem:[%s2125 + $0x4c] sm:$0xff]
        %v2234 = vld [vmem:[%s2125 + $0x54] sm:$0xff]
        %v2235 = vld [vmem:[%s2125 + $0x64] sm:$0xff]
        %v2236 = vld [vmem:[%s2125 + $0x6c] sm:$0xff]
        %v2237 = vld [vmem:[%s2125 + $0x7c] sm:$0xff]
        %v2238 = vld [vmem:[%s2125 + $0x84] sm:$0xff]
        %v2239 = vld [vmem:[%s2125 + $0x94] sm:$0xff]
        %v2240 = vld [vmem:[%s2125 + $0x9c] sm:$0xff]
        %v2241 = vld [vmem:[%s2125 + $0xac] sm:$0xff]
        %v2242 = vld [vmem:[%s2125 + $0xb4] sm:$0xff]
        %v2243 = vld [vmem:[%s2125 + $0xc4] sm:$0xff]
        %v2244 = vld [vmem:[%s2125 + $0xcc] sm:$0xff]
        %v2245 = vld [vmem:[%s2125 + $0xdc] sm:$0xff]
        %v2246 = vld [vmem:[%s2125 + $0xe4] sm:$0xff]
        %v2247 = vld [vmem:[%s2125 + $0xf4] sm:$0xff]
        %v2248 = vld [vmem:[%s2125 + $0xfc] sm:$0xff]
        %v2249 = vld [vmem:[%s2125 + $0x10c] sm:$0xff]
        %v2250 = vld [vmem:[%s2125 + $0x114] sm:$0xff]
        %v2251 = vld [vmem:[%s2125 + $0x124] sm:$0xff]
        %v2252 = vld [vmem:[%s2125 + $0x12c] sm:$0xff]
        %v2253 = vld [vmem:[%s2125 + $0x13c] sm:$0xff]
        %v2254 = vld [vmem:[%s2125 + $0x144] sm:$0xff]
        %v2255 = vld [vmem:[%s2125 + $0x154] sm:$0xff]
        %v2256 = vld [vmem:[%s2125 + $0x15c] sm:$0xff]
        %v2257 = vld [vmem:[%s2125 + $0x16c] sm:$0xff]
        %v2258 = vld [vmem:[%s2125 + $0x174] sm:$0xff]
        %v2259 = vld [vmem:[%s2 + $0x10] sm:$0x1]
        %v2260 = vlaneseq
        %v2261 = vshrl.u32 %v2260, 7
        %v2262 = vsub.s32 0, %v2261
        %v2263 = vrot.slane %v2259, %v2262
        %v2264 = vmul.f32 %v2227, %v2263
        %v2265 = vmul.f32 %v2228, %v2263
        %v2266 = vmul.f32 %v2229, %v2263
        %v2267 = vmul.f32 %v2230, %v2263
        %v2268 = vmul.f32 %v2231, %v2263
        %v2269 = vmul.f32 %v2232, %v2263
        %v2270 = vmul.f32 %v2233, %v2263
        %v2271 = vmul.f32 %v2234, %v2263
        %v2272 = vmul.f32 %v2235, %v2263
        %v2273 = vmul.f32 %v2236, %v2263
        %v2274 = vmul.f32 %v2237, %v2263
        %v2275 = vmul.f32 %v2238, %v2263
        %v2276 = vmul.f32 %v2239, %v2263
        %v2277 = vmul.f32 %v2240, %v2263
        %v2278 = vmul.f32 %v2241, %v2263
        %v2279 = vmul.f32 %v2242, %v2263
        %v2280 = vmul.f32 %v2243, %v2263
        %v2281 = vmul.f32 %v2244, %v2263
        %v2282 = vmul.f32 %v2245, %v2263
        %v2283 = vmul.f32 %v2246, %v2263
        %v2284 = vmul.f32 %v2247, %v2263
        %v2285 = vmul.f32 %v2248, %v2263
        %v2286 = vmul.f32 %v2249, %v2263
        %v2287 = vmul.f32 %v2250, %v2263
        %v2288 = vmul.f32 %v2251, %v2263
        %v2289 = vmul.f32 %v2252, %v2263
        %v2290 = vmul.f32 %v2253, %v2263
        %v2291 = vmul.f32 %v2254, %v2263
        %v2292 = vmul.f32 %v2255, %v2263
        %v2293 = vmul.f32 %v2256, %v2263
        %v2294 = vmul.f32 %v2257, %v2263
        %v2295 = vmul.f32 %v2258, %v2263
        %v2296 = vadd.f32 %v2195, %v2264
        %v2297 = vadd.f32 %v2196, %v2265
        %v2298 = vadd.f32 %v2197, %v2266
        %v2299 = vadd.f32 %v2198, %v2267
        %v2300 = vadd.f32 %v2199, %v2268
        %v2301 = vadd.f32 %v2200, %v2269
        %v2302 = vadd.f32 %v2201, %v2270
        %v2303 = vadd.f32 %v2202, %v2271
        %v2304 = vadd.f32 %v2203, %v2272
        %v2305 = vadd.f32 %v2204, %v2273
        %v2306 = vadd.f32 %v2205, %v2274
        %v2307 = vadd.f32 %v2206, %v2275
        %v2308 = vadd.f32 %v2207, %v2276
        %v2309 = vadd.f32 %v2208, %v2277
        %v2310 = vadd.f32 %v2209, %v2278
        %v2311 = vadd.f32 %v2210, %v2279
        %v2312 = vadd.f32 %v2211, %v2280
        %v2313 = vadd.f32 %v2212, %v2281
        %v2314 = vadd.f32 %v2213, %v2282
        %v2315 = vadd.f32 %v2214, %v2283
        %v2316 = vadd.f32 %v2215, %v2284
        %v2317 = vadd.f32 %v2216, %v2285
        %v2318 = vadd.f32 %v2217, %v2286
        %v2319 = vadd.f32 %v2218, %v2287
        %v2320 = vadd.f32 %v2219, %v2288
        %v2321 = vadd.f32 %v2220, %v2289
        %v2322 = vadd.f32 %v2221, %v2290
        %v2323 = vadd.f32 %v2222, %v2291
        %v2324 = vadd.f32 %v2223, %v2292
        %v2325 = vadd.f32 %v2224, %v2293
        %v2326 = vadd.f32 %v2225, %v2294
        %v2327 = vadd.f32 %v2226, %v2295
        %v2328 = vld [vmem:[%s2125 + $0x7] sm:$0xff]
        %v2329 = vld [vmem:[%s2125 + $0xf] sm:$0xff]
        %v2330 = vld [vmem:[%s2125 + $0x1f] sm:$0xff]
        %v2331 = vld [vmem:[%s2125 + $0x27] sm:$0xff]
        %v2332 = vld [vmem:[%s2125 + $0x37] sm:$0xff]
        %v2333 = vld [vmem:[%s2125 + $0x3f] sm:$0xff]
        %v2334 = vld [vmem:[%s2125 + $0x4f] sm:$0xff]
        %v2335 = vld [vmem:[%s2125 + $0x57] sm:$0xff]
        %v2336 = vld [vmem:[%s2125 + $0x67] sm:$0xff]
        %v2337 = vld [vmem:[%s2125 + $0x6f] sm:$0xff]
        %v2338 = vld [vmem:[%s2125 + $0x7f] sm:$0xff]
        %v2339 = vld [vmem:[%s2125 + $0x87] sm:$0xff]
        %v2340 = vld [vmem:[%s2125 + $0x97] sm:$0xff]
        %v2341 = vld [vmem:[%s2125 + $0x9f] sm:$0xff]
        %v2342 = vld [vmem:[%s2125 + $0xaf] sm:$0xff]
        %v2343 = vld [vmem:[%s2125 + $0xb7] sm:$0xff]
        %v2344 = vld [vmem:[%s2125 + $0xc7] sm:$0xff]
        %v2345 = vld [vmem:[%s2125 + $0xcf] sm:$0xff]
        %v2346 = vld [vmem:[%s2125 + $0xdf] sm:$0xff]
        %v2347 = vld [vmem:[%s2125 + $0xe7] sm:$0xff]
        %v2348 = vld [vmem:[%s2125 + $0xf7] sm:$0xff]
        %v2349 = vld [vmem:[%s2125 + $0xff] sm:$0xff]
        %v2350 = vld [vmem:[%s2125 + $0x10f] sm:$0xff]
        %v2351 = vld [vmem:[%s2125 + $0x117] sm:$0xff]
        %v2352 = vld [vmem:[%s2125 + $0x127] sm:$0xff]
        %v2353 = vld [vmem:[%s2125 + $0x12f] sm:$0xff]
        %v2354 = vld [vmem:[%s2125 + $0x13f] sm:$0xff]
        %v2355 = vld [vmem:[%s2125 + $0x147] sm:$0xff]
        %v2356 = vld [vmem:[%s2125 + $0x157] sm:$0xff]
        %v2357 = vld [vmem:[%s2125 + $0x15f] sm:$0xff]
        %v2358 = vld [vmem:[%s2125 + $0x16f] sm:$0xff]
        %v2359 = vld [vmem:[%s2125 + $0x177] sm:$0xff]
        %v2360 = vld [vmem:[%s2 + $0x11] sm:$0x1]
        %v2361 = vlaneseq
        %v2362 = vshrl.u32 %v2361, 7
        %v2363 = vsub.s32 0, %v2362
        %v2364 = vrot.slane %v2360, %v2363
        %v2365 = vmul.f32 %v2328, %v2364
        %v2366 = vmul.f32 %v2329, %v2364
        %v2367 = vmul.f32 %v2330, %v2364
        %v2368 = vmul.f32 %v2331, %v2364
        %v2369 = vmul.f32 %v2332, %v2364
        %v2370 = vmul.f32 %v2333, %v2364
        %v2371 = vmul.f32 %v2334, %v2364
        %v2372 = vmul.f32 %v2335, %v2364
        %v2373 = vmul.f32 %v2336, %v2364
        %v2374 = vmul.f32 %v2337, %v2364
        %v2375 = vmul.f32 %v2338, %v2364
        %v2376 = vmul.f32 %v2339, %v2364
        %v2377 = vmul.f32 %v2340, %v2364
        %v2378 = vmul.f32 %v2341, %v2364
        %v2379 = vmul.f32 %v2342, %v2364
        %v2380 = vmul.f32 %v2343, %v2364
        %v2381 = vmul.f32 %v2344, %v2364
        %v2382 = vmul.f32 %v2345, %v2364
        %v2383 = vmul.f32 %v2346, %v2364
        %v2384 = vmul.f32 %v2347, %v2364
        %v2385 = vmul.f32 %v2348, %v2364
        %v2386 = vmul.f32 %v2349, %v2364
        %v2387 = vmul.f32 %v2350, %v2364
        %v2388 = vmul.f32 %v2351, %v2364
        %v2389 = vmul.f32 %v2352, %v2364
        %v2390 = vmul.f32 %v2353, %v2364
        %v2391 = vmul.f32 %v2354, %v2364
        %v2392 = vmul.f32 %v2355, %v2364
        %v2393 = vmul.f32 %v2356, %v2364
        %v2394 = vmul.f32 %v2357, %v2364
        %v2395 = vmul.f32 %v2358, %v2364
        %v2396 = vmul.f32 %v2359, %v2364
        %v2397 = vadd.f32 %v2296, %v2365
        %v2398 = vadd.f32 %v2297, %v2366
        %v2399 = vadd.f32 %v2298, %v2367
        %v2400 = vadd.f32 %v2299, %v2368
        %v2401 = vadd.f32 %v2300, %v2369
        %v2402 = vadd.f32 %v2301, %v2370
        %v2403 = vadd.f32 %v2302, %v2371
        %v2404 = vadd.f32 %v2303, %v2372
        %v2405 = vadd.f32 %v2304, %v2373
        %v2406 = vadd.f32 %v2305, %v2374
        %v2407 = vadd.f32 %v2306, %v2375
        %v2408 = vadd.f32 %v2307, %v2376
        %v2409 = vadd.f32 %v2308, %v2377
        %v2410 = vadd.f32 %v2309, %v2378
        %v2411 = vadd.f32 %v2310, %v2379
        %v2412 = vadd.f32 %v2311, %v2380
        %v2413 = vadd.f32 %v2312, %v2381
        %v2414 = vadd.f32 %v2313, %v2382
        %v2415 = vadd.f32 %v2314, %v2383
        %v2416 = vadd.f32 %v2315, %v2384
        %v2417 = vadd.f32 %v2316, %v2385
        %v2418 = vadd.f32 %v2317, %v2386
        %v2419 = vadd.f32 %v2318, %v2387
        %v2420 = vadd.f32 %v2319, %v2388
        %v2421 = vadd.f32 %v2320, %v2389
        %v2422 = vadd.f32 %v2321, %v2390
        %v2423 = vadd.f32 %v2322, %v2391
        %v2424 = vadd.f32 %v2323, %v2392
        %v2425 = vadd.f32 %v2324, %v2393
        %v2426 = vadd.f32 %v2325, %v2394
        %v2427 = vadd.f32 %v2326, %v2395
        %v2428 = vadd.f32 %v2327, %v2396
        %v2429 = vld [vmem:[%s3 + $0x2] sm:$0x1]
        %v2430 = vlaneseq
        %v2431 = vshrl.u32 %v2430, 7
        %v2432 = vsub.s32 0, %v2431
        %v2433 = vrot.slane %v2429, %v2432
        %v2434 = vadd.f32 %v2397, %v2433
        %v2435 = vadd.f32 %v2398, %v2433
        %v2436 = vadd.f32 %v2399, %v2433
        %v2437 = vadd.f32 %v2400, %v2433
        %v2438 = vadd.f32 %v2401, %v2433
        %v2439 = vadd.f32 %v2402, %v2433
        %v2440 = vadd.f32 %v2403, %v2433
        %v2441 = vadd.f32 %v2404, %v2433
        %v2442 = vadd.f32 %v2405, %v2433
        %v2443 = vadd.f32 %v2406, %v2433
        %v2444 = vadd.f32 %v2407, %v2433
        %v2445 = vadd.f32 %v2408, %v2433
        %v2446 = vadd.f32 %v2409, %v2433
        %v2447 = vadd.f32 %v2410, %v2433
        %v2448 = vadd.f32 %v2411, %v2433
        %v2449 = vadd.f32 %v2412, %v2433
        %v2450 = vadd.f32 %v2413, %v2433
        %v2451 = vadd.f32 %v2414, %v2433
        %v2452 = vadd.f32 %v2415, %v2433
        %v2453 = vadd.f32 %v2416, %v2433
        %v2454 = vadd.f32 %v2417, %v2433
        %v2455 = vadd.f32 %v2418, %v2433
        %v2456 = vadd.f32 %v2419, %v2433
        %v2457 = vadd.f32 %v2420, %v2433
        %v2458 = vadd.f32 %v2421, %v2433
        %v2459 = vadd.f32 %v2422, %v2433
        %v2460 = vadd.f32 %v2423, %v2433
        %v2461 = vadd.f32 %v2424, %v2433
        %v2462 = vadd.f32 %v2425, %v2433
        %v2463 = vadd.f32 %v2426, %v2433
        %v2464 = vadd.f32 %v2427, %v2433
        %v2465 = vadd.f32 %v2428, %v2433
        %v2466 = vmax.f32 %v2434, 0.0
        %v2467 = vmax.f32 %v2435, 0.0
        %v2468 = vmax.f32 %v2436, 0.0
        %v2469 = vmax.f32 %v2437, 0.0
        %v2470 = vmax.f32 %v2438, 0.0
        %v2471 = vmax.f32 %v2439, 0.0
        %v2472 = vmax.f32 %v2440, 0.0
        %v2473 = vmax.f32 %v2441, 0.0
        %v2474 = vmax.f32 %v2442, 0.0
        %v2475 = vmax.f32 %v2443, 0.0
        %v2476 = vmax.f32 %v2444, 0.0
        %v2477 = vmax.f32 %v2445, 0.0
        %v2478 = vmax.f32 %v2446, 0.0
        %v2479 = vmax.f32 %v2447, 0.0
        %v2480 = vmax.f32 %v2448, 0.0
        %v2481 = vmax.f32 %v2449, 0.0
        %v2482 = vmax.f32 %v2450, 0.0
        %v2483 = vmax.f32 %v2451, 0.0
        %v2484 = vmax.f32 %v2452, 0.0
        %v2485 = vmax.f32 %v2453, 0.0
        %v2486 = vmax.f32 %v2454, 0.0
        %v2487 = vmax.f32 %v2455, 0.0
        %v2488 = vmax.f32 %v2456, 0.0
        %v2489 = vmax.f32 %v2457, 0.0
        %v2490 = vmax.f32 %v2458, 0.0
        %v2491 = vmax.f32 %v2459, 0.0
        %v2492 = vmax.f32 %v2460, 0.0
        %v2493 = vmax.f32 %v2461, 0.0
        %v2494 = vmax.f32 %v2462, 0.0
        %v2495 = vmax.f32 %v2463, 0.0
        %v2496 = vmax.f32 %v2464, 0.0
        %v2497 = vmax.f32 %v2465, 0.0
        %v2498 = vld [vmem:[#allocation2] sm:$0xff]
        %v2499 = vld [vmem:[#allocation2 + $0x8] sm:$0xff]
        %v2500 = vld [vmem:[#allocation2 + $0x18] sm:$0xff]
        %v2501 = vld [vmem:[#allocation2 + $0x20] sm:$0xff]
        %v2502 = vld [vmem:[#allocation2 + $0x30] sm:$0xff]
        %v2503 = vld [vmem:[#allocation2 + $0x38] sm:$0xff]
        %v2504 = vld [vmem:[#allocation2 + $0x48] sm:$0xff]
        %v2505 = vld [vmem:[#allocation2 + $0x50] sm:$0xff]
        %v2506 = vld [vmem:[#allocation2 + $0x60] sm:$0xff]
        %v2507 = vld [vmem:[#allocation2 + $0x68] sm:$0xff]
        %v2508 = vld [vmem:[#allocation2 + $0x78] sm:$0xff]
        %v2509 = vld [vmem:[#allocation2 + $0x80] sm:$0xff]
        %v2510 = vld [vmem:[#allocation2 + $0x90] sm:$0xff]
        %v2511 = vld [vmem:[#allocation2 + $0x98] sm:$0xff]
        %v2512 = vld [vmem:[#allocation2 + $0xa8] sm:$0xff]
        %v2513 = vld [vmem:[#allocation2 + $0xb0] sm:$0xff]
        %v2514 = vld [vmem:[#allocation2 + $0xc0] sm:$0xff]
        %v2515 = vld [vmem:[#allocation2 + $0xc8] sm:$0xff]
        %v2516 = vld [vmem:[#allocation2 + $0xd8] sm:$0xff]
        %v2517 = vld [vmem:[#allocation2 + $0xe0] sm:$0xff]
        %v2518 = vld [vmem:[#allocation2 + $0xf0] sm:$0xff]
        %v2519 = vld [vmem:[#allocation2 + $0xf8] sm:$0xff]
        %v2520 = vld [vmem:[#allocation2 + $0x108] sm:$0xff]
        %v2521 = vld [vmem:[#allocation2 + $0x110] sm:$0xff]
        %v2522 = vld [vmem:[#allocation2 + $0x120] sm:$0xff]
        %v2523 = vld [vmem:[#allocation2 + $0x128] sm:$0xff]
        %v2524 = vld [vmem:[#allocation2 + $0x138] sm:$0xff]
        %v2525 = vld [vmem:[#allocation2 + $0x140] sm:$0xff]
        %v2526 = vld [vmem:[#allocation2 + $0x150] sm:$0xff]
        %v2527 = vld [vmem:[#allocation2 + $0x158] sm:$0xff]
        %v2528 = vld [vmem:[#allocation2 + $0x168] sm:$0xff]
        %v2529 = vld [vmem:[#allocation2 + $0x170] sm:$0xff]
        %v2530 = vld [vmem:[%s2 + $0x12] sm:$0x1]
        %v2531 = vlaneseq
        %v2532 = vshrl.u32 %v2531, 7
        %v2533 = vsub.s32 0, %v2532
        %v2534 = vrot.slane %v2530, %v2533
        %v2535 = vmul.f32 %v2498, %v2534
        %v2536 = vmul.f32 %v2499, %v2534
        %v2537 = vmul.f32 %v2500, %v2534
        %v2538 = vmul.f32 %v2501, %v2534
        %v2539 = vmul.f32 %v2502, %v2534
        %v2540 = vmul.f32 %v2503, %v2534
        %v2541 = vmul.f32 %v2504, %v2534
        %v2542 = vmul.f32 %v2505, %v2534
        %v2543 = vmul.f32 %v2506, %v2534
        %v2544 = vmul.f32 %v2507, %v2534
        %v2545 = vmul.f32 %v2508, %v2534
        %v2546 = vmul.f32 %v2509, %v2534
        %v2547 = vmul.f32 %v2510, %v2534
        %v2548 = vmul.f32 %v2511, %v2534
        %v2549 = vmul.f32 %v2512, %v2534
        %v2550 = vmul.f32 %v2513, %v2534
        %v2551 = vmul.f32 %v2514, %v2534
        %v2552 = vmul.f32 %v2515, %v2534
        %v2553 = vmul.f32 %v2516, %v2534
        %v2554 = vmul.f32 %v2517, %v2534
        %v2555 = vmul.f32 %v2518, %v2534
        %v2556 = vmul.f32 %v2519, %v2534
        %v2557 = vmul.f32 %v2520, %v2534
        %v2558 = vmul.f32 %v2521, %v2534
        %v2559 = vmul.f32 %v2522, %v2534
        %v2560 = vmul.f32 %v2523, %v2534
        %v2561 = vmul.f32 %v2524, %v2534
        %v2562 = vmul.f32 %v2525, %v2534
        %v2563 = vmul.f32 %v2526, %v2534
        %v2564 = vmul.f32 %v2527, %v2534
        %v2565 = vmul.f32 %v2528, %v2534
        %v2566 = vmul.f32 %v2529, %v2534
        %v2567 = vadd.f32 %v2535, 0.0
        %v2568 = vadd.f32 %v2536, 0.0
        %v2569 = vadd.f32 %v2537, 0.0
        %v2570 = vadd.f32 %v2538, 0.0
        %v2571 = vadd.f32 %v2539, 0.0
        %v2572 = vadd.f32 %v2540, 0.0
        %v2573 = vadd.f32 %v2541, 0.0
        %v2574 = vadd.f32 %v2542, 0.0
        %v2575 = vadd.f32 %v2543, 0.0
        %v2576 = vadd.f32 %v2544, 0.0
        %v2577 = vadd.f32 %v2545, 0.0
        %v2578 = vadd.f32 %v2546, 0.0
        %v2579 = vadd.f32 %v2547, 0.0
        %v2580 = vadd.f32 %v2548, 0.0
        %v2581 = vadd.f32 %v2549, 0.0
        %v2582 = vadd.f32 %v2550, 0.0
        %v2583 = vadd.f32 %v2551, 0.0
        %v2584 = vadd.f32 %v2552, 0.0
        %v2585 = vadd.f32 %v2553, 0.0
        %v2586 = vadd.f32 %v2554, 0.0
        %v2587 = vadd.f32 %v2555, 0.0
        %v2588 = vadd.f32 %v2556, 0.0
        %v2589 = vadd.f32 %v2557, 0.0
        %v2590 = vadd.f32 %v2558, 0.0
        %v2591 = vadd.f32 %v2559, 0.0
        %v2592 = vadd.f32 %v2560, 0.0
        %v2593 = vadd.f32 %v2561, 0.0
        %v2594 = vadd.f32 %v2562, 0.0
        %v2595 = vadd.f32 %v2563, 0.0
        %v2596 = vadd.f32 %v2564, 0.0
        %v2597 = vadd.f32 %v2565, 0.0
        %v2598 = vadd.f32 %v2566, 0.0
        %v2599 = vld [vmem:[#allocation2 + $0x4] sm:$0xff]
        %v2600 = vld [vmem:[#allocation2 + $0xc] sm:$0xff]
        %v2601 = vld [vmem:[#allocation2 + $0x1c] sm:$0xff]
        %v2602 = vld [vmem:[#allocation2 + $0x24] sm:$0xff]
        %v2603 = vld [vmem:[#allocation2 + $0x34] sm:$0xff]
        %v2604 = vld [vmem:[#allocation2 + $0x3c] sm:$0xff]
        %v2605 = vld [vmem:[#allocation2 + $0x4c] sm:$0xff]
        %v2606 = vld [vmem:[#allocation2 + $0x54] sm:$0xff]
        %v2607 = vld [vmem:[#allocation2 + $0x64] sm:$0xff]
        %v2608 = vld [vmem:[#allocation2 + $0x6c] sm:$0xff]
        %v2609 = vld [vmem:[#allocation2 + $0x7c] sm:$0xff]
        %v2610 = vld [vmem:[#allocation2 + $0x84] sm:$0xff]
        %v2611 = vld [vmem:[#allocation2 + $0x94] sm:$0xff]
        %v2612 = vld [vmem:[#allocation2 + $0x9c] sm:$0xff]
        %v2613 = vld [vmem:[#allocation2 + $0xac] sm:$0xff]
        %v2614 = vld [vmem:[#allocation2 + $0xb4] sm:$0xff]
        %v2615 = vld [vmem:[#allocation2 + $0xc4] sm:$0xff]
        %v2616 = vld [vmem:[#allocation2 + $0xcc] sm:$0xff]
        %v2617 = vld [vmem:[#allocation2 + $0xdc] sm:$0xff]
        %v2618 = vld [vmem:[#allocation2 + $0xe4] sm:$0xff]
        %v2619 = vld [vmem:[#allocation2 + $0xf4] sm:$0xff]
        %v2620 = vld [vmem:[#allocation2 + $0xfc] sm:$0xff]
        %v2621 = vld [vmem:[#allocation2 + $0x10c] sm:$0xff]
        %v2622 = vld [vmem:[#allocation2 + $0x114] sm:$0xff]
        %v2623 = vld [vmem:[#allocation2 + $0x124] sm:$0xff]
        %v2624 = vld [vmem:[#allocation2 + $0x12c] sm:$0xff]
        %v2625 = vld [vmem:[#allocation2 + $0x13c] sm:$0xff]
        %v2626 = vld [vmem:[#allocation2 + $0x144] sm:$0xff]
        %v2627 = vld [vmem:[#allocation2 + $0x154] sm:$0xff]
        %v2628 = vld [vmem:[#allocation2 + $0x15c] sm:$0xff]
        %v2629 = vld [vmem:[#allocation2 + $0x16c] sm:$0xff]
        %v2630 = vld [vmem:[#allocation2 + $0x174] sm:$0xff]
        %v2631 = vld [vmem:[%s2 + $0x13] sm:$0x1]
        %v2632 = vlaneseq
        %v2633 = vshrl.u32 %v2632, 7
        %v2634 = vsub.s32 0, %v2633
        %v2635 = vrot.slane %v2631, %v2634
        %v2636 = vmul.f32 %v2599, %v2635
        %v2637 = vmul.f32 %v2600, %v2635
        %v2638 = vmul.f32 %v2601, %v2635
        %v2639 = vmul.f32 %v2602, %v2635
        %v2640 = vmul.f32 %v2603, %v2635
        %v2641 = vmul.f32 %v2604, %v2635
        %v2642 = vmul.f32 %v2605, %v2635
        %v2643 = vmul.f32 %v2606, %v2635
        %v2644 = vmul.f32 %v2607, %v2635
        %v2645 = vmul.f32 %v2608, %v2635
        %v2646 = vmul.f32 %v2609, %v2635
        %v2647 = vmul.f32 %v2610, %v2635
        %v2648 = vmul.f32 %v2611, %v2635
        %v2649 = vmul.f32 %v2612, %v2635
        %v2650 = vmul.f32 %v2613, %v2635
        %v2651 = vmul.f32 %v2614, %v2635
        %v2652 = vmul.f32 %v2615, %v2635
        %v2653 = vmul.f32 %v2616, %v2635
        %v2654 = vmul.f32 %v2617, %v2635
        %v2655 = vmul.f32 %v2618, %v2635
        %v2656 = vmul.f32 %v2619, %v2635
        %v2657 = vmul.f32 %v2620, %v2635
        %v2658 = vmul.f32 %v2621, %v2635
        %v2659 = vmul.f32 %v2622, %v2635
        %v2660 = vmul.f32 %v2623, %v2635
        %v2661 = vmul.f32 %v2624, %v2635
        %v2662 = vmul.f32 %v2625, %v2635
        %v2663 = vmul.f32 %v2626, %v2635
        %v2664 = vmul.f32 %v2627, %v2635
        %v2665 = vmul.f32 %v2628, %v2635
        %v2666 = vmul.f32 %v2629, %v2635
        %v2667 = vmul.f32 %v2630, %v2635
        %v2668 = vadd.f32 %v2567, %v2636
        %v2669 = vadd.f32 %v2568, %v2637
        %v2670 = vadd.f32 %v2569, %v2638
        %v2671 = vadd.f32 %v2570, %v2639
        %v2672 = vadd.f32 %v2571, %v2640
        %v2673 = vadd.f32 %v2572, %v2641
        %v2674 = vadd.f32 %v2573, %v2642
        %v2675 = vadd.f32 %v2574, %v2643
        %v2676 = vadd.f32 %v2575, %v2644
        %v2677 = vadd.f32 %v2576, %v2645
        %v2678 = vadd.f32 %v2577, %v2646
        %v2679 = vadd.f32 %v2578, %v2647
        %v2680 = vadd.f32 %v2579, %v2648
        %v2681 = vadd.f32 %v2580, %v2649
        %v2682 = vadd.f32 %v2581, %v2650
        %v2683 = vadd.f32 %v2582, %v2651
        %v2684 = vadd.f32 %v2583, %v2652
        %v2685 = vadd.f32 %v2584, %v2653
        %v2686 = vadd.f32 %v2585, %v2654
        %v2687 = vadd.f32 %v2586, %v2655
        %v2688 = vadd.f32 %v2587, %v2656
        %v2689 = vadd.f32 %v2588, %v2657
        %v2690 = vadd.f32 %v2589, %v2658
        %v2691 = vadd.f32 %v2590, %v2659
        %v2692 = vadd.f32 %v2591, %v2660
        %v2693 = vadd.f32 %v2592, %v2661
        %v2694 = vadd.f32 %v2593, %v2662
        %v2695 = vadd.f32 %v2594, %v2663
        %v2696 = vadd.f32 %v2595, %v2664
        %v2697 = vadd.f32 %v2596, %v2665
        %v2698 = vadd.f32 %v2597, %v2666
        %v2699 = vadd.f32 %v2598, %v2667
        %v2700 = vld [vmem:[#allocation2 + $0x10] sm:$0xff]
        %v2701 = vld [vmem:[#allocation2 + $0x28] sm:$0xff]
        %v2702 = vld [vmem:[#allocation2 + $0x40] sm:$0xff]
        %v2703 = vld [vmem:[#allocation2 + $0x58] sm:$0xff]
        %v2704 = vld [vmem:[#allocation2 + $0x70] sm:$0xff]
        %v2705 = vld [vmem:[#allocation2 + $0x88] sm:$0xff]
        %v2706 = vld [vmem:[#allocation2 + $0xa0] sm:$0xff]
        %v2707 = vld [vmem:[#allocation2 + $0xb8] sm:$0xff]
        %v2708 = vld [vmem:[#allocation2 + $0xd0] sm:$0xff]
        %v2709 = vld [vmem:[#allocation2 + $0xe8] sm:$0xff]
        %v2710 = vld [vmem:[#allocation2 + $0x100] sm:$0xff]
        %v2711 = vld [vmem:[#allocation2 + $0x118] sm:$0xff]
        %v2712 = vld [vmem:[#allocation2 + $0x130] sm:$0xff]
        %v2713 = vld [vmem:[#allocation2 + $0x148] sm:$0xff]
        %v2714 = vld [vmem:[#allocation2 + $0x160] sm:$0xff]
        %v2715 = vld [vmem:[#allocation2 + $0x178] sm:$0xff]
        %v2716 = vld [vmem:[%s2 + $0x14] sm:$0x1]
        %v2717 = vlaneseq
        %v2718 = vshrl.u32 %v2717, 7
        %v2719 = vsub.s32 0, %v2718
        %v2720 = vrot.slane %v2716, %v2719
        %v2721 = vmul.f32 %v2499, %v2720
        %v2722 = vmul.f32 %v2700, %v2720
        %v2723 = vmul.f32 %v2501, %v2720
        %v2724 = vmul.f32 %v2701, %v2720
        %v2725 = vmul.f32 %v2503, %v2720
        %v2726 = vmul.f32 %v2702, %v2720
        %v2727 = vmul.f32 %v2505, %v2720
        %v2728 = vmul.f32 %v2703, %v2720
        %v2729 = vmul.f32 %v2507, %v2720
        %v2730 = vmul.f32 %v2704, %v2720
        %v2731 = vmul.f32 %v2509, %v2720
        %v2732 = vmul.f32 %v2705, %v2720
        %v2733 = vmul.f32 %v2511, %v2720
        %v2734 = vmul.f32 %v2706, %v2720
        %v2735 = vmul.f32 %v2513, %v2720
        %v2736 = vmul.f32 %v2707, %v2720
        %v2737 = vmul.f32 %v2515, %v2720
        %v2738 = vmul.f32 %v2708, %v2720
        %v2739 = vmul.f32 %v2517, %v2720
        %v2740 = vmul.f32 %v2709, %v2720
        %v2741 = vmul.f32 %v2519, %v2720
        %v2742 = vmul.f32 %v2710, %v2720
        %v2743 = vmul.f32 %v2521, %v2720
        %v2744 = vmul.f32 %v2711, %v2720
        %v2745 = vmul.f32 %v2523, %v2720
        %v2746 = vmul.f32 %v2712, %v2720
        %v2747 = vmul.f32 %v2525, %v2720
        %v2748 = vmul.f32 %v2713, %v2720
        %v2749 = vmul.f32 %v2527, %v2720
        %v2750 = vmul.f32 %v2714, %v2720
        %v2751 = vmul.f32 %v2529, %v2720
        %v2752 = vmul.f32 %v2715, %v2720
        %v2753 = vadd.f32 %v2668, %v2721
        %v2754 = vadd.f32 %v2669, %v2722
        %v2755 = vadd.f32 %v2670, %v2723
        %v2756 = vadd.f32 %v2671, %v2724
        %v2757 = vadd.f32 %v2672, %v2725
        %v2758 = vadd.f32 %v2673, %v2726
        %v2759 = vadd.f32 %v2674, %v2727
        %v2760 = vadd.f32 %v2675, %v2728
        %v2761 = vadd.f32 %v2676, %v2729
        %v2762 = vadd.f32 %v2677, %v2730
        %v2763 = vadd.f32 %v2678, %v2731
        %v2764 = vadd.f32 %v2679, %v2732
        %v2765 = vadd.f32 %v2680, %v2733
        %v2766 = vadd.f32 %v2681, %v2734
        %v2767 = vadd.f32 %v2682, %v2735
        %v2768 = vadd.f32 %v2683, %v2736
        %v2769 = vadd.f32 %v2684, %v2737
        %v2770 = vadd.f32 %v2685, %v2738
        %v2771 = vadd.f32 %v2686, %v2739
        %v2772 = vadd.f32 %v2687, %v2740
        %v2773 = vadd.f32 %v2688, %v2741
        %v2774 = vadd.f32 %v2689, %v2742
        %v2775 = vadd.f32 %v2690, %v2743
        %v2776 = vadd.f32 %v2691, %v2744
        %v2777 = vadd.f32 %v2692, %v2745
        %v2778 = vadd.f32 %v2693, %v2746
        %v2779 = vadd.f32 %v2694, %v2747
        %v2780 = vadd.f32 %v2695, %v2748
        %v2781 = vadd.f32 %v2696, %v2749
        %v2782 = vadd.f32 %v2697, %v2750
        %v2783 = vadd.f32 %v2698, %v2751
        %v2784 = vadd.f32 %v2699, %v2752
        %v2785 = vld [vmem:[%s429] sm:$0xff]
        %v2786 = vld [vmem:[%s429 + $0x8] sm:$0xff]
        %v2787 = vld [vmem:[%s429 + $0x18] sm:$0xff]
        %v2788 = vld [vmem:[%s429 + $0x20] sm:$0xff]
        %v2789 = vld [vmem:[%s429 + $0x30] sm:$0xff]
        %v2790 = vld [vmem:[%s429 + $0x38] sm:$0xff]
        %v2791 = vld [vmem:[%s429 + $0x48] sm:$0xff]
        %v2792 = vld [vmem:[%s429 + $0x50] sm:$0xff]
        %v2793 = vld [vmem:[%s429 + $0x60] sm:$0xff]
        %v2794 = vld [vmem:[%s429 + $0x68] sm:$0xff]
        %v2795 = vld [vmem:[%s429 + $0x78] sm:$0xff]
        %v2796 = vld [vmem:[%s429 + $0x80] sm:$0xff]
        %v2797 = vld [vmem:[%s429 + $0x90] sm:$0xff]
        %v2798 = vld [vmem:[%s429 + $0x98] sm:$0xff]
        %v2799 = vld [vmem:[%s429 + $0xa8] sm:$0xff]
        %v2800 = vld [vmem:[%s429 + $0xb0] sm:$0xff]
        %v2801 = vld [vmem:[%s429 + $0xc0] sm:$0xff]
        %v2802 = vld [vmem:[%s429 + $0xc8] sm:$0xff]
        %v2803 = vld [vmem:[%s429 + $0xd8] sm:$0xff]
        %v2804 = vld [vmem:[%s429 + $0xe0] sm:$0xff]
        %v2805 = vld [vmem:[%s429 + $0xf0] sm:$0xff]
        %v2806 = vld [vmem:[%s429 + $0xf8] sm:$0xff]
        %v2807 = vld [vmem:[%s429 + $0x108] sm:$0xff]
        %v2808 = vld [vmem:[%s429 + $0x110] sm:$0xff]
        %v2809 = vld [vmem:[%s429 + $0x120] sm:$0xff]
        %v2810 = vld [vmem:[%s429 + $0x128] sm:$0xff]
        %v2811 = vld [vmem:[%s429 + $0x138] sm:$0xff]
        %v2812 = vld [vmem:[%s429 + $0x140] sm:$0xff]
        %v2813 = vld [vmem:[%s429 + $0x150] sm:$0xff]
        %v2814 = vld [vmem:[%s429 + $0x158] sm:$0xff]
        %v2815 = vld [vmem:[%s429 + $0x168] sm:$0xff]
        %v2816 = vld [vmem:[%s429 + $0x170] sm:$0xff]
        %v2817 = vld [vmem:[%s2 + $0x15] sm:$0x1]
        %v2818 = vlaneseq
        %v2819 = vshrl.u32 %v2818, 7
        %v2820 = vsub.s32 0, %v2819
        %v2821 = vrot.slane %v2817, %v2820
        %v2822 = vmul.f32 %v2785, %v2821
        %v2823 = vmul.f32 %v2786, %v2821
        %v2824 = vmul.f32 %v2787, %v2821
        %v2825 = vmul.f32 %v2788, %v2821
        %v2826 = vmul.f32 %v2789, %v2821
        %v2827 = vmul.f32 %v2790, %v2821
        %v2828 = vmul.f32 %v2791, %v2821
        %v2829 = vmul.f32 %v2792, %v2821
        %v2830 = vmul.f32 %v2793, %v2821
        %v2831 = vmul.f32 %v2794, %v2821
        %v2832 = vmul.f32 %v2795, %v2821
        %v2833 = vmul.f32 %v2796, %v2821
        %v2834 = vmul.f32 %v2797, %v2821
        %v2835 = vmul.f32 %v2798, %v2821
        %v2836 = vmul.f32 %v2799, %v2821
        %v2837 = vmul.f32 %v2800, %v2821
        %v2838 = vmul.f32 %v2801, %v2821
        %v2839 = vmul.f32 %v2802, %v2821
        %v2840 = vmul.f32 %v2803, %v2821
        %v2841 = vmul.f32 %v2804, %v2821
        %v2842 = vmul.f32 %v2805, %v2821
        %v2843 = vmul.f32 %v2806, %v2821
        %v2844 = vmul.f32 %v2807, %v2821
        %v2845 = vmul.f32 %v2808, %v2821
        %v2846 = vmul.f32 %v2809, %v2821
        %v2847 = vmul.f32 %v2810, %v2821
        %v2848 = vmul.f32 %v2811, %v2821
        %v2849 = vmul.f32 %v2812, %v2821
        %v2850 = vmul.f32 %v2813, %v2821
        %v2851 = vmul.f32 %v2814, %v2821
        %v2852 = vmul.f32 %v2815, %v2821
        %v2853 = vmul.f32 %v2816, %v2821
        %v2854 = vadd.f32 %v2753, %v2822
        %v2855 = vadd.f32 %v2754, %v2823
        %v2856 = vadd.f32 %v2755, %v2824
        %v2857 = vadd.f32 %v2756, %v2825
        %v2858 = vadd.f32 %v2757, %v2826
        %v2859 = vadd.f32 %v2758, %v2827
        %v2860 = vadd.f32 %v2759, %v2828
        %v2861 = vadd.f32 %v2760, %v2829
        %v2862 = vadd.f32 %v2761, %v2830
        %v2863 = vadd.f32 %v2762, %v2831
        %v2864 = vadd.f32 %v2763, %v2832
        %v2865 = vadd.f32 %v2764, %v2833
        %v2866 = vadd.f32 %v2765, %v2834
        %v2867 = vadd.f32 %v2766, %v2835
        %v2868 = vadd.f32 %v2767, %v2836
        %v2869 = vadd.f32 %v2768, %v2837
        %v2870 = vadd.f32 %v2769, %v2838
        %v2871 = vadd.f32 %v2770, %v2839
        %v2872 = vadd.f32 %v2771, %v2840
        %v2873 = vadd.f32 %v2772, %v2841
        %v2874 = vadd.f32 %v2773, %v2842
        %v2875 = vadd.f32 %v2774, %v2843
        %v2876 = vadd.f32 %v2775, %v2844
        %v2877 = vadd.f32 %v2776, %v2845
        %v2878 = vadd.f32 %v2777, %v2846
        %v2879 = vadd.f32 %v2778, %v2847
        %v2880 = vadd.f32 %v2779, %v2848
        %v2881 = vadd.f32 %v2780, %v2849
        %v2882 = vadd.f32 %v2781, %v2850
        %v2883 = vadd.f32 %v2782, %v2851
        %v2884 = vadd.f32 %v2783, %v2852
        %v2885 = vadd.f32 %v2784, %v2853
        %v2886 = vld [vmem:[%s2 + $0x16] sm:$0x1]
        %v2887 = vlaneseq
        %v2888 = vshrl.u32 %v2887, 7
        %v2889 = vsub.s32 0, %v2888
        %v2890 = vrot.slane %v2886, %v2889
        %v2891 = vmul.f32 %v975, %v2890
        %v2892 = vmul.f32 %v976, %v2890
        %v2893 = vmul.f32 %v977, %v2890
        %v2894 = vmul.f32 %v978, %v2890
        %v2895 = vmul.f32 %v979, %v2890
        %v2896 = vmul.f32 %v980, %v2890
        %v2897 = vmul.f32 %v981, %v2890
        %v2898 = vmul.f32 %v982, %v2890
        %v2899 = vmul.f32 %v983, %v2890
        %v2900 = vmul.f32 %v984, %v2890
        %v2901 = vmul.f32 %v985, %v2890
        %v2902 = vmul.f32 %v986, %v2890
        %v2903 = vmul.f32 %v987, %v2890
        %v2904 = vmul.f32 %v988, %v2890
        %v2905 = vmul.f32 %v989, %v2890
        %v2906 = vmul.f32 %v990, %v2890
        %v2907 = vmul.f32 %v991, %v2890
        %v2908 = vmul.f32 %v992, %v2890
        %v2909 = vmul.f32 %v993, %v2890
        %v2910 = vmul.f32 %v994, %v2890
        %v2911 = vmul.f32 %v995, %v2890
        %v2912 = vmul.f32 %v996, %v2890
        %v2913 = vmul.f32 %v997, %v2890
        %v2914 = vmul.f32 %v998, %v2890
        %v2915 = vmul.f32 %v999, %v2890
        %v2916 = vmul.f32 %v1000, %v2890
        %v2917 = vmul.f32 %v1001, %v2890
        %v2918 = vmul.f32 %v1002, %v2890
        %v2919 = vmul.f32 %v1003, %v2890
        %v2920 = vmul.f32 %v1004, %v2890
        %v2921 = vmul.f32 %v1005, %v2890
        %v2922 = vmul.f32 %v1006, %v2890
        %v2923 = vadd.f32 %v2854, %v2891
        %v2924 = vadd.f32 %v2855, %v2892
        %v2925 = vadd.f32 %v2856, %v2893
        %v2926 = vadd.f32 %v2857, %v2894
        %v2927 = vadd.f32 %v2858, %v2895
        %v2928 = vadd.f32 %v2859, %v2896
        %v2929 = vadd.f32 %v2860, %v2897
        %v2930 = vadd.f32 %v2861, %v2898
        %v2931 = vadd.f32 %v2862, %v2899
        %v2932 = vadd.f32 %v2863, %v2900
        %v2933 = vadd.f32 %v2864, %v2901
        %v2934 = vadd.f32 %v2865, %v2902
        %v2935 = vadd.f32 %v2866, %v2903
        %v2936 = vadd.f32 %v2867, %v2904
        %v2937 = vadd.f32 %v2868, %v2905
        %v2938 = vadd.f32 %v2869, %v2906
        %v2939 = vadd.f32 %v2870, %v2907
        %v2940 = vadd.f32 %v2871, %v2908
        %v2941 = vadd.f32 %v2872, %v2909
        %v2942 = vadd.f32 %v2873, %v2910
        %v2943 = vadd.f32 %v2874, %v2911
        %v2944 = vadd.f32 %v2875, %v2912
        %v2945 = vadd.f32 %v2876, %v2913
        %v2946 = vadd.f32 %v2877, %v2914
        %v2947 = vadd.f32 %v2878, %v2915
        %v2948 = vadd.f32 %v2879, %v2916
        %v2949 = vadd.f32 %v2880, %v2917
        %v2950 = vadd.f32 %v2881, %v2918
        %v2951 = vadd.f32 %v2882, %v2919
        %v2952 = vadd.f32 %v2883, %v2920
        %v2953 = vadd.f32 %v2884, %v2921
        %v2954 = vadd.f32 %v2885, %v2922
        %v2955 = vld [vmem:[%s429 + $0x10] sm:$0xff]
        %v2956 = vld [vmem:[%s429 + $0x28] sm:$0xff]
        %v2957 = vld [vmem:[%s429 + $0x40] sm:$0xff]
        %v2958 = vld [vmem:[%s429 + $0x58] sm:$0xff]
        %v2959 = vld [vmem:[%s429 + $0x70] sm:$0xff]
        %v2960 = vld [vmem:[%s429 + $0x88] sm:$0xff]
        %v2961 = vld [vmem:[%s429 + $0xa0] sm:$0xff]
        %v2962 = vld [vmem:[%s429 + $0xb8] sm:$0xff]
        %v2963 = vld [vmem:[%s429 + $0xd0] sm:$0xff]
        %v2964 = vld [vmem:[%s429 + $0xe8] sm:$0xff]
        %v2965 = vld [vmem:[%s429 + $0x100] sm:$0xff]
        %v2966 = vld [vmem:[%s429 + $0x118] sm:$0xff]
        %v2967 = vld [vmem:[%s429 + $0x130] sm:$0xff]
        %v2968 = vld [vmem:[%s429 + $0x148] sm:$0xff]
        %v2969 = vld [vmem:[%s429 + $0x160] sm:$0xff]
        %v2970 = vld [vmem:[%s429 + $0x178] sm:$0xff]
        %v2971 = vld [vmem:[%s2 + $0x17] sm:$0x1]
        %v2972 = vlaneseq
        %v2973 = vshrl.u32 %v2972, 7
        %v2974 = vsub.s32 0, %v2973
        %v2975 = vrot.slane %v2971, %v2974
        %v2976 = vmul.f32 %v2786, %v2975
        %v2977 = vmul.f32 %v2955, %v2975
        %v2978 = vmul.f32 %v2788, %v2975
        %v2979 = vmul.f32 %v2956, %v2975
        %v2980 = vmul.f32 %v2790, %v2975
        %v2981 = vmul.f32 %v2957, %v2975
        %v2982 = vmul.f32 %v2792, %v2975
        %v2983 = vmul.f32 %v2958, %v2975
        %v2984 = vmul.f32 %v2794, %v2975
        %v2985 = vmul.f32 %v2959, %v2975
        %v2986 = vmul.f32 %v2796, %v2975
        %v2987 = vmul.f32 %v2960, %v2975
        %v2988 = vmul.f32 %v2798, %v2975
        %v2989 = vmul.f32 %v2961, %v2975
        %v2990 = vmul.f32 %v2800, %v2975
        %v2991 = vmul.f32 %v2962, %v2975
        %v2992 = vmul.f32 %v2802, %v2975
        %v2993 = vmul.f32 %v2963, %v2975
        %v2994 = vmul.f32 %v2804, %v2975
        %v2995 = vmul.f32 %v2964, %v2975
        %v2996 = vmul.f32 %v2806, %v2975
        %v2997 = vmul.f32 %v2965, %v2975
        %v2998 = vmul.f32 %v2808, %v2975
        %v2999 = vmul.f32 %v2966, %v2975
        %v3000 = vmul.f32 %v2810, %v2975
        %v3001 = vmul.f32 %v2967, %v2975
        %v3002 = vmul.f32 %v2812, %v2975
        %v3003 = vmul.f32 %v2968, %v2975
        %v3004 = vmul.f32 %v2814, %v2975
        %v3005 = vmul.f32 %v2969, %v2975
        %v3006 = vmul.f32 %v2816, %v2975
        %v3007 = vmul.f32 %v2970, %v2975
        %v3008 = vadd.f32 %v2923, %v2976
        %v3009 = vadd.f32 %v2924, %v2977
        %v3010 = vadd.f32 %v2925, %v2978
        %v3011 = vadd.f32 %v2926, %v2979
        %v3012 = vadd.f32 %v2927, %v2980
        %v3013 = vadd.f32 %v2928, %v2981
        %v3014 = vadd.f32 %v2929, %v2982
        %v3015 = vadd.f32 %v2930, %v2983
        %v3016 = vadd.f32 %v2931, %v2984
        %v3017 = vadd.f32 %v2932, %v2985
        %v3018 = vadd.f32 %v2933, %v2986
        %v3019 = vadd.f32 %v2934, %v2987
        %v3020 = vadd.f32 %v2935, %v2988
        %v3021 = vadd.f32 %v2936, %v2989
        %v3022 = vadd.f32 %v2937, %v2990
        %v3023 = vadd.f32 %v2938, %v2991
        %v3024 = vadd.f32 %v2939, %v2992
        %v3025 = vadd.f32 %v2940, %v2993
        %v3026 = vadd.f32 %v2941, %v2994
        %v3027 = vadd.f32 %v2942, %v2995
        %v3028 = vadd.f32 %v2943, %v2996
        %v3029 = vadd.f32 %v2944, %v2997
        %v3030 = vadd.f32 %v2945, %v2998
        %v3031 = vadd.f32 %v2946, %v2999
        %v3032 = vadd.f32 %v2947, %v3000
        %v3033 = vadd.f32 %v2948, %v3001
        %v3034 = vadd.f32 %v2949, %v3002
        %v3035 = vadd.f32 %v2950, %v3003
        %v3036 = vadd.f32 %v2951, %v3004
        %v3037 = vadd.f32 %v2952, %v3005
        %v3038 = vadd.f32 %v2953, %v3006
        %v3039 = vadd.f32 %v2954, %v3007
        %s3040 = scalar_lea.vmem [#allocation2], 192
        %v3041 = vld [vmem:[%s3040] sm:$0xff]
        %v3042 = vld [vmem:[%s3040 + $0x8] sm:$0xff]
        %v3043 = vld [vmem:[%s3040 + $0x18] sm:$0xff]
        %v3044 = vld [vmem:[%s3040 + $0x20] sm:$0xff]
        %v3045 = vld [vmem:[%s3040 + $0x30] sm:$0xff]
        %v3046 = vld [vmem:[%s3040 + $0x38] sm:$0xff]
        %v3047 = vld [vmem:[%s3040 + $0x48] sm:$0xff]
        %v3048 = vld [vmem:[%s3040 + $0x50] sm:$0xff]
        %v3049 = vld [vmem:[%s3040 + $0x60] sm:$0xff]
        %v3050 = vld [vmem:[%s3040 + $0x68] sm:$0xff]
        %v3051 = vld [vmem:[%s3040 + $0x78] sm:$0xff]
        %v3052 = vld [vmem:[%s3040 + $0x80] sm:$0xff]
        %v3053 = vld [vmem:[%s3040 + $0x90] sm:$0xff]
        %v3054 = vld [vmem:[%s3040 + $0x98] sm:$0xff]
        %v3055 = vld [vmem:[%s3040 + $0xa8] sm:$0xff]
        %v3056 = vld [vmem:[%s3040 + $0xb0] sm:$0xff]
        %v3057 = vld [vmem:[%s3040 + $0xc0] sm:$0xff]
        %v3058 = vld [vmem:[%s3040 + $0xc8] sm:$0xff]
        %v3059 = vld [vmem:[%s3040 + $0xd8] sm:$0xff]
        %v3060 = vld [vmem:[%s3040 + $0xe0] sm:$0xff]
        %v3061 = vld [vmem:[%s3040 + $0xf0] sm:$0xff]
        %v3062 = vld [vmem:[%s3040 + $0xf8] sm:$0xff]
        %v3063 = vld [vmem:[%s3040 + $0x108] sm:$0xff]
        %v3064 = vld [vmem:[%s3040 + $0x110] sm:$0xff]
        %v3065 = vld [vmem:[%s3040 + $0x120] sm:$0xff]
        %v3066 = vld [vmem:[%s3040 + $0x128] sm:$0xff]
        %v3067 = vld [vmem:[%s3040 + $0x138] sm:$0xff]
        %v3068 = vld [vmem:[%s3040 + $0x140] sm:$0xff]
        %v3069 = vld [vmem:[%s3040 + $0x150] sm:$0xff]
        %v3070 = vld [vmem:[%s3040 + $0x158] sm:$0xff]
        %v3071 = vld [vmem:[%s3040 + $0x168] sm:$0xff]
        %v3072 = vld [vmem:[%s3040 + $0x170] sm:$0xff]
        %v3073 = vld [vmem:[%s2 + $0x18] sm:$0x1]
        %v3074 = vlaneseq
        %v3075 = vshrl.u32 %v3074, 7
        %v3076 = vsub.s32 0, %v3075
        %v3077 = vrot.slane %v3073, %v3076
        %v3078 = vmul.f32 %v3041, %v3077
        %v3079 = vmul.f32 %v3042, %v3077
        %v3080 = vmul.f32 %v3043, %v3077
        %v3081 = vmul.f32 %v3044, %v3077
        %v3082 = vmul.f32 %v3045, %v3077
        %v3083 = vmul.f32 %v3046, %v3077
        %v3084 = vmul.f32 %v3047, %v3077
        %v3085 = vmul.f32 %v3048, %v3077
        %v3086 = vmul.f32 %v3049, %v3077
        %v3087 = vmul.f32 %v3050, %v3077
        %v3088 = vmul.f32 %v3051, %v3077
        %v3089 = vmul.f32 %v3052, %v3077
        %v3090 = vmul.f32 %v3053, %v3077
        %v3091 = vmul.f32 %v3054, %v3077
        %v3092 = vmul.f32 %v3055, %v3077
        %v3093 = vmul.f32 %v3056, %v3077
        %v3094 = vmul.f32 %v3057, %v3077
        %v3095 = vmul.f32 %v3058, %v3077
        %v3096 = vmul.f32 %v3059, %v3077
        %v3097 = vmul.f32 %v3060, %v3077
        %v3098 = vmul.f32 %v3061, %v3077
        %v3099 = vmul.f32 %v3062, %v3077
        %v3100 = vmul.f32 %v3063, %v3077
        %v3101 = vmul.f32 %v3064, %v3077
        %v3102 = vmul.f32 %v3065, %v3077
        %v3103 = vmul.f32 %v3066, %v3077
        %v3104 = vmul.f32 %v3067, %v3077
        %v3105 = vmul.f32 %v3068, %v3077
        %v3106 = vmul.f32 %v3069, %v3077
        %v3107 = vmul.f32 %v3070, %v3077
        %v3108 = vmul.f32 %v3071, %v3077
        %v3109 = vmul.f32 %v3072, %v3077
        %v3110 = vadd.f32 %v3008, %v3078
        %v3111 = vadd.f32 %v3009, %v3079
        %v3112 = vadd.f32 %v3010, %v3080
        %v3113 = vadd.f32 %v3011, %v3081
        %v3114 = vadd.f32 %v3012, %v3082
        %v3115 = vadd.f32 %v3013, %v3083
        %v3116 = vadd.f32 %v3014, %v3084
        %v3117 = vadd.f32 %v3015, %v3085
        %v3118 = vadd.f32 %v3016, %v3086
        %v3119 = vadd.f32 %v3017, %v3087
        %v3120 = vadd.f32 %v3018, %v3088
        %v3121 = vadd.f32 %v3019, %v3089
        %v3122 = vadd.f32 %v3020, %v3090
        %v3123 = vadd.f32 %v3021, %v3091
        %v3124 = vadd.f32 %v3022, %v3092
        %v3125 = vadd.f32 %v3023, %v3093
        %v3126 = vadd.f32 %v3024, %v3094
        %v3127 = vadd.f32 %v3025, %v3095
        %v3128 = vadd.f32 %v3026, %v3096
        %v3129 = vadd.f32 %v3027, %v3097
        %v3130 = vadd.f32 %v3028, %v3098
        %v3131 = vadd.f32 %v3029, %v3099
        %v3132 = vadd.f32 %v3030, %v3100
        %v3133 = vadd.f32 %v3031, %v3101
        %v3134 = vadd.f32 %v3032, %v3102
        %v3135 = vadd.f32 %v3033, %v3103
        %v3136 = vadd.f32 %v3034, %v3104
        %v3137 = vadd.f32 %v3035, %v3105
        %v3138 = vadd.f32 %v3036, %v3106
        %v3139 = vadd.f32 %v3037, %v3107
        %v3140 = vadd.f32 %v3038, %v3108
        %v3141 = vadd.f32 %v3039, %v3109
        %v3142 = vld [vmem:[%s3040 + $0x4] sm:$0xff]
        %v3143 = vld [vmem:[%s3040 + $0xc] sm:$0xff]
        %v3144 = vld [vmem:[%s3040 + $0x1c] sm:$0xff]
        %v3145 = vld [vmem:[%s3040 + $0x24] sm:$0xff]
        %v3146 = vld [vmem:[%s3040 + $0x34] sm:$0xff]
        %v3147 = vld [vmem:[%s3040 + $0x3c] sm:$0xff]
        %v3148 = vld [vmem:[%s3040 + $0x4c] sm:$0xff]
        %v3149 = vld [vmem:[%s3040 + $0x54] sm:$0xff]
        %v3150 = vld [vmem:[%s3040 + $0x64] sm:$0xff]
        %v3151 = vld [vmem:[%s3040 + $0x6c] sm:$0xff]
        %v3152 = vld [vmem:[%s3040 + $0x7c] sm:$0xff]
        %v3153 = vld [vmem:[%s3040 + $0x84] sm:$0xff]
        %v3154 = vld [vmem:[%s3040 + $0x94] sm:$0xff]
        %v3155 = vld [vmem:[%s3040 + $0x9c] sm:$0xff]
        %v3156 = vld [vmem:[%s3040 + $0xac] sm:$0xff]
        %v3157 = vld [vmem:[%s3040 + $0xb4] sm:$0xff]
        %v3158 = vld [vmem:[%s3040 + $0xc4] sm:$0xff]
        %v3159 = vld [vmem:[%s3040 + $0xcc] sm:$0xff]
        %v3160 = vld [vmem:[%s3040 + $0xdc] sm:$0xff]
        %v3161 = vld [vmem:[%s3040 + $0xe4] sm:$0xff]
        %v3162 = vld [vmem:[%s3040 + $0xf4] sm:$0xff]
        %v3163 = vld [vmem:[%s3040 + $0xfc] sm:$0xff]
        %v3164 = vld [vmem:[%s3040 + $0x10c] sm:$0xff]
        %v3165 = vld [vmem:[%s3040 + $0x114] sm:$0xff]
        %v3166 = vld [vmem:[%s3040 + $0x124] sm:$0xff]
        %v3167 = vld [vmem:[%s3040 + $0x12c] sm:$0xff]
        %v3168 = vld [vmem:[%s3040 + $0x13c] sm:$0xff]
        %v3169 = vld [vmem:[%s3040 + $0x144] sm:$0xff]
        %v3170 = vld [vmem:[%s3040 + $0x154] sm:$0xff]
        %v3171 = vld [vmem:[%s3040 + $0x15c] sm:$0xff]
        %v3172 = vld [vmem:[%s3040 + $0x16c] sm:$0xff]
        %v3173 = vld [vmem:[%s3040 + $0x174] sm:$0xff]
        %v3174 = vld [vmem:[%s2 + $0x19] sm:$0x1]
        %v3175 = vlaneseq
        %v3176 = vshrl.u32 %v3175, 7
        %v3177 = vsub.s32 0, %v3176
        %v3178 = vrot.slane %v3174, %v3177
        %v3179 = vmul.f32 %v3142, %v3178
        %v3180 = vmul.f32 %v3143, %v3178
        %v3181 = vmul.f32 %v3144, %v3178
        %v3182 = vmul.f32 %v3145, %v3178
        %v3183 = vmul.f32 %v3146, %v3178
        %v3184 = vmul.f32 %v3147, %v3178
        %v3185 = vmul.f32 %v3148, %v3178
        %v3186 = vmul.f32 %v3149, %v3178
        %v3187 = vmul.f32 %v3150, %v3178
        %v3188 = vmul.f32 %v3151, %v3178
        %v3189 = vmul.f32 %v3152, %v3178
        %v3190 = vmul.f32 %v3153, %v3178
        %v3191 = vmul.f32 %v3154, %v3178
        %v3192 = vmul.f32 %v3155, %v3178
        %v3193 = vmul.f32 %v3156, %v3178
        %v3194 = vmul.f32 %v3157, %v3178
        %v3195 = vmul.f32 %v3158, %v3178
        %v3196 = vmul.f32 %v3159, %v3178
        %v3197 = vmul.f32 %v3160, %v3178
        %v3198 = vmul.f32 %v3161, %v3178
        %v3199 = vmul.f32 %v3162, %v3178
        %v3200 = vmul.f32 %v3163, %v3178
        %v3201 = vmul.f32 %v3164, %v3178
        %v3202 = vmul.f32 %v3165, %v3178
        %v3203 = vmul.f32 %v3166, %v3178
        %v3204 = vmul.f32 %v3167, %v3178
        %v3205 = vmul.f32 %v3168, %v3178
        %v3206 = vmul.f32 %v3169, %v3178
        %v3207 = vmul.f32 %v3170, %v3178
        %v3208 = vmul.f32 %v3171, %v3178
        %v3209 = vmul.f32 %v3172, %v3178
        %v3210 = vmul.f32 %v3173, %v3178
        %v3211 = vadd.f32 %v3110, %v3179
        %v3212 = vadd.f32 %v3111, %v3180
        %v3213 = vadd.f32 %v3112, %v3181
        %v3214 = vadd.f32 %v3113, %v3182
        %v3215 = vadd.f32 %v3114, %v3183
        %v3216 = vadd.f32 %v3115, %v3184
        %v3217 = vadd.f32 %v3116, %v3185
        %v3218 = vadd.f32 %v3117, %v3186
        %v3219 = vadd.f32 %v3118, %v3187
        %v3220 = vadd.f32 %v3119, %v3188
        %v3221 = vadd.f32 %v3120, %v3189
        %v3222 = vadd.f32 %v3121, %v3190
        %v3223 = vadd.f32 %v3122, %v3191
        %v3224 = vadd.f32 %v3123, %v3192
        %v3225 = vadd.f32 %v3124, %v3193
        %v3226 = vadd.f32 %v3125, %v3194
        %v3227 = vadd.f32 %v3126, %v3195
        %v3228 = vadd.f32 %v3127, %v3196
        %v3229 = vadd.f32 %v3128, %v3197
        %v3230 = vadd.f32 %v3129, %v3198
        %v3231 = vadd.f32 %v3130, %v3199
        %v3232 = vadd.f32 %v3131, %v3200
        %v3233 = vadd.f32 %v3132, %v3201
        %v3234 = vadd.f32 %v3133, %v3202
        %v3235 = vadd.f32 %v3134, %v3203
        %v3236 = vadd.f32 %v3135, %v3204
        %v3237 = vadd.f32 %v3136, %v3205
        %v3238 = vadd.f32 %v3137, %v3206
        %v3239 = vadd.f32 %v3138, %v3207
        %v3240 = vadd.f32 %v3139, %v3208
        %v3241 = vadd.f32 %v3140, %v3209
        %v3242 = vadd.f32 %v3141, %v3210
        %v3243 = vld [vmem:[%s3040 + $0x10] sm:$0xff]
        %v3244 = vld [vmem:[%s3040 + $0x28] sm:$0xff]
        %v3245 = vld [vmem:[%s3040 + $0x40] sm:$0xff]
        %v3246 = vld [vmem:[%s3040 + $0x58] sm:$0xff]
        %v3247 = vld [vmem:[%s3040 + $0x70] sm:$0xff]
        %v3248 = vld [vmem:[%s3040 + $0x88] sm:$0xff]
        %v3249 = vld [vmem:[%s3040 + $0xa0] sm:$0xff]
        %v3250 = vld [vmem:[%s3040 + $0xb8] sm:$0xff]
        %v3251 = vld [vmem:[%s3040 + $0xd0] sm:$0xff]
        %v3252 = vld [vmem:[%s3040 + $0xe8] sm:$0xff]
        %v3253 = vld [vmem:[%s3040 + $0x100] sm:$0xff]
        %v3254 = vld [vmem:[%s3040 + $0x118] sm:$0xff]
        %v3255 = vld [vmem:[%s3040 + $0x130] sm:$0xff]
        %v3256 = vld [vmem:[%s3040 + $0x148] sm:$0xff]
        %v3257 = vld [vmem:[%s3040 + $0x160] sm:$0xff]
        %v3258 = vld [vmem:[%s3040 + $0x178] sm:$0xff]
        %v3259 = vld [vmem:[%s2 + $0x1a] sm:$0x1]
        %v3260 = vlaneseq
        %v3261 = vshrl.u32 %v3260, 7
        %v3262 = vsub.s32 0, %v3261
        %v3263 = vrot.slane %v3259, %v3262
        %v3264 = vmul.f32 %v3042, %v3263
        %v3265 = vmul.f32 %v3243, %v3263
        %v3266 = vmul.f32 %v3044, %v3263
        %v3267 = vmul.f32 %v3244, %v3263
        %v3268 = vmul.f32 %v3046, %v3263
        %v3269 = vmul.f32 %v3245, %v3263
        %v3270 = vmul.f32 %v3048, %v3263
        %v3271 = vmul.f32 %v3246, %v3263
        %v3272 = vmul.f32 %v3050, %v3263
        %v3273 = vmul.f32 %v3247, %v3263
        %v3274 = vmul.f32 %v3052, %v3263
        %v3275 = vmul.f32 %v3248, %v3263
        %v3276 = vmul.f32 %v3054, %v3263
        %v3277 = vmul.f32 %v3249, %v3263
        %v3278 = vmul.f32 %v3056, %v3263
        %v3279 = vmul.f32 %v3250, %v3263
        %v3280 = vmul.f32 %v3058, %v3263
        %v3281 = vmul.f32 %v3251, %v3263
        %v3282 = vmul.f32 %v3060, %v3263
        %v3283 = vmul.f32 %v3252, %v3263
        %v3284 = vmul.f32 %v3062, %v3263
        %v3285 = vmul.f32 %v3253, %v3263
        %v3286 = vmul.f32 %v3064, %v3263
        %v3287 = vmul.f32 %v3254, %v3263
        %v3288 = vmul.f32 %v3066, %v3263
        %v3289 = vmul.f32 %v3255, %v3263
        %v3290 = vmul.f32 %v3068, %v3263
        %v3291 = vmul.f32 %v3256, %v3263
        %v3292 = vmul.f32 %v3070, %v3263
        %v3293 = vmul.f32 %v3257, %v3263
        %v3294 = vmul.f32 %v3072, %v3263
        %v3295 = vmul.f32 %v3258, %v3263
        %v3296 = vadd.f32 %v3211, %v3264
        %v3297 = vadd.f32 %v3212, %v3265
        %v3298 = vadd.f32 %v3213, %v3266
        %v3299 = vadd.f32 %v3214, %v3267
        %v3300 = vadd.f32 %v3215, %v3268
        %v3301 = vadd.f32 %v3216, %v3269
        %v3302 = vadd.f32 %v3217, %v3270
        %v3303 = vadd.f32 %v3218, %v3271
        %v3304 = vadd.f32 %v3219, %v3272
        %v3305 = vadd.f32 %v3220, %v3273
        %v3306 = vadd.f32 %v3221, %v3274
        %v3307 = vadd.f32 %v3222, %v3275
        %v3308 = vadd.f32 %v3223, %v3276
        %v3309 = vadd.f32 %v3224, %v3277
        %v3310 = vadd.f32 %v3225, %v3278
        %v3311 = vadd.f32 %v3226, %v3279
        %v3312 = vadd.f32 %v3227, %v3280
        %v3313 = vadd.f32 %v3228, %v3281
        %v3314 = vadd.f32 %v3229, %v3282
        %v3315 = vadd.f32 %v3230, %v3283
        %v3316 = vadd.f32 %v3231, %v3284
        %v3317 = vadd.f32 %v3232, %v3285
        %v3318 = vadd.f32 %v3233, %v3286
        %v3319 = vadd.f32 %v3234, %v3287
        %v3320 = vadd.f32 %v3235, %v3288
        %v3321 = vadd.f32 %v3236, %v3289
        %v3322 = vadd.f32 %v3237, %v3290
        %v3323 = vadd.f32 %v3238, %v3291
        %v3324 = vadd.f32 %v3239, %v3292
        %v3325 = vadd.f32 %v3240, %v3293
        %v3326 = vadd.f32 %v3241, %v3294
        %v3327 = vadd.f32 %v3242, %v3295
        %v3328 = vld [vmem:[%s3 + $0x3] sm:$0x1]
        %v3329 = vlaneseq
        %v3330 = vshrl.u32 %v3329, 7
        %v3331 = vsub.s32 0, %v3330
        %v3332 = vrot.slane %v3328, %v3331
        %v3333 = vadd.f32 %v3296, %v3332
        %v3334 = vadd.f32 %v3297, %v3332
        %v3335 = vadd.f32 %v3298, %v3332
        %v3336 = vadd.f32 %v3299, %v3332
        %v3337 = vadd.f32 %v3300, %v3332
        %v3338 = vadd.f32 %v3301, %v3332
        %v3339 = vadd.f32 %v3302, %v3332
        %v3340 = vadd.f32 %v3303, %v3332
        %v3341 = vadd.f32 %v3304, %v3332
        %v3342 = vadd.f32 %v3305, %v3332
        %v3343 = vadd.f32 %v3306, %v3332
        %v3344 = vadd.f32 %v3307, %v3332
        %v3345 = vadd.f32 %v3308, %v3332
        %v3346 = vadd.f32 %v3309, %v3332
        %v3347 = vadd.f32 %v3310, %v3332
        %v3348 = vadd.f32 %v3311, %v3332
        %v3349 = vadd.f32 %v3312, %v3332
        %v3350 = vadd.f32 %v3313, %v3332
        %v3351 = vadd.f32 %v3314, %v3332
        %v3352 = vadd.f32 %v3315, %v3332
        %v3353 = vadd.f32 %v3316, %v3332
        %v3354 = vadd.f32 %v3317, %v3332
        %v3355 = vadd.f32 %v3318, %v3332
        %v3356 = vadd.f32 %v3319, %v3332
        %v3357 = vadd.f32 %v3320, %v3332
        %v3358 = vadd.f32 %v3321, %v3332
        %v3359 = vadd.f32 %v3322, %v3332
        %v3360 = vadd.f32 %v3323, %v3332
        %v3361 = vadd.f32 %v3324, %v3332
        %v3362 = vadd.f32 %v3325, %v3332
        %v3363 = vadd.f32 %v3326, %v3332
        %v3364 = vadd.f32 %v3327, %v3332
        %v3365 = vmax.f32 %v3333, 0.0
        %v3366 = vmax.f32 %v3334, 0.0
        %v3367 = vmax.f32 %v3335, 0.0
        %v3368 = vmax.f32 %v3336, 0.0
        %v3369 = vmax.f32 %v3337, 0.0
        %v3370 = vmax.f32 %v3338, 0.0
        %v3371 = vmax.f32 %v3339, 0.0
        %v3372 = vmax.f32 %v3340, 0.0
        %v3373 = vmax.f32 %v3341, 0.0
        %v3374 = vmax.f32 %v3342, 0.0
        %v3375 = vmax.f32 %v3343, 0.0
        %v3376 = vmax.f32 %v3344, 0.0
        %v3377 = vmax.f32 %v3345, 0.0
        %v3378 = vmax.f32 %v3346, 0.0
        %v3379 = vmax.f32 %v3347, 0.0
        %v3380 = vmax.f32 %v3348, 0.0
        %v3381 = vmax.f32 %v3349, 0.0
        %v3382 = vmax.f32 %v3350, 0.0
        %v3383 = vmax.f32 %v3351, 0.0
        %v3384 = vmax.f32 %v3352, 0.0
        %v3385 = vmax.f32 %v3353, 0.0
        %v3386 = vmax.f32 %v3354, 0.0
        %v3387 = vmax.f32 %v3355, 0.0
        %v3388 = vmax.f32 %v3356, 0.0
        %v3389 = vmax.f32 %v3357, 0.0
        %v3390 = vmax.f32 %v3358, 0.0
        %v3391 = vmax.f32 %v3359, 0.0
        %v3392 = vmax.f32 %v3360, 0.0
        %v3393 = vmax.f32 %v3361, 0.0
        %v3394 = vmax.f32 %v3362, 0.0
        %v3395 = vmax.f32 %v3363, 0.0
        %v3396 = vmax.f32 %v3364, 0.0
        %3429 = vrot.lane.b32.xlu0 %v1518, 32
        %v3430 = vpop.permute.xlu0 %3429
        %3431 = vrot.lane.b32.xlu0 %v1519, 32
        %v3432 = vpop.permute.xlu0 %3431
        %3433 = vrot.lane.b32.xlu0 %v1520, 32
        %v3434 = vpop.permute.xlu0 %3433
        %3435 = vrot.lane.b32.xlu0 %v1521, 32
        %v3436 = vpop.permute.xlu0 %3435
        %3437 = vrot.lane.b32.xlu0 %v1522, 32
        %v3438 = vpop.permute.xlu0 %3437
        %3439 = vrot.lane.b32.xlu0 %v1523, 32
        %v3440 = vpop.permute.xlu0 %3439
        %3441 = vrot.lane.b32.xlu0 %v1524, 32
        %v3442 = vpop.permute.xlu0 %3441
        %3443 = vrot.lane.b32.xlu0 %v1525, 32
        %v3444 = vpop.permute.xlu0 %3443
        %3445 = vrot.lane.b32.xlu0 %v1526, 32
        %v3446 = vpop.permute.xlu0 %3445
        %3447 = vrot.lane.b32.xlu0 %v1527, 32
        %v3448 = vpop.permute.xlu0 %3447
        %3449 = vrot.lane.b32.xlu0 %v1528, 32
        %v3450 = vpop.permute.xlu0 %3449
        %3451 = vrot.lane.b32.xlu0 %v1529, 32
        %v3452 = vpop.permute.xlu0 %3451
        %3453 = vrot.lane.b32.xlu0 %v1530, 32
        %v3454 = vpop.permute.xlu0 %3453
        %3455 = vrot.lane.b32.xlu0 %v1531, 32
        %v3456 = vpop.permute.xlu0 %3455
        %3457 = vrot.lane.b32.xlu0 %v1532, 32
        %v3458 = vpop.permute.xlu0 %3457
        %3459 = vrot.lane.b32.xlu0 %v1533, 32
        %v3460 = vpop.permute.xlu0 %3459
        %3461 = vrot.lane.b32.xlu0 %v1534, 32
        %v3462 = vpop.permute.xlu0 %3461
        %3463 = vrot.lane.b32.xlu0 %v1535, 32
        %v3464 = vpop.permute.xlu0 %3463
        %3465 = vrot.lane.b32.xlu0 %v1536, 32
        %v3466 = vpop.permute.xlu0 %3465
        %3467 = vrot.lane.b32.xlu0 %v1537, 32
        %v3468 = vpop.permute.xlu0 %3467
        %3469 = vrot.lane.b32.xlu0 %v1538, 32
        %v3470 = vpop.permute.xlu0 %3469
        %3471 = vrot.lane.b32.xlu0 %v1539, 32
        %v3472 = vpop.permute.xlu0 %3471
        %3473 = vrot.lane.b32.xlu0 %v1540, 32
        %v3474 = vpop.permute.xlu0 %3473
        %3475 = vrot.lane.b32.xlu0 %v1541, 32
        %v3476 = vpop.permute.xlu0 %3475
        %3477 = vrot.lane.b32.xlu0 %v1542, 32
        %v3478 = vpop.permute.xlu0 %3477
        %3479 = vrot.lane.b32.xlu0 %v1543, 32
        %v3480 = vpop.permute.xlu0 %3479
        %3481 = vrot.lane.b32.xlu0 %v1544, 32
        %v3482 = vpop.permute.xlu0 %3481
        %3483 = vrot.lane.b32.xlu0 %v1545, 32
        %v3484 = vpop.permute.xlu0 %3483
        %3485 = vrot.lane.b32.xlu0 %v1546, 32
        %v3486 = vpop.permute.xlu0 %3485
        %3487 = vrot.lane.b32.xlu0 %v1547, 32
        %v3488 = vpop.permute.xlu0 %3487
        %3489 = vrot.lane.b32.xlu0 %v1548, 32
        %v3490 = vpop.permute.xlu0 %3489
        %3491 = vrot.lane.b32.xlu0 %v1549, 32
        %v3492 = vpop.permute.xlu0 %3491
        %3557 = vrot.lane.b32.xlu0 %v2466, 64
        %v3558 = vpop.permute.xlu0 %3557
        %3559 = vrot.lane.b32.xlu0 %v2467, 64
        %v3560 = vpop.permute.xlu0 %3559
        %3561 = vrot.lane.b32.xlu0 %v2468, 64
        %v3562 = vpop.permute.xlu0 %3561
        %3563 = vrot.lane.b32.xlu0 %v2469, 64
        %v3564 = vpop.permute.xlu0 %3563
        %3565 = vrot.lane.b32.xlu0 %v2470, 64
        %v3566 = vpop.permute.xlu0 %3565
        %3567 = vrot.lane.b32.xlu0 %v2471, 64
        %v3568 = vpop.permute.xlu0 %3567
        %3569 = vrot.lane.b32.xlu0 %v2472, 64
        %v3570 = vpop.permute.xlu0 %3569
        %3571 = vrot.lane.b32.xlu0 %v2473, 64
        %v3572 = vpop.permute.xlu0 %3571
        %3573 = vrot.lane.b32.xlu0 %v2474, 64
        %v3574 = vpop.permute.xlu0 %3573
        %3575 = vrot.lane.b32.xlu0 %v2475, 64
        %v3576 = vpop.permute.xlu0 %3575
        %3577 = vrot.lane.b32.xlu0 %v2476, 64
        %v3578 = vpop.permute.xlu0 %3577
        %3579 = vrot.lane.b32.xlu0 %v2477, 64
        %v3580 = vpop.permute.xlu0 %3579
        %3581 = vrot.lane.b32.xlu0 %v2478, 64
        %v3582 = vpop.permute.xlu0 %3581
        %3583 = vrot.lane.b32.xlu0 %v2479, 64
        %v3584 = vpop.permute.xlu0 %3583
        %3585 = vrot.lane.b32.xlu0 %v2480, 64
        %v3586 = vpop.permute.xlu0 %3585
        %3587 = vrot.lane.b32.xlu0 %v2481, 64
        %v3588 = vpop.permute.xlu0 %3587
        %3589 = vrot.lane.b32.xlu0 %v2482, 64
        %v3590 = vpop.permute.xlu0 %3589
        %3591 = vrot.lane.b32.xlu0 %v2483, 64
        %v3592 = vpop.permute.xlu0 %3591
        %3593 = vrot.lane.b32.xlu0 %v2484, 64
        %v3594 = vpop.permute.xlu0 %3593
        %3595 = vrot.lane.b32.xlu0 %v2485, 64
        %v3596 = vpop.permute.xlu0 %3595
        %3597 = vrot.lane.b32.xlu0 %v2486, 64
        %v3598 = vpop.permute.xlu0 %3597
        %3599 = vrot.lane.b32.xlu0 %v2487, 64
        %v3600 = vpop.permute.xlu0 %3599
        %3601 = vrot.lane.b32.xlu0 %v2488, 64
        %v3602 = vpop.permute.xlu0 %3601
        %3603 = vrot.lane.b32.xlu0 %v2489, 64
        %v3604 = vpop.permute.xlu0 %3603
        %3605 = vrot.lane.b32.xlu0 %v2490, 64
        %v3606 = vpop.permute.xlu0 %3605
        %3607 = vrot.lane.b32.xlu0 %v2491, 64
        %v3608 = vpop.permute.xlu0 %3607
        %3609 = vrot.lane.b32.xlu0 %v2492, 64
        %v3610 = vpop.permute.xlu0 %3609
        %3611 = vrot.lane.b32.xlu0 %v2493, 64
        %v3612 = vpop.permute.xlu0 %3611
        %3613 = vrot.lane.b32.xlu0 %v2494, 64
        %v3614 = vpop.permute.xlu0 %3613
        %3615 = vrot.lane.b32.xlu0 %v2495, 64
        %v3616 = vpop.permute.xlu0 %3615
        %3617 = vrot.lane.b32.xlu0 %v2496, 64
        %v3618 = vpop.permute.xlu0 %3617
        %3619 = vrot.lane.b32.xlu0 %v2497, 64
        %v3620 = vpop.permute.xlu0 %3619
        %3685 = vrot.lane.b32.xlu0 %v3365, 96
        %v3686 = vpop.permute.xlu0 %3685
        %3687 = vrot.lane.b32.xlu0 %v3366, 96
        %v3688 = vpop.permute.xlu0 %3687
        %3689 = vrot.lane.b32.xlu0 %v3367, 96
        %v3690 = vpop.permute.xlu0 %3689
        %3691 = vrot.lane.b32.xlu0 %v3368, 96
        %v3692 = vpop.permute.xlu0 %3691
        %3693 = vrot.lane.b32.xlu0 %v3369, 96
        %v3694 = vpop.permute.xlu0 %3693
        %3695 = vrot.lane.b32.xlu0 %v3370, 96
        %v3696 = vpop.permute.xlu0 %3695
        %3697 = vrot.lane.b32.xlu0 %v3371, 96
        %v3698 = vpop.permute.xlu0 %3697
        %3699 = vrot.lane.b32.xlu0 %v3372, 96
        %v3700 = vpop.permute.xlu0 %3699
        %3701 = vrot.lane.b32.xlu0 %v3373, 96
        %v3702 = vpop.permute.xlu0 %3701
        %3703 = vrot.lane.b32.xlu0 %v3374, 96
        %v3704 = vpop.permute.xlu0 %3703
        %3705 = vrot.lane.b32.xlu0 %v3375, 96
        %v3706 = vpop.permute.xlu0 %3705
        %3707 = vrot.lane.b32.xlu0 %v3376, 96
        %v3708 = vpop.permute.xlu0 %3707
        %3709 = vrot.lane.b32.xlu0 %v3377, 96
        %v3710 = vpop.permute.xlu0 %3709
        %3711 = vrot.lane.b32.xlu0 %v3378, 96
        %v3712 = vpop.permute.xlu0 %3711
        %3713 = vrot.lane.b32.xlu0 %v3379, 96
        %v3714 = vpop.permute.xlu0 %3713
        %3715 = vrot.lane.b32.xlu0 %v3380, 96
        %v3716 = vpop.permute.xlu0 %3715
        %3717 = vrot.lane.b32.xlu0 %v3381, 96
        %v3718 = vpop.permute.xlu0 %3717
        %3719 = vrot.lane.b32.xlu0 %v3382, 96
        %v3720 = vpop.permute.xlu0 %3719
        %3721 = vrot.lane.b32.xlu0 %v3383, 96
        %v3722 = vpop.permute.xlu0 %3721
        %3723 = vrot.lane.b32.xlu0 %v3384, 96
        %v3724 = vpop.permute.xlu0 %3723
        %3725 = vrot.lane.b32.xlu0 %v3385, 96
        %v3726 = vpop.permute.xlu0 %3725
        %3727 = vrot.lane.b32.xlu0 %v3386, 96
        %v3728 = vpop.permute.xlu0 %3727
        %3729 = vrot.lane.b32.xlu0 %v3387, 96
        %v3730 = vpop.permute.xlu0 %3729
        %3731 = vrot.lane.b32.xlu0 %v3388, 96
        %v3732 = vpop.permute.xlu0 %3731
        %3733 = vrot.lane.b32.xlu0 %v3389, 96
        %v3734 = vpop.permute.xlu0 %3733
        %3735 = vrot.lane.b32.xlu0 %v3390, 96
        %v3736 = vpop.permute.xlu0 %3735
        %3737 = vrot.lane.b32.xlu0 %v3391, 96
        %v3738 = vpop.permute.xlu0 %3737
        %3739 = vrot.lane.b32.xlu0 %v3392, 96
        %v3740 = vpop.permute.xlu0 %3739
        %3741 = vrot.lane.b32.xlu0 %v3393, 96
        %v3742 = vpop.permute.xlu0 %3741
        %3743 = vrot.lane.b32.xlu0 %v3394, 96
        %v3744 = vpop.permute.xlu0 %3743
        %3745 = vrot.lane.b32.xlu0 %v3395, 96
        %v3746 = vpop.permute.xlu0 %3745
        %3747 = vrot.lane.b32.xlu0 %v3396, 96
        %v3748 = vpop.permute.xlu0 %3747
        %v3781 = vsel %vm324, %v538, %v3430
        %v3782 = vsel %vm324, %v539, %v3432
        %v3783 = vsel %vm324, %v540, %v3434
        %v3784 = vsel %vm324, %v541, %v3436
        %v3785 = vsel %vm324, %v542, %v3438
        %v3786 = vsel %vm324, %v543, %v3440
        %v3787 = vsel %vm324, %v544, %v3442
        %v3788 = vsel %vm324, %v545, %v3444
        %v3789 = vsel %vm324, %v546, %v3446
        %v3790 = vsel %vm324, %v547, %v3448
        %v3791 = vsel %vm324, %v548, %v3450
        %v3792 = vsel %vm324, %v549, %v3452
        %v3793 = vsel %vm324, %v550, %v3454
        %v3794 = vsel %vm324, %v551, %v3456
        %v3795 = vsel %vm324, %v552, %v3458
        %v3796 = vsel %vm324, %v553, %v3460
        %v3797 = vsel %vm324, %v554, %v3462
        %v3798 = vsel %vm324, %v555, %v3464
        %v3799 = vsel %vm324, %v556, %v3466
        %v3800 = vsel %vm324, %v557, %v3468
        %v3801 = vsel %vm324, %v558, %v3470
        %v3802 = vsel %vm324, %v559, %v3472
        %v3803 = vsel %vm324, %v560, %v3474
        %v3804 = vsel %vm324, %v561, %v3476
        %v3805 = vsel %vm324, %v562, %v3478
        %v3806 = vsel %vm324, %v563, %v3480
        %v3807 = vsel %vm324, %v564, %v3482
        %v3808 = vsel %vm324, %v565, %v3484
        %v3809 = vsel %vm324, %v566, %v3486
        %v3810 = vsel %vm324, %v567, %v3488
        %v3811 = vsel %vm324, %v568, %v3490
        %v3812 = vsel %vm324, %v569, %v3492
        %vm3813 = vcmask 523264
        %v3814 = vsel %vm3813, %v3781, %v3558
        %v3815 = vsel %vm3813, %v3782, %v3560
        %v3816 = vsel %vm3813, %v3783, %v3562
        %v3817 = vsel %vm3813, %v3784, %v3564
        %v3818 = vsel %vm3813, %v3785, %v3566
        %v3819 = vsel %vm3813, %v3786, %v3568
        %v3820 = vsel %vm3813, %v3787, %v3570
        %v3821 = vsel %vm3813, %v3788, %v3572
        %v3822 = vsel %vm3813, %v3789, %v3574
        %v3823 = vsel %vm3813, %v3790, %v3576
        %v3824 = vsel %vm3813, %v3791, %v3578
        %v3825 = vsel %vm3813, %v3792, %v3580
        %v3826 = vsel %vm3813, %v3793, %v3582
        %v3827 = vsel %vm3813, %v3794, %v3584
        %v3828 = vsel %vm3813, %v3795, %v3586
        %v3829 = vsel %vm3813, %v3796, %v3588
        %v3830 = vsel %vm3813, %v3797, %v3590
        %v3831 = vsel %vm3813, %v3798, %v3592
        %v3832 = vsel %vm3813, %v3799, %v3594
        %v3833 = vsel %vm3813, %v3800, %v3596
        %v3834 = vsel %vm3813, %v3801, %v3598
        %v3835 = vsel %vm3813, %v3802, %v3600
        %v3836 = vsel %vm3813, %v3803, %v3602
        %v3837 = vsel %vm3813, %v3804, %v3604
        %v3838 = vsel %vm3813, %v3805, %v3606
        %v3839 = vsel %vm3813, %v3806, %v3608
        %v3840 = vsel %vm3813, %v3807, %v3610
        %v3841 = vsel %vm3813, %v3808, %v3612
        %v3842 = vsel %vm3813, %v3809, %v3614
        %v3843 = vsel %vm3813, %v3810, %v3616
        %v3844 = vsel %vm3813, %v3811, %v3618
        %v3845 = vsel %vm3813, %v3812, %v3620
        %vm3846 = vcmask 785408
        %v3847 = vsel %vm3846, %v3814, %v3686
        %v3848 = vsel %vm3846, %v3815, %v3688
        %v3849 = vsel %vm3846, %v3816, %v3690
        %v3850 = vsel %vm3846, %v3817, %v3692
        %v3851 = vsel %vm3846, %v3818, %v3694
        %v3852 = vsel %vm3846, %v3819, %v3696
        %v3853 = vsel %vm3846, %v3820, %v3698
        %v3854 = vsel %vm3846, %v3821, %v3700
        %v3855 = vsel %vm3846, %v3822, %v3702
        %v3856 = vsel %vm3846, %v3823, %v3704
        %v3857 = vsel %vm3846, %v3824, %v3706
        %v3858 = vsel %vm3846, %v3825, %v3708
        %v3859 = vsel %vm3846, %v3826, %v3710
        %v3860 = vsel %vm3846, %v3827, %v3712
        %v3861 = vsel %vm3846, %v3828, %v3714
        %v3862 = vsel %vm3846, %v3829, %v3716
        %v3863 = vsel %vm3846, %v3830, %v3718
        %v3864 = vsel %vm3846, %v3831, %v3720
        %v3865 = vsel %vm3846, %v3832, %v3722
        %v3866 = vsel %vm3846, %v3833, %v3724
        %v3867 = vsel %vm3846, %v3834, %v3726
        %v3868 = vsel %vm3846, %v3835, %v3728
        %v3869 = vsel %vm3846, %v3836, %v3730
        %v3870 = vsel %vm3846, %v3837, %v3732
        %v3871 = vsel %vm3846, %v3838, %v3734
        %v3872 = vsel %vm3846, %v3839, %v3736
        %v3873 = vsel %vm3846, %v3840, %v3738
        %v3874 = vsel %vm3846, %v3841, %v3740
        %v3875 = vsel %vm3846, %v3842, %v3742
        %v3876 = vsel %vm3846, %v3843, %v3744
        %v3877 = vsel %vm3846, %v3844, %v3746
        %v3878 = vsel %vm3846, %v3845, %v3748
        %v3879 = vld [vmem:[%s4] sm:$0xff]
        %v3880 = vld [vmem:[%s4 + $0x8] sm:$0xff]
        %v3881 = vld [vmem:[%s4 + $0x10] sm:$0xff]
        %v3882 = vld [vmem:[%s4 + $0x18] sm:$0xff]
        %v3883 = vld [vmem:[%s4 + $0x20] sm:$0xff]
        %v3884 = vld [vmem:[%s4 + $0x28] sm:$0xff]
        %v3885 = vld [vmem:[%s4 + $0x30] sm:$0xff]
        %v3886 = vld [vmem:[%s4 + $0x38] sm:$0xff]
        %v3887 = vld [vmem:[%s4 + $0x40] sm:$0xff]
        %v3888 = vld [vmem:[%s4 + $0x48] sm:$0xff]
        %v3889 = vld [vmem:[%s4 + $0x50] sm:$0xff]
        %v3890 = vld [vmem:[%s4 + $0x58] sm:$0xff]
        %v3891 = vld [vmem:[%s4 + $0x60] sm:$0xff]
        %v3892 = vld [vmem:[%s4 + $0x68] sm:$0xff]
        %v3893 = vld [vmem:[%s4 + $0x70] sm:$0xff]
        %v3894 = vld [vmem:[%s4 + $0x78] sm:$0xff]
        %v3895 = vld [vmem:[%s4 + $0x80] sm:$0xff]
        %v3896 = vld [vmem:[%s4 + $0x88] sm:$0xff]
        %v3897 = vld [vmem:[%s4 + $0x90] sm:$0xff]
        %v3898 = vld [vmem:[%s4 + $0x98] sm:$0xff]
        %v3900 = vsel %vm324, %v397, 0
        %v3903 = vsel %vm324, %v398, 0
        %v3906 = vsel %vm324, %v399, 0
        %v3909 = vsel %vm324, %v400, 0
        %v3912 = vsel %vm324, %v401, 0
        %v3915 = vsel %vm324, %v402, 0
        %v3918 = vsel %vm324, %v403, 0
        %v3921 = vsel %vm324, %v404, 0
        %v3924 = vsel %vm324, %v405, 0
        %v3927 = vsel %vm324, %v406, 0
        %v3930 = vsel %vm324, %v407, 0
        %v3933 = vsel %vm324, %v408, 0
        %v3936 = vsel %vm324, %v409, 0
        %v3939 = vsel %vm324, %v410, 0
        %v3942 = vsel %vm324, %v411, 0
        %v3945 = vsel %vm324, %v412, 0
        %v3948 = vsel %vm324, %v413, 0
        %v3951 = vsel %vm324, %v414, 0
        %v3954 = vsel %vm324, %v415, 0
        %v3957 = vsel %vm324, %v416, 0
        %v3960 = vsel %vm324, %v417, 0
        %v3963 = vsel %vm324, %v418, 0
        %v3966 = vsel %vm324, %v419, 0
        %v3969 = vsel %vm324, %v420, 0
        %v3972 = vsel %vm324, %v421, 0
        %v3975 = vsel %vm324, %v422, 0
        %v3978 = vsel %vm324, %v423, 0
        %v3981 = vsel %vm324, %v424, 0
        %v3984 = vsel %vm324, %v425, 0
        %v3987 = vsel %vm324, %v426, 0
        %v3990 = vsel %vm324, %v427, 0
        %v3993 = vsel %vm324, %v428, 0
        %3995 = vmatprep.subr.mxu0 0.0
        %3996 = vmatpush1.msra.mxu0 %v3894
        %3997 = vmatprep.subr.mxu0 0.0
        %3998 = vmatpush1.msra.mxu0 %v3893
        %3999 = vmatprep.subr.mxu0 0.0
        %4000 = vmatpush1.msra.mxu0 %v3892
        %4001 = vmatprep.subr.mxu0 0.0
        %4002 = vmatpush1.msra.mxu0 %v3891
        %4003 = vmatprep.subr.mxu0 0.0
        %4004 = vmatpush1.msra.mxu0 %v3890
        %4005 = vmatprep.subr.mxu0 0.0
        %4006 = vmatpush1.msra.mxu0 %v3889
        %4007 = vmatprep.subr.mxu0 0.0
        %4008 = vmatpush1.msra.mxu0 %v3888
        %4009 = vmatprep.subr.mxu0 0.0
        %4010 = vmatpush1.msra.mxu0 %v3887
        %4011 = vmatprep.subr.mxu0 0.0
        %4012 = vmatpush1.msra.mxu0 %v3886
        %4013 = vmatprep.subr.mxu0 0.0
        %4014 = vmatpush1.msra.mxu0 %v3885
        %4015 = vmatprep.subr.mxu0 0.0
        %4016 = vmatpush1.msra.mxu0 %v3884
        %4017 = vmatprep.subr.mxu0 0.0
        %4018 = vmatpush1.msra.mxu0 %v3883
        %4019 = vmatprep.subr.mxu0 0.0
        %4020 = vmatpush1.msra.mxu0 %v3882
        %4021 = vmatprep.subr.mxu0 0.0
        %4022 = vmatpush1.msra.mxu0 %v3881
        %4023 = vmatprep.subr.mxu0 0.0
        %4024 = vmatpush1.msra.mxu0 %v3880
        %4025 = vmatprep.subr.mxu0 0.0
        %4026 = vmatpush1.msra.mxu0 %v3879
        %4027 = vmatprep.subr.mxu0 0.0
        %4028 = vmatpush2.msra.mxu0 0.0
        %4029 = vmatprep.subr.mxu0 0.0
        %4030 = vmatpush2.msra.mxu0 0.0
        %4031 = vmatprep.subr.mxu0 0.0
        %4032 = vmatpush2.msra.mxu0 0.0
        %4033 = vmatprep.subr.mxu0 0.0
        %4034 = vmatpush2.msra.mxu0 0.0
        %4035 = vmatprep.subr.mxu0 0.0
        %4036 = vmatpush2.msra.mxu0 0.0
        %4037 = vmatprep.subr.mxu0 0.0
        %4038 = vmatpush2.msra.mxu0 0.0
        %4039 = vmatprep.subr.mxu0 0.0
        %4040 = vmatpush2.msra.mxu0 0.0
        %4041 = vmatprep.subr.mxu0 0.0
        %4042 = vmatpush2.msra.mxu0 0.0
        %4043 = vmatprep.subr.mxu0 0.0
        %4044 = vmatpush2.msra.mxu0 0.0
        %4045 = vmatprep.subr.mxu0 0.0
        %4046 = vmatpush2.msra.mxu0 0.0
        %4047 = vmatprep.subr.mxu0 0.0
        %4048 = vmatpush2.msra.mxu0 0.0
        %4049 = vmatprep.subr.mxu0 0.0
        %4050 = vmatpush2.msra.mxu0 0.0
        %4051 = vmatprep.subr.mxu0 0.0
        %4052 = vmatpush2.msra.mxu0 %v3898
        %4053 = vmatprep.subr.mxu0 0.0
        %4054 = vmatpush2.msra.mxu0 %v3897
        %4055 = vmatprep.subr.mxu0 0.0
        %4056 = vmatpush2.msra.mxu0 %v3896
        %4057 = vmatprep.subr.mxu0 0.0
        %4058 = vmatpush2.msra.mxu0 %v3895
        %4059 = vmatprep.mubr.f32.mxu0 %v3900
        %4060 = vmatmul.mubr.f32.gmra.mxu0 %v3847
        %v4061 = vpop.f32.mrf.mxu0
        %v4062 = vadd.f32 0.0, %v4061
        %v4063 = vpop.f32.mrf.mxu0
        %4064 = vmatprep.mubr.f32.mxu0 %v3903
        %4065 = vmatmul.mubr.f32.gmra.mxu0 %v3848
        %v4066 = vpop.f32.mrf.mxu0
        %v4067 = vadd.f32 0.0, %v4066
        %v4068 = vpop.f32.mrf.mxu0
        %4069 = vmatprep.mubr.f32.mxu0 %v3906
        %4070 = vmatmul.mubr.f32.gmra.mxu0 %v3849
        %v4071 = vpop.f32.mrf.mxu0
        %v4072 = vadd.f32 0.0, %v4071
        %v4073 = vpop.f32.mrf.mxu0
        %4074 = vmatprep.mubr.f32.mxu0 %v3909
        %4075 = vmatmul.mubr.f32.gmra.mxu0 %v3850
        %v4076 = vpop.f32.mrf.mxu0
        %v4077 = vadd.f32 0.0, %v4076
        %v4078 = vpop.f32.mrf.mxu0
        %4079 = vmatprep.mubr.f32.mxu0 %v3912
        %4080 = vmatmul.mubr.f32.gmra.mxu0 %v3851
        %v4081 = vpop.f32.mrf.mxu0
        %v4082 = vadd.f32 0.0, %v4081
        %v4083 = vpop.f32.mrf.mxu0
        %4084 = vmatprep.mubr.f32.mxu0 %v3915
        %4085 = vmatmul.mubr.f32.gmra.mxu0 %v3852
        %v4086 = vpop.f32.mrf.mxu0
        %v4087 = vadd.f32 0.0, %v4086
        %v4088 = vpop.f32.mrf.mxu0
        %4089 = vmatprep.mubr.f32.mxu0 %v3918
        %4090 = vmatmul.mubr.f32.gmra.mxu0 %v3853
        %v4091 = vpop.f32.mrf.mxu0
        %v4092 = vadd.f32 0.0, %v4091
        %v4093 = vpop.f32.mrf.mxu0
        %4094 = vmatprep.mubr.f32.mxu0 %v3921
        %4095 = vmatmul.mubr.f32.gmra.mxu0 %v3854
        %v4096 = vpop.f32.mrf.mxu0
        %v4097 = vadd.f32 0.0, %v4096
        %v4098 = vpop.f32.mrf.mxu0
        %4099 = vmatprep.mubr.f32.mxu0 %v3924
        %4100 = vmatmul.mubr.f32.gmra.mxu0 %v3855
        %v4101 = vpop.f32.mrf.mxu0
        %v4102 = vadd.f32 0.0, %v4101
        %v4103 = vpop.f32.mrf.mxu0
        %4104 = vmatprep.mubr.f32.mxu0 %v3927
        %4105 = vmatmul.mubr.f32.gmra.mxu0 %v3856
        %v4106 = vpop.f32.mrf.mxu0
        %v4107 = vadd.f32 0.0, %v4106
        %v4108 = vpop.f32.mrf.mxu0
        %4109 = vmatprep.mubr.f32.mxu0 %v3930
        %4110 = vmatmul.mubr.f32.gmra.mxu0 %v3857
        %v4111 = vpop.f32.mrf.mxu0
        %v4112 = vadd.f32 0.0, %v4111
        %v4113 = vpop.f32.mrf.mxu0
        %4114 = vmatprep.mubr.f32.mxu0 %v3933
        %4115 = vmatmul.mubr.f32.gmra.mxu0 %v3858
        %v4116 = vpop.f32.mrf.mxu0
        %v4117 = vadd.f32 0.0, %v4116
        %v4118 = vpop.f32.mrf.mxu0
        %4119 = vmatprep.mubr.f32.mxu0 %v3936
        %4120 = vmatmul.mubr.f32.gmra.mxu0 %v3859
        %v4121 = vpop.f32.mrf.mxu0
        %v4122 = vadd.f32 0.0, %v4121
        %v4123 = vpop.f32.mrf.mxu0
        %4124 = vmatprep.mubr.f32.mxu0 %v3939
        %4125 = vmatmul.mubr.f32.gmra.mxu0 %v3860
        %v4126 = vpop.f32.mrf.mxu0
        %v4127 = vadd.f32 0.0, %v4126
        %v4128 = vpop.f32.mrf.mxu0
        %4129 = vmatprep.mubr.f32.mxu0 %v3942
        %4130 = vmatmul.mubr.f32.gmra.mxu0 %v3861
        %v4131 = vpop.f32.mrf.mxu0
        %v4132 = vadd.f32 0.0, %v4131
        %v4133 = vpop.f32.mrf.mxu0
        %4134 = vmatprep.mubr.f32.mxu0 %v3945
        %4135 = vmatmul.mubr.f32.gmra.mxu0 %v3862
        %v4136 = vpop.f32.mrf.mxu0
        %v4137 = vadd.f32 0.0, %v4136
        %v4138 = vpop.f32.mrf.mxu0
        %4139 = vmatprep.mubr.f32.mxu0 %v3948
        %4140 = vmatmul.mubr.f32.gmra.mxu0 %v3863
        %v4141 = vpop.f32.mrf.mxu0
        %v4142 = vadd.f32 0.0, %v4141
        %v4143 = vpop.f32.mrf.mxu0
        %4144 = vmatprep.mubr.f32.mxu0 %v3951
        %4145 = vmatmul.mubr.f32.gmra.mxu0 %v3864
        %v4146 = vpop.f32.mrf.mxu0
        %v4147 = vadd.f32 0.0, %v4146
        %v4148 = vpop.f32.mrf.mxu0
        %4149 = vmatprep.mubr.f32.mxu0 %v3954
        %4150 = vmatmul.mubr.f32.gmra.mxu0 %v3865
        %v4151 = vpop.f32.mrf.mxu0
        %v4152 = vadd.f32 0.0, %v4151
        %v4153 = vpop.f32.mrf.mxu0
        %4154 = vmatprep.mubr.f32.mxu0 %v3957
        %4155 = vmatmul.mubr.f32.gmra.mxu0 %v3866
        %v4156 = vpop.f32.mrf.mxu0
        %v4157 = vadd.f32 0.0, %v4156
        %v4158 = vpop.f32.mrf.mxu0
        %4159 = vmatprep.mubr.f32.mxu0 %v3960
        %4160 = vmatmul.mubr.f32.gmra.mxu0 %v3867
        %v4161 = vpop.f32.mrf.mxu0
        %v4162 = vadd.f32 0.0, %v4161
        %v4163 = vpop.f32.mrf.mxu0
        %4164 = vmatprep.mubr.f32.mxu0 %v3963
        %4165 = vmatmul.mubr.f32.gmra.mxu0 %v3868
        %v4166 = vpop.f32.mrf.mxu0
        %v4167 = vadd.f32 0.0, %v4166
        %v4168 = vpop.f32.mrf.mxu0
        %4169 = vmatprep.mubr.f32.mxu0 %v3966
        %4170 = vmatmul.mubr.f32.gmra.mxu0 %v3869
        %v4171 = vpop.f32.mrf.mxu0
        %v4172 = vadd.f32 0.0, %v4171
        %v4173 = vpop.f32.mrf.mxu0
        %4174 = vmatprep.mubr.f32.mxu0 %v3969
        %4175 = vmatmul.mubr.f32.gmra.mxu0 %v3870
        %v4176 = vpop.f32.mrf.mxu0
        %v4177 = vadd.f32 0.0, %v4176
        %v4178 = vpop.f32.mrf.mxu0
        %4179 = vmatprep.mubr.f32.mxu0 %v3972
        %4180 = vmatmul.mubr.f32.gmra.mxu0 %v3871
        %v4181 = vpop.f32.mrf.mxu0
        %v4182 = vadd.f32 0.0, %v4181
        %v4183 = vpop.f32.mrf.mxu0
        %4184 = vmatprep.mubr.f32.mxu0 %v3975
        %4185 = vmatmul.mubr.f32.gmra.mxu0 %v3872
        %v4186 = vpop.f32.mrf.mxu0
        %v4187 = vadd.f32 0.0, %v4186
        %v4188 = vpop.f32.mrf.mxu0
        %4189 = vmatprep.mubr.f32.mxu0 %v3978
        %4190 = vmatmul.mubr.f32.gmra.mxu0 %v3873
        %v4191 = vpop.f32.mrf.mxu0
        %v4192 = vadd.f32 0.0, %v4191
        %v4193 = vpop.f32.mrf.mxu0
        %4194 = vmatprep.mubr.f32.mxu0 %v3981
        %4195 = vmatmul.mubr.f32.gmra.mxu0 %v3874
        %v4196 = vpop.f32.mrf.mxu0
        %v4197 = vadd.f32 0.0, %v4196
        %v4198 = vpop.f32.mrf.mxu0
        %4199 = vmatprep.mubr.f32.mxu0 %v3984
        %4200 = vmatmul.mubr.f32.gmra.mxu0 %v3875
        %v4201 = vpop.f32.mrf.mxu0
        %v4202 = vadd.f32 0.0, %v4201
        %v4203 = vpop.f32.mrf.mxu0
        %4204 = vmatprep.mubr.f32.mxu0 %v3987
        %4205 = vmatmul.mubr.f32.gmra.mxu0 %v3876
        %v4206 = vpop.f32.mrf.mxu0
        %v4207 = vadd.f32 0.0, %v4206
        %v4208 = vpop.f32.mrf.mxu0
        %4209 = vmatprep.mubr.f32.mxu0 %v3990
        %4210 = vmatmul.mubr.f32.gmra.mxu0 %v3877
        %v4211 = vpop.f32.mrf.mxu0
        %v4212 = vadd.f32 0.0, %v4211
        %v4213 = vpop.f32.mrf.mxu0
        %4214 = vmatprep.mubr.f32.mxu0 %v3993
        %4215 = vmatmul.mubr.f32.gmra.mxu0 %v3878
        %v4216 = vpop.f32.mrf.mxu0
        %v4217 = vadd.f32 0.0, %v4216
        %v4218 = vpop.f32.mrf.mxu0
        %4219 = vdwg.mxu0
        %v4220 = vld [vmem:[%s5] sm:$0x1]
        %v4222 = vlaneseq
        %v4223 = vshrl.u32 %v4222, 7
        %v4224 = vsub.s32 0, %v4223
        %v4225 = vrot.slane %v4220, %v4224
        %v4227 = vadd.f32 %v4062, %v4225
        %v4228 = vadd.f32 %v4067, %v4225
        %v4229 = vadd.f32 %v4072, %v4225
        %v4230 = vadd.f32 %v4077, %v4225
        %v4231 = vadd.f32 %v4082, %v4225
        %v4232 = vadd.f32 %v4087, %v4225
        %v4233 = vadd.f32 %v4092, %v4225
        %v4234 = vadd.f32 %v4097, %v4225
        %v4235 = vadd.f32 %v4102, %v4225
        %v4236 = vadd.f32 %v4107, %v4225
        %v4237 = vadd.f32 %v4112, %v4225
        %v4238 = vadd.f32 %v4117, %v4225
        %v4239 = vadd.f32 %v4122, %v4225
        %v4240 = vadd.f32 %v4127, %v4225
        %v4241 = vadd.f32 %v4132, %v4225
        %v4242 = vadd.f32 %v4137, %v4225
        %v4243 = vadd.f32 %v4142, %v4225
        %v4244 = vadd.f32 %v4147, %v4225
        %v4245 = vadd.f32 %v4152, %v4225
        %v4246 = vadd.f32 %v4157, %v4225
        %v4247 = vadd.f32 %v4162, %v4225
        %v4248 = vadd.f32 %v4167, %v4225
        %v4249 = vadd.f32 %v4172, %v4225
        %v4250 = vadd.f32 %v4177, %v4225
        %v4251 = vadd.f32 %v4182, %v4225
        %v4252 = vadd.f32 %v4187, %v4225
        %v4253 = vadd.f32 %v4192, %v4225
        %v4254 = vadd.f32 %v4197, %v4225
        %v4255 = vadd.f32 %v4202, %v4225
        %v4256 = vadd.f32 %v4207, %v4225
        %v4257 = vadd.f32 %v4212, %v4225
        %v4258 = vadd.f32 %v4217, %v4225
        %v4259 = vmax.f32 %v4227, 0.0
        %v4260 = vmax.f32 %v4228, 0.0
        %v4261 = vmax.f32 %v4229, 0.0
        %v4262 = vmax.f32 %v4230, 0.0
        %v4263 = vmax.f32 %v4231, 0.0
        %v4264 = vmax.f32 %v4232, 0.0
        %v4265 = vmax.f32 %v4233, 0.0
        %v4266 = vmax.f32 %v4234, 0.0
        %v4267 = vmax.f32 %v4235, 0.0
        %v4268 = vmax.f32 %v4236, 0.0
        %v4269 = vmax.f32 %v4237, 0.0
        %v4270 = vmax.f32 %v4238, 0.0
        %v4271 = vmax.f32 %v4239, 0.0
        %v4272 = vmax.f32 %v4240, 0.0
        %v4273 = vmax.f32 %v4241, 0.0
        %v4274 = vmax.f32 %v4242, 0.0
        %v4275 = vmax.f32 %v4243, 0.0
        %v4276 = vmax.f32 %v4244, 0.0
        %v4277 = vmax.f32 %v4245, 0.0
        %v4278 = vmax.f32 %v4246, 0.0
        %v4279 = vmax.f32 %v4247, 0.0
        %v4280 = vmax.f32 %v4248, 0.0
        %v4281 = vmax.f32 %v4249, 0.0
        %v4282 = vmax.f32 %v4250, 0.0
        %v4283 = vmax.f32 %v4251, 0.0
        %v4284 = vmax.f32 %v4252, 0.0
        %v4285 = vmax.f32 %v4253, 0.0
        %v4286 = vmax.f32 %v4254, 0.0
        %v4287 = vmax.f32 %v4255, 0.0
        %v4288 = vmax.f32 %v4256, 0.0
        %v4289 = vmax.f32 %v4257, 0.0
        %v4290 = vmax.f32 %v4258, 0.0
        %v4291 = vld [vmem:[%s6] sm:$0x1]
        %v4293 = vlaneseq
        %v4294 = vshrl.u32 %v4293, 7
        %v4295 = vsub.s32 0, %v4294
        %v4296 = vrot.slane %v4291, %v4295
        %4297 = vrot.lane.b32.xlu0 %v4296, 32
        %v4298 = vpop.permute.xlu0 %4297
        %v4300 = vadd.f32 %v4062, %v4298
        %v4301 = vadd.f32 %v4067, %v4298
        %v4302 = vadd.f32 %v4072, %v4298
        %v4303 = vadd.f32 %v4077, %v4298
        %v4304 = vadd.f32 %v4082, %v4298
        %v4305 = vadd.f32 %v4087, %v4298
        %v4306 = vadd.f32 %v4092, %v4298
        %v4307 = vadd.f32 %v4097, %v4298
        %v4308 = vadd.f32 %v4102, %v4298
        %v4309 = vadd.f32 %v4107, %v4298
        %v4310 = vadd.f32 %v4112, %v4298
        %v4311 = vadd.f32 %v4117, %v4298
        %v4312 = vadd.f32 %v4122, %v4298
        %v4313 = vadd.f32 %v4127, %v4298
        %v4314 = vadd.f32 %v4132, %v4298
        %v4315 = vadd.f32 %v4137, %v4298
        %v4316 = vadd.f32 %v4142, %v4298
        %v4317 = vadd.f32 %v4147, %v4298
        %v4318 = vadd.f32 %v4152, %v4298
        %v4319 = vadd.f32 %v4157, %v4298
        %v4320 = vadd.f32 %v4162, %v4298
        %v4321 = vadd.f32 %v4167, %v4298
        %v4322 = vadd.f32 %v4172, %v4298
        %v4323 = vadd.f32 %v4177, %v4298
        %v4324 = vadd.f32 %v4182, %v4298
        %v4325 = vadd.f32 %v4187, %v4298
        %v4326 = vadd.f32 %v4192, %v4298
        %v4327 = vadd.f32 %v4197, %v4298
        %v4328 = vadd.f32 %v4202, %v4298
        %v4329 = vadd.f32 %v4207, %v4298
        %v4330 = vadd.f32 %v4212, %v4298
        %v4331 = vadd.f32 %v4217, %v4298
        %4364 = vrot.lane.b32.xlu0 %v4300, 96
        %v4365 = vpop.permute.xlu0 %4364
        %4366 = vrot.lane.b32.xlu0 %v4301, 96
        %v4367 = vpop.permute.xlu0 %4366
        %4368 = vrot.lane.b32.xlu0 %v4302, 96
        %v4369 = vpop.permute.xlu0 %4368
        %4370 = vrot.lane.b32.xlu0 %v4303, 96
        %v4371 = vpop.permute.xlu0 %4370
        %4372 = vrot.lane.b32.xlu0 %v4304, 96
        %v4373 = vpop.permute.xlu0 %4372
        %4374 = vrot.lane.b32.xlu0 %v4305, 96
        %v4375 = vpop.permute.xlu0 %4374
        %4376 = vrot.lane.b32.xlu0 %v4306, 96
        %v4377 = vpop.permute.xlu0 %4376
        %4378 = vrot.lane.b32.xlu0 %v4307, 96
        %v4379 = vpop.permute.xlu0 %4378
        %4380 = vrot.lane.b32.xlu0 %v4308, 96
        %v4381 = vpop.permute.xlu0 %4380
        %4382 = vrot.lane.b32.xlu0 %v4309, 96
        %v4383 = vpop.permute.xlu0 %4382
        %4384 = vrot.lane.b32.xlu0 %v4310, 96
        %v4385 = vpop.permute.xlu0 %4384
        %4386 = vrot.lane.b32.xlu0 %v4311, 96
        %v4387 = vpop.permute.xlu0 %4386
        %4388 = vrot.lane.b32.xlu0 %v4312, 96
        %v4389 = vpop.permute.xlu0 %4388
        %4390 = vrot.lane.b32.xlu0 %v4313, 96
        %v4391 = vpop.permute.xlu0 %4390
        %4392 = vrot.lane.b32.xlu0 %v4314, 96
        %v4393 = vpop.permute.xlu0 %4392
        %4394 = vrot.lane.b32.xlu0 %v4315, 96
        %v4395 = vpop.permute.xlu0 %4394
        %4396 = vrot.lane.b32.xlu0 %v4316, 96
        %v4397 = vpop.permute.xlu0 %4396
        %4398 = vrot.lane.b32.xlu0 %v4317, 96
        %v4399 = vpop.permute.xlu0 %4398
        %4400 = vrot.lane.b32.xlu0 %v4318, 96
        %v4401 = vpop.permute.xlu0 %4400
        %4402 = vrot.lane.b32.xlu0 %v4319, 96
        %v4403 = vpop.permute.xlu0 %4402
        %4404 = vrot.lane.b32.xlu0 %v4320, 96
        %v4405 = vpop.permute.xlu0 %4404
        %4406 = vrot.lane.b32.xlu0 %v4321, 96
        %v4407 = vpop.permute.xlu0 %4406
        %4408 = vrot.lane.b32.xlu0 %v4322, 96
        %v4409 = vpop.permute.xlu0 %4408
        %4410 = vrot.lane.b32.xlu0 %v4323, 96
        %v4411 = vpop.permute.xlu0 %4410
        %4412 = vrot.lane.b32.xlu0 %v4324, 96
        %v4413 = vpop.permute.xlu0 %4412
        %4414 = vrot.lane.b32.xlu0 %v4325, 96
        %v4415 = vpop.permute.xlu0 %4414
        %4416 = vrot.lane.b32.xlu0 %v4326, 96
        %v4417 = vpop.permute.xlu0 %4416
        %4418 = vrot.lane.b32.xlu0 %v4327, 96
        %v4419 = vpop.permute.xlu0 %4418
        %4420 = vrot.lane.b32.xlu0 %v4328, 96
        %v4421 = vpop.permute.xlu0 %4420
        %4422 = vrot.lane.b32.xlu0 %v4329, 96
        %v4423 = vpop.permute.xlu0 %4422
        %4424 = vrot.lane.b32.xlu0 %v4330, 96
        %v4425 = vpop.permute.xlu0 %4424
        %4426 = vrot.lane.b32.xlu0 %v4331, 96
        %v4427 = vpop.permute.xlu0 %4426
        %v4460 = vadd.f32 %v4259, %v4365
        %v4461 = vadd.f32 %v4260, %v4367
        %v4462 = vadd.f32 %v4261, %v4369
        %v4463 = vadd.f32 %v4262, %v4371
        %v4464 = vadd.f32 %v4263, %v4373
        %v4465 = vadd.f32 %v4264, %v4375
        %v4466 = vadd.f32 %v4265, %v4377
        %v4467 = vadd.f32 %v4266, %v4379
        %v4468 = vadd.f32 %v4267, %v4381
        %v4469 = vadd.f32 %v4268, %v4383
        %v4470 = vadd.f32 %v4269, %v4385
        %v4471 = vadd.f32 %v4270, %v4387
        %v4472 = vadd.f32 %v4271, %v4389
        %v4473 = vadd.f32 %v4272, %v4391
        %v4474 = vadd.f32 %v4273, %v4393
        %v4475 = vadd.f32 %v4274, %v4395
        %v4476 = vadd.f32 %v4275, %v4397
        %v4477 = vadd.f32 %v4276, %v4399
        %v4478 = vadd.f32 %v4277, %v4401
        %v4479 = vadd.f32 %v4278, %v4403
        %v4480 = vadd.f32 %v4279, %v4405
        %v4481 = vadd.f32 %v4280, %v4407
        %v4482 = vadd.f32 %v4281, %v4409
        %v4483 = vadd.f32 %v4282, %v4411
        %v4484 = vadd.f32 %v4283, %v4413
        %v4485 = vadd.f32 %v4284, %v4415
        %v4486 = vadd.f32 %v4285, %v4417
        %v4487 = vadd.f32 %v4286, %v4419
        %v4488 = vadd.f32 %v4287, %v4421
        %v4489 = vadd.f32 %v4288, %v4423
        %v4490 = vadd.f32 %v4289, %v4425
        %v4491 = vadd.f32 %v4290, %v4427
        %v4492 = vmax.f32 %v4460, 0.0
        %v4493 = vmax.f32 %v4461, 0.0
        %v4494 = vmax.f32 %v4462, 0.0
        %v4495 = vmax.f32 %v4463, 0.0
        %v4496 = vmax.f32 %v4464, 0.0
        %v4497 = vmax.f32 %v4465, 0.0
        %v4498 = vmax.f32 %v4466, 0.0
        %v4499 = vmax.f32 %v4467, 0.0
        %v4500 = vmax.f32 %v4468, 0.0
        %v4501 = vmax.f32 %v4469, 0.0
        %v4502 = vmax.f32 %v4470, 0.0
        %v4503 = vmax.f32 %v4471, 0.0
        %v4504 = vmax.f32 %v4472, 0.0
        %v4505 = vmax.f32 %v4473, 0.0
        %v4506 = vmax.f32 %v4474, 0.0
        %v4507 = vmax.f32 %v4475, 0.0
        %v4508 = vmax.f32 %v4476, 0.0
        %v4509 = vmax.f32 %v4477, 0.0
        %v4510 = vmax.f32 %v4478, 0.0
        %v4511 = vmax.f32 %v4479, 0.0
        %v4512 = vmax.f32 %v4480, 0.0
        %v4513 = vmax.f32 %v4481, 0.0
        %v4514 = vmax.f32 %v4482, 0.0
        %v4515 = vmax.f32 %v4483, 0.0
        %v4516 = vmax.f32 %v4484, 0.0
        %v4517 = vmax.f32 %v4485, 0.0
        %v4518 = vmax.f32 %v4486, 0.0
        %v4519 = vmax.f32 %v4487, 0.0
        %v4520 = vmax.f32 %v4488, 0.0
        %v4521 = vmax.f32 %v4489, 0.0
        %v4522 = vmax.f32 %v4490, 0.0
        %v4523 = vmax.f32 %v4491, 0.0
        %vm4524 = vcmask 589312
        %v4525 = vsel %vm4524, %v4062, 0.0
        %v4526 = vsel %vm4524, %v4067, 0.0
        %v4527 = vadd.f32 %v4525, %v4526
        %v4528 = vsel %vm4524, %v4072, 0.0
        %v4529 = vadd.f32 %v4527, %v4528
        %v4530 = vsel %vm4524, %v4077, 0.0
        %v4531 = vadd.f32 %v4529, %v4530
        %v4532 = vsel %vm4524, %v4082, 0.0
        %v4533 = vadd.f32 %v4531, %v4532
        %v4534 = vsel %vm4524, %v4087, 0.0
        %v4535 = vadd.f32 %v4533, %v4534
        %v4536 = vsel %vm4524, %v4092, 0.0
        %v4537 = vadd.f32 %v4535, %v4536
        %v4538 = vsel %vm4524, %v4097, 0.0
        %v4539 = vadd.f32 %v4537, %v4538
        %v4540 = vsel %vm4524, %v4102, 0.0
        %v4541 = vadd.f32 %v4539, %v4540
        %v4542 = vsel %vm4524, %v4107, 0.0
        %v4543 = vadd.f32 %v4541, %v4542
        %v4544 = vsel %vm4524, %v4112, 0.0
        %v4545 = vadd.f32 %v4543, %v4544
        %v4546 = vsel %vm4524, %v4117, 0.0
        %v4547 = vadd.f32 %v4545, %v4546
        %v4548 = vsel %vm4524, %v4122, 0.0
        %v4549 = vadd.f32 %v4547, %v4548
        %v4550 = vsel %vm4524, %v4127, 0.0
        %v4551 = vadd.f32 %v4549, %v4550
        %v4552 = vsel %vm4524, %v4132, 0.0
        %v4553 = vadd.f32 %v4551, %v4552
        %v4554 = vsel %vm4524, %v4137, 0.0
        %v4555 = vadd.f32 %v4553, %v4554
        %v4556 = vsel %vm4524, %v4142, 0.0
        %v4557 = vadd.f32 %v4555, %v4556
        %v4558 = vsel %vm4524, %v4147, 0.0
        %v4559 = vadd.f32 %v4557, %v4558
        %v4560 = vsel %vm4524, %v4152, 0.0
        %v4561 = vadd.f32 %v4559, %v4560
        %v4562 = vsel %vm4524, %v4157, 0.0
        %v4563 = vadd.f32 %v4561, %v4562
        %v4564 = vsel %vm4524, %v4162, 0.0
        %v4565 = vadd.f32 %v4563, %v4564
        %v4566 = vsel %vm4524, %v4167, 0.0
        %v4567 = vadd.f32 %v4565, %v4566
        %v4568 = vsel %vm4524, %v4172, 0.0
        %v4569 = vadd.f32 %v4567, %v4568
        %v4570 = vsel %vm4524, %v4177, 0.0
        %v4571 = vadd.f32 %v4569, %v4570
        %v4572 = vsel %vm4524, %v4182, 0.0
        %v4573 = vadd.f32 %v4571, %v4572
        %v4574 = vsel %vm4524, %v4187, 0.0
        %v4575 = vadd.f32 %v4573, %v4574
        %v4576 = vsel %vm4524, %v4192, 0.0
        %v4577 = vadd.f32 %v4575, %v4576
        %v4578 = vsel %vm4524, %v4197, 0.0
        %v4579 = vadd.f32 %v4577, %v4578
        %v4580 = vsel %vm4524, %v4202, 0.0
        %v4581 = vadd.f32 %v4579, %v4580
        %v4582 = vsel %vm4524, %v4207, 0.0
        %v4583 = vadd.f32 %v4581, %v4582
        %v4584 = vsel %vm4524, %v4212, 0.0
        %v4585 = vadd.f32 %v4583, %v4584
        %v4586 = vsel %vm4524, %v4217, 0.0
        %v4587 = vadd.f32 %v4585, %v4586
        %v4588 = vrot.slane %v4587, 4
        %v4589 = vadd.f32 %v4587, %v4588
        %v4590 = vrot.slane %v4589, 2
        %v4591 = vadd.f32 %v4589, %v4590
        %v4592 = vrot.slane %v4591, 1
        %v4593 = vadd.f32 %v4591, %v4592
        %v4594 = vmul.f32 %v4593, 0.00390625
        %v4595 = vld [vmem:[%s7] sm:$0x1]
        %v4597 = vlaneseq
        %v4598 = vshrl.u32 %v4597, 7
        %v4599 = vsub.s32 0, %v4598
        %v4600 = vrot.slane %v4595, %v4599
        %4601 = vrot.lane.b32.xlu0 %v4600, 64
        %v4602 = vpop.permute.xlu0 %4601
        %v4604 = vadd.f32 %v4594, %v4602
        %v4605 = vmax.f32 %v4604, 0.0
        %v4606 = vlaneseq
        %v4607 = vshrl.u32 %v4606, 7
        %v4608 = vsub.s32 0, %v4607
        %v4609 = vrot.slane %v4605, %v4608
        %4611 = vrot.lane.b32.xlu0 %v4609, 96
        %v4612 = vpop.permute.xlu0 %4611
        %v4614 = vsel %vm324, %v4492, %v4612
        %v4615 = vsel %vm324, %v4493, %v4612
        %v4616 = vsel %vm324, %v4494, %v4612
        %v4617 = vsel %vm324, %v4495, %v4612
        %v4618 = vsel %vm324, %v4496, %v4612
        %v4619 = vsel %vm324, %v4497, %v4612
        %v4620 = vsel %vm324, %v4498, %v4612
        %v4621 = vsel %vm324, %v4499, %v4612
        %v4622 = vsel %vm324, %v4500, %v4612
        %v4623 = vsel %vm324, %v4501, %v4612
        %v4624 = vsel %vm324, %v4502, %v4612
        %v4625 = vsel %vm324, %v4503, %v4612
        %v4626 = vsel %vm324, %v4504, %v4612
        %v4627 = vsel %vm324, %v4505, %v4612
        %v4628 = vsel %vm324, %v4506, %v4612
        %v4629 = vsel %vm324, %v4507, %v4612
        %v4630 = vsel %vm324, %v4508, %v4612
        %v4631 = vsel %vm324, %v4509, %v4612
        %v4632 = vsel %vm324, %v4510, %v4612
        %v4633 = vsel %vm324, %v4511, %v4612
        %v4634 = vsel %vm324, %v4512, %v4612
        %v4635 = vsel %vm324, %v4513, %v4612
        %v4636 = vsel %vm324, %v4514, %v4612
        %v4637 = vsel %vm324, %v4515, %v4612
        %v4638 = vsel %vm324, %v4516, %v4612
        %v4639 = vsel %vm324, %v4517, %v4612
        %v4640 = vsel %vm324, %v4518, %v4612
        %v4641 = vsel %vm324, %v4519, %v4612
        %v4642 = vsel %vm324, %v4520, %v4612
        %v4643 = vsel %vm324, %v4521, %v4612
        %v4644 = vsel %vm324, %v4522, %v4612
        %v4645 = vsel %vm324, %v4523, %v4612
        %vm4646 = vcmask 326656
        %v4647 = vsel %vm4646, %v4614, 0.0
        %v4648 = vsel %vm4646, %v4615, 0.0
        %v4649 = vsel %vm4646, %v4616, 0.0
        %v4650 = vsel %vm4646, %v4617, 0.0
        %v4651 = vsel %vm4646, %v4618, 0.0
        %v4652 = vsel %vm4646, %v4619, 0.0
        %v4653 = vsel %vm4646, %v4620, 0.0
        %v4654 = vsel %vm4646, %v4621, 0.0
        %v4655 = vsel %vm4646, %v4622, 0.0
        %v4656 = vsel %vm4646, %v4623, 0.0
        %v4657 = vsel %vm4646, %v4624, 0.0
        %v4658 = vsel %vm4646, %v4625, 0.0
        %v4659 = vsel %vm4646, %v4626, 0.0
        %v4660 = vsel %vm4646, %v4627, 0.0
        %v4661 = vsel %vm4646, %v4628, 0.0
        %v4662 = vsel %vm4646, %v4629, 0.0
        %v4663 = vsel %vm4646, %v4630, 0.0
        %v4664 = vsel %vm4646, %v4631, 0.0
        %v4665 = vsel %vm4646, %v4632, 0.0
        %v4666 = vsel %vm4646, %v4633, 0.0
        %v4667 = vsel %vm4646, %v4634, 0.0
        %v4668 = vsel %vm4646, %v4635, 0.0
        %v4669 = vsel %vm4646, %v4636, 0.0
        %v4670 = vsel %vm4646, %v4637, 0.0
        %v4671 = vsel %vm4646, %v4638, 0.0
        %v4672 = vsel %vm4646, %v4639, 0.0
        %v4673 = vsel %vm4646, %v4640, 0.0
        %v4674 = vsel %vm4646, %v4641, 0.0
        %v4675 = vsel %vm4646, %v4642, 0.0
        %v4676 = vsel %vm4646, %v4643, 0.0
        %v4677 = vsel %vm4646, %v4644, 0.0
        %v4678 = vsel %vm4646, %v4645, 0.0
        %4679 = vst [vmem:[%s323] sm:$0xff] %v4647
        %4680 = vst [vmem:[%s323 + $0x8] sm:$0xff] %v4648
        %4681 = vst [vmem:[%s323 + $0x10] sm:$0xff] %v4649
        %4682 = vst [vmem:[%s323 + $0x18] sm:$0xff] %v4650
        %4683 = vst [vmem:[%s323 + $0x20] sm:$0xff] %v4651
        %4684 = vst [vmem:[%s323 + $0x28] sm:$0xff] %v4652
        %4685 = vst [vmem:[%s323 + $0x30] sm:$0xff] %v4653
        %4686 = vst [vmem:[%s323 + $0x38] sm:$0xff] %v4654
        %4687 = vst [vmem:[%s323 + $0x40] sm:$0xff] %v4655
        %4688 = vst [vmem:[%s323 + $0x48] sm:$0xff] %v4656
        %4689 = vst [vmem:[%s323 + $0x50] sm:$0xff] %v4657
        %4690 = vst [vmem:[%s323 + $0x58] sm:$0xff] %v4658
        %4691 = vst [vmem:[%s323 + $0x60] sm:$0xff] %v4659
        %4692 = vst [vmem:[%s323 + $0x68] sm:$0xff] %v4660
        %4693 = vst [vmem:[%s323 + $0x70] sm:$0xff] %v4661
        %4694 = vst [vmem:[%s323 + $0x78] sm:$0xff] %v4662
        %4695 = vst [vmem:[%s323 + $0x80] sm:$0xff] %v4663
        %4696 = vst [vmem:[%s323 + $0x88] sm:$0xff] %v4664
        %4697 = vst [vmem:[%s323 + $0x90] sm:$0xff] %v4665
        %4698 = vst [vmem:[%s323 + $0x98] sm:$0xff] %v4666
        %4699 = vst [vmem:[%s323 + $0xa0] sm:$0xff] %v4667
        %4700 = vst [vmem:[%s323 + $0xa8] sm:$0xff] %v4668
        %4701 = vst [vmem:[%s323 + $0xb0] sm:$0xff] %v4669
        %4702 = vst [vmem:[%s323 + $0xb8] sm:$0xff] %v4670
        %4703 = vst [vmem:[%s323 + $0xc0] sm:$0xff] %v4671
        %4704 = vst [vmem:[%s323 + $0xc8] sm:$0xff] %v4672
        %4705 = vst [vmem:[%s323 + $0xd0] sm:$0xff] %v4673
        %4706 = vst [vmem:[%s323 + $0xd8] sm:$0xff] %v4674
        %4707 = vst [vmem:[%s323 + $0xe0] sm:$0xff] %v4675
        %4708 = vst [vmem:[%s323 + $0xe8] sm:$0xff] %v4676
        %4709 = vst [vmem:[%s323 + $0xf0] sm:$0xff] %v4677
        %4710 = vst [vmem:[%s323 + $0xf8] sm:$0xff] %v4678
        %s4711 = sand.u32 %s206, 1
        %s4712 = scalar_lea.sflag [#allocation5], %s4711
        %s4713 = sand.u32 %s206, 1
        %s4714 = smul.addr %s4713, 256
        %s4715 = scalar_lea.vmem [#allocation6], %s4714
        // Predicated region
        $region57: #{tpu_custom_call.1} parent=51 // pred_check
          %p4716 = pneg %p216
        $region58: #{tpu_custom_call.1} parent=51 // pred_check_branch
          %4718 = sbr.rel (%p4716) target = $region60
        $region59: #{tpu_custom_call.1} parent=51 // pred_region
          %s4720 = ssub.s32 4096, 4096
          %4721 = vsyncadd %s4712, %s4720
          %s4722 = smul.addr %s25, 32
          %s4723 = smul.addr %s4722, 128
          %s4724 = scalar_lea.hbm %s8, %s4723
          %s4725 = sshll.u32 %s4715, 4
          %s4726 = int_to_ptr.vmem [resolvable:$true] %s4725
          %4731 = dma.vmem_to_hbm [thread:$0]  %s4726, 4096, %s4724, %s4712, 128, 128, 8
        $region60: #{tpu_custom_call.1} parent=51 // pred_fallthru
          _
      $region52: #{tpu_custom_call.1} parent=5 // pred_fallthru
        _
      %p4732 = scmp.le.s32.totalorder 2, %s20
      // Predicated region
      $region61: #{tpu_custom_call.1} parent=5 // pred_check
        %p4733 = pneg %p4732
      $region62: #{tpu_custom_call.1} parent=5 // pred_check_branch
        %4735 = sbr.rel (%p4733) target = $region64
      $region63: #{tpu_custom_call.1} parent=5 // pred_region
        %s4736 = ssub.s32 %s20, 2
        // Predicated region
        $region65: #{tpu_custom_call.1} parent=63 // pred_check
          %p4737 = pneg %p222
        $region66: #{tpu_custom_call.1} parent=63 // pred_check_branch
          %4739 = sbr.rel (%p4737) target = $region68
        $region67: #{tpu_custom_call.1} parent=63 // pred_region
          %s4740 = sand.u32 %s207, 1
          %s4741 = scalar_lea.sflag [#allocation5], %s4740
          %s4742 = sand.u32 %s207, 1
          %s4743 = smul.addr %s4742, 256
          %s4744 = scalar_lea.vmem [#allocation6], %s4743
          %4745 = dma.done %s4741, 4096
        $region68: #{tpu_custom_call.1} parent=63 // pred_fallthru
          _
      $region64: #{tpu_custom_call.1} parent=5 // pred_fallthru
        _
    $region6: #{tpu_custom_call.1} parent=1 // loop_footer
      %s24 = sadd.s32 1, %s20
    $region7: #{tpu_custom_call.1} parent=1 // loop_footer_branch
      %19 = sbr.rel target = $region3
    $region8: #{tpu_custom_call.1} parent=1 // loop_exit
      _
    %4746 = vsyncpa [#allocation4], 1
    %s4747 = scalar_lea.sflag [#allocation4], 1
    %4748 = vsyncpa %s4747, 1
    %4749 = vsyncpa [#allocation5], 1
    %s4750 = scalar_lea.sflag [#allocation5], 1
    %4751 = vsyncpa %s4750, 1

</llo_original>
